<compile_context>
chip_gen: v7x
topology: tpu7x:2x2x1
jax: 0.10.0
libtpu: 0.0.40
codegen_flags: <defaults>
</compile_context>

<pallas_src>
import functools

import jax
import jax.numpy as jnp
from jax.experimental import pallas as pl
from jax.experimental.pallas import tpu as pltpu

BN_EPS = 1e-5
LN_EPS = 1e-5
VMEM_LIMIT = 48 * 1024 * 1024  # headroom below v7x's 64 MiB per-TC VMEM


def _round_up(x, m):
    return ((x + m - 1) // m) * m


# ----------------------------------------------------------------------------
# In-kernel math helpers
# ----------------------------------------------------------------------------
def _erf(x):
    # Abramowitz & Stegun 7.1.26 polynomial, |err| <= 1.5e-7 (f32-accurate).
    # TODO(synk): exact lax.erf has no guaranteed Mosaic lowering; f32-accurate polynomial used.
    a = jnp.abs(x)
    t = 1.0 / (1.0 + 0.3275911 * a)
    poly = t * (0.254829592 + t * (-0.284496736 + t * (1.421413741
               + t * (-1.453152027 + t * 1.061405429))))
    e = 1.0 - poly * jnp.exp(-a * a)
    return jnp.where(x < 0.0, -e, e)


def _gelu(x):
    return 0.5 * x * (1.0 + _erf(x * 0.7071067811865475))


# ----------------------------------------------------------------------------
# Fused matmul kernel:  out = epilogue( [preLN](x) @ w + b )
#   optional pre-LayerNorm on x, post-LayerNorm on y, relu/gelu activation,
#   residual add before or after the activation. BN scale is folded into w on host.
# ----------------------------------------------------------------------------
def _fused_mm_kernel(*refs, pre_ln, post_ln, act, res):
    it = iter(refs)
    x_ref = next(it)
    w_ref = next(it)
    b_ref = next(it)
    if pre_ln or post_ln:
        g_ref = next(it)
        be_ref = next(it)
    if res != "none":
        r_ref = next(it)
    o_ref = next(it)

    x = x_ref[...]
    if pre_ln:
        x = x.astype(jnp.float32)
        mu = jnp.mean(x, axis=-1, keepdims=True)
        var = jnp.mean(jnp.square(x - mu), axis=-1, keepdims=True)
        x = (x - mu) * jax.lax.rsqrt(var + LN_EPS)
        x = x * g_ref[...] + be_ref[...]

    y = jnp.dot(x.astype(jnp.bfloat16), w_ref[...],
                preferred_element_type=jnp.float32)
    y = y + b_ref[...]

    if post_ln:
        mu = jnp.mean(y, axis=-1, keepdims=True)
        var = jnp.mean(jnp.square(y - mu), axis=-1, keepdims=True)
        y = (y - mu) * jax.lax.rsqrt(var + LN_EPS)
        y = y * g_ref[...] + be_ref[...]

    if res == "add_pre_act":
        y = y + r_ref[...].astype(jnp.float32)
    if act == "relu":
        y = jnp.maximum(y, 0.0)
    elif act == "gelu":
        y = _gelu(y)
    if res == "add_post_act":
        y = y + r_ref[...].astype(jnp.float32)

    o_ref[...] = y.astype(o_ref.dtype)


def fused_matmul(x, w_bf16, bias, *, gamma=None, beta=None, pre_ln=False,
                 post_ln=False, act="none", residual=None,
                 res_mode="add_pre_act", out_dtype=jnp.float32):
    """x:(M,K) @ w:(K,N) + bias:(N,), with fused LN / activation / residual."""
    M, K = x.shape
    N = w_bf16.shape[1]
    TM = min(256, _round_up(max(M, 8), 8))
    grid = (pl.cdiv(M, TM),)

    if not pre_ln:
        # bf16 at the pallas_call boundary (halves activation traffic, MXU bf16 issue).
        x = x.astype(jnp.bfloat16)

    args = [x, w_bf16.astype(jnp.bfloat16),
            bias.reshape(1, N).astype(jnp.float32)]
    in_specs = [
        pl.BlockSpec((TM, K), lambda i: (i, 0)),
        pl.BlockSpec((K, N), lambda i: (0, 0)),
        pl.BlockSpec((1, N), lambda i: (0, 0)),
    ]
    if pre_ln or post_ln:
        C = K if pre_ln else N
        args += [gamma.reshape(1, C).astype(jnp.float32),
                 beta.reshape(1, C).astype(jnp.float32)]
        in_specs += [pl.BlockSpec((1, C), lambda i: (0, 0)),
                     pl.BlockSpec((1, C), lambda i: (0, 0))]
    res = "none"
    if residual is not None:
        res = res_mode
        args.append(residual)
        in_specs.append(pl.BlockSpec((TM, N), lambda i: (i, 0)))

    kernel = functools.partial(_fused_mm_kernel, pre_ln=pre_ln,
                               post_ln=post_ln, act=act, res=res)
    # TODO(synk): add K-tiling (extra 'arbitrary' grid axis + f32 VMEM accumulator) for
    # production-size K so the weight block stays within v7x's 64 MiB VMEM.
    return pl.pallas_call(
        kernel,
        out_shape=jax.ShapeDtypeStruct((M, N), out_dtype),
        grid=grid,
        in_specs=in_specs,
        out_specs=pl.BlockSpec((TM, N), lambda i: (i, 0)),
        compiler_params=pltpu.CompilerParams(
            dimension_semantics=("parallel",),
            vmem_limit_bytes=VMEM_LIMIT),
    )(*args)


# ----------------------------------------------------------------------------
# Fused ConvBlock kernel (stride=1, res_conv=False):
#   relu(bn1(conv1 1x1)) [+ x_t] -> 3x3 conv (9 shifted taps gathered from a zero-padded
#   VMEM scratch, concatenated along lanes and contracted in ONE (HW,9*ch)@(9*ch,ch) MXU
#   dot) -> relu(bn2) -> bn3(conv3 1x1) -> + input residual -> relu.
# All intermediates (ch = c2//4) stay in VMEM; grid iterates over batch.
# ----------------------------------------------------------------------------
def _conv_block_kernel(x_ref, w1_ref, b1_ref, w2_ref, b2_ref, w3_ref, b3_ref,
                       *rest, W, pad_rows, has_xt, want_x2):
    it = iter(rest)
    xt_ref = next(it) if has_xt else None
    out_ref = next(it)
    x2_ref = next(it) if want_x2 else None
    pad_ref = next(it)

    HW = x_ref.shape[1]
    ch = w1_ref.shape[1]

    x = x_ref[0]                                            # (HW, Cin) f32
    # conv1 (1x1) + folded BN1 + ReLU  [+ x_t add for the fusion block]
    h1 = jnp.dot(x.astype(jnp.bfloat16), w1_ref[...],
                 preferred_element_type=jnp.float32) + b1_ref[...]
    h1 = jnp.maximum(h1, 0.0)
    if has_xt:
        h1 = h1 + xt_ref[0].astype(jnp.float32)

    # zero-padded flat buffer for the 3x3 taps (implicit im2col, VMEM only).
    # Only the halo rows need clearing; the interior is fully overwritten each step.
    pad_ref[0:pad_rows, :] = jnp.zeros((pad_rows, ch), jnp.float32)
    pad_ref[pad_rows + HW:2 * pad_rows + HW, :] = jnp.zeros((pad_rows, ch), jnp.float32)
    pad_ref[pad_rows:pad_rows + HW, :] = h1

    col = jax.lax.broadcasted_iota(jnp.int32, (HW, 1), 0) % W
    mask_l = (col >= 1).astype(jnp.float32)                 # valid for dw = -1
    mask_r = (col < W - 1).astype(jnp.float32)              # valid for dw = +1

    taps = []
    for t in range(9):
        dh = t // 3 - 1
        dw = t % 3 - 1
        start = pad_rows + dh * W + dw
        tap = pad_ref[start:start + HW, :]
        if dw == -1:
            tap = tap * mask_l
        elif dw == 1:
            tap = tap * mask_r
        taps.append(tap)
    # One MXU contraction over all 9 taps: (HW, 9*ch) @ (9*ch, ch).
    tap_cat = jnp.concatenate(taps, axis=-1).astype(jnp.bfloat16)
    x2 = jnp.maximum(jnp.dot(tap_cat, w2_ref[...],
                             preferred_element_type=jnp.float32) + b2_ref[...],
                     0.0)                                   # relu(bn2(conv2))
    if want_x2:
        x2_ref[0] = x2.astype(x2_ref.dtype)

    # conv3 (1x1) + folded BN3, residual add, ReLU
    h3 = jnp.dot(x2.astype(jnp.bfloat16), w3_ref[...],
                 preferred_element_type=jnp.float32) + b3_ref[...]
    out_ref[0] = jnp.maximum(h3 + x, 0.0).astype(out_ref.dtype)


def conv_block_fused(x_flat, prep, H, W, x_t_flat=None, want_x2=True):
    """x_flat:(B, H*W, Cin) NHWC-flattened. Returns (out, x2) or (out, None)."""
    B, HW, cin = x_flat.shape
    ch = prep["w1"].shape[1]
    cout = prep["w3"].shape[1]
    if cin != cout:
        # TODO(synk): res_conv=True / stride>1 ConvBlock variants not implemented in the
        # fused kernel (ConvTransBlock's default configuration does not use them).
        raise NotImplementedError("fused ConvBlock requires Cin == Cout (res_conv=False)")

    pad_rows = _round_up(W + 1, 8)
    args = [x_flat, prep["w1"], prep["b1"], prep["w2"], prep["b2"],
            prep["w3"], prep["b3"]]
    in_specs = [
        pl.BlockSpec((1, HW, cin), lambda b: (b, 0, 0)),
        pl.BlockSpec((cin, ch), lambda b: (0, 0)),
        pl.BlockSpec((1, ch), lambda b: (0, 0)),
        pl.BlockSpec((9 * ch, ch), lambda b: (0, 0)),
        pl.BlockSpec((1, ch), lambda b: (0, 0)),
        pl.BlockSpec((ch, cout), lambda b: (0, 0)),
        pl.BlockSpec((1, cout), lambda b: (0, 0)),
    ]
    has_xt = x_t_flat is not None
    if has_xt:
        args.append(x_t_flat)
        in_specs.append(pl.BlockSpec((1, HW, ch), lambda b: (b, 0, 0)))

    if want_x2:
        out_shape = (jax.ShapeDtypeStruct((B, HW, cout), jnp.float32),
                     jax.ShapeDtypeStruct((B, HW, ch), jnp.float32))
        out_specs = (pl.BlockSpec((1, HW, cout), lambda b: (b, 0, 0)),
                     pl.BlockSpec((1, HW, ch), lambda b: (b, 0, 0)))
    else:
        out_shape = jax.ShapeDtypeStruct((B, HW, cout), jnp.float32)
        out_specs = pl.BlockSpec((1, HW, cout), lambda b: (b, 0, 0))

    kernel = functools.partial(_conv_block_kernel, W=W, pad_rows=pad_rows,
                               has_xt=has_xt, want_x2=want_x2)
    # TODO(synk): tile spatially (not just over batch) for production feature-map sizes.
    result = pl.pallas_call(
        kernel,
        out_shape=out_shape,
        grid=(B,),
        in_specs=in_specs,
        out_specs=out_specs,
        scratch_shapes=[pltpu.VMEM((2 * pad_rows + HW, ch), jnp.float32)],
        compiler_params=pltpu.CompilerParams(
            dimension_semantics=("parallel",),
            vmem_limit_bytes=VMEM_LIMIT),
    )(*args)
    if want_x2:
        return result[0], result[1]
    return result, None


# ----------------------------------------------------------------------------
# Attention kernel: all heads of one batch element per grid step.
# ----------------------------------------------------------------------------
def _attn_kernel(q_ref, k_ref, v_ref, o_ref, *, scale):
    q = q_ref[0]                                            # (h, N, d) bf16
    k = k_ref[0]
    v = v_ref[0]
    s = jnp.einsum("hqd,hkd->hqk", q, k,
                   preferred_element_type=jnp.float32) * scale
    s = s - jnp.max(s, axis=-1, keepdims=True)
    p = jnp.exp(s)
    denom = jnp.sum(p, axis=-1, keepdims=True)
    p = p * pl.reciprocal(denom, approx=True)
    o = jnp.einsum("hqk,hkd->hqd", p.astype(jnp.bfloat16), v,
                   preferred_element_type=jnp.float32)
    o_ref[0] = o.astype(o_ref.dtype)


def attention_core(q, k, v, scale):
    """q,k,v: (B, head, N, d) -> (B, head, N, d) bf16."""
    B, h, N, d = q.shape
    return pl.pallas_call(
        functools.partial(_attn_kernel, scale=scale),
        out_shape=jax.ShapeDtypeStruct((B, h, N, d), jnp.bfloat16),
        grid=(B,),
        in_specs=[pl.BlockSpec((1, h, N, d), lambda b: (b, 0, 0, 0))] * 3,
        out_specs=pl.BlockSpec((1, h, N, d), lambda b: (b, 0, 0, 0)),
        compiler_params=pltpu.CompilerParams(
            dimension_semantics=("parallel",),
            vmem_limit_bytes=VMEM_LIMIT),
    )(q.astype(jnp.bfloat16), k.astype(jnp.bfloat16), v.astype(jnp.bfloat16))


# ----------------------------------------------------------------------------
# Host-side weight preparation (BN folding, scale folded into the weight, bf16).
# ----------------------------------------------------------------------------
def fold_bn(bn, conv_bias=None):
    gamma, beta, mean, var = bn
    scale = gamma * jax.lax.rsqrt(var + BN_EPS)
    cb = 0.0 if conv_bias is None else conv_bias
    bias = (cb - mean) * scale + beta
    return scale, bias


def prep_conv_block(p):
    ch, cin = p["conv1_w"].shape[:2]
    cout = p["conv3_w"].shape[0]
    s1, b1 = fold_bn(p["bn1"])
    s2, b2 = fold_bn(p["bn2"])
    s3, b3 = fold_bn(p["bn3"])
    w1 = (p["conv1_w"].reshape(ch, cin).T * s1[None, :]).astype(jnp.bfloat16)
    # (cout,cin,3,3) -> (kh,kw,cin,cout) -> (9,cin,cout) -> (9*cin, cout); tap order kh*3+kw
    w2 = (p["conv2_w"].transpose(2, 3, 1, 0).reshape(9, ch, ch)
          * s2[None, None, :]).reshape(9 * ch, ch).astype(jnp.bfloat16)
    w3 = (p["conv3_w"].reshape(cout, ch).T * s3[None, :]).astype(jnp.bfloat16)
    return dict(w1=w1, b1=b1.reshape(1, ch).astype(jnp.float32),
                w2=w2, b2=b2.reshape(1, ch).astype(jnp.float32),
                w3=w3, b3=b3.reshape(1, cout).astype(jnp.float32))


def prep_squeeze(p):
    E, ch = p["proj_w"].shape[:2]
    return dict(w=p["proj_w"].reshape(E, ch).T.astype(jnp.bfloat16),
                b=p["proj_b"], ln_g=p["ln_g"], ln_b=p["ln_b"])


def prep_expand(p):
    ch, E = p["proj_w"].shape[:2]
    s, b = fold_bn(p["bn"], conv_bias=p["proj_b"])
    return dict(w=(p["proj_w"].reshape(ch, E).T * s[None, :]).astype(jnp.bfloat16),
                b=b)


def prep_trans(p):
    return dict(qkv_w=p["qkv_w"].T.astype(jnp.bfloat16), qkv_b=p["qkv_b"],
                proj_w=p["proj_w"].T.astype(jnp.bfloat16), proj_b=p["proj_b"],
                fc1_w=p["fc1_w"].T.astype(jnp.bfloat16), fc1_b=p["fc1_b"],
                fc2_w=p["fc2_w"].T.astype(jnp.bfloat16), fc2_b=p["fc2_b"],
                ln1_g=p["ln1_g"], ln1_b=p["ln1_b"],
                ln2_g=p["ln2_g"], ln2_b=p["ln2_b"])


# ----------------------------------------------------------------------------
# Module forwards
# ----------------------------------------------------------------------------
def fcu_down(x2_flat, x_t, prep, B, H, W, dw_stride):
    assert H % dw_stride == 0 and W % dw_stride == 0
    ch = x2_flat.shape[-1]
    Hp, Wp = H // dw_stride, W // dw_stride
    # 1x1 conv is pointwise, so it commutes with the spatial average pool:
    # pool first on the small ch tensor, then fuse conv + LayerNorm + GELU in one kernel.
    pooled = x2_flat.reshape(B, Hp, dw_stride, Wp, dw_stride, ch).mean(axis=(2, 4))
    pooled = pooled.reshape(B * Hp * Wp, ch)
    y = fused_matmul(pooled, prep["w"], prep["b"],
                     gamma=prep["ln_g"], beta=prep["ln_b"],
                     post_ln=True, act="gelu")
    y = y.reshape(B, Hp * Wp, -1)
    return jnp.concatenate([x_t[:, :1, :], y], axis=1)


def fcu_up(x_t, prep, B, Hp, Wp, up_stride):
    E = x_t.shape[-1]
    ch = prep["w"].shape[1]
    y = x_t[:, 1:, :].reshape(B * Hp * Wp, E)
    y = fused_matmul(y, prep["w"], prep["b"], act="relu")    # conv1x1 + BN + ReLU
    y = y.reshape(B, Hp, Wp, ch)
    y = jnp.repeat(jnp.repeat(y, up_stride, axis=1), up_stride, axis=2)  # nearest
    return y.reshape(B, Hp * up_stride * Wp * up_stride, ch)


def trans_block_fwd(x, prep, head):
    B, N, C = x.shape
    d = C // head
    x2d = x.reshape(B * N, C)

    # LN1 fused into the qkv projection; bf16 output (attention consumes bf16 anyway).
    qkv = fused_matmul(x2d, prep["qkv_w"], prep["qkv_b"],
                       gamma=prep["ln1_g"], beta=prep["ln1_b"], pre_ln=True,
                       out_dtype=jnp.bfloat16)
    qkv = qkv.reshape(B, N, 3, head, d).transpose(2, 0, 3, 1, 4)   # (3,B,h,N,d)
    o = attention_core(qkv[0], qkv[1], qkv[2], float(d) ** (-0.5))
    o = o.transpose(0, 2, 1, 3).reshape(B * N, C)                  # bf16

    # proj + residual add fused.
    x2d = fused_matmul(o, prep["proj_w"], prep["proj_b"],
                       residual=x2d, res_mode="add_pre_act")
    # LN2 + fc1 + GELU fused (bf16 intermediate feeds fc2 directly).
    h1 = fused_matmul(x2d, prep["fc1_w"], prep["fc1_b"],
                      gamma=prep["ln2_g"], beta=prep["ln2_b"],
                      pre_ln=True, act="gelu", out_dtype=jnp.bfloat16)
    # fc2 + residual add fused.
    x2d = fused_matmul(h1, prep["fc2_w"], prep["fc2_b"],
                       residual=x2d, res_mode="add_pre_act")
    return x2d.reshape(B, N, C)


def conv_trans_block(x_nchw, x_t, params, *, dw_stride, head):
    B, c1, H, W = x_nchw.shape
    cnn_p = prep_conv_block(params["cnn"])
    fus_p = prep_conv_block(params["fusion"])
    sq_p = prep_squeeze(params["squeeze"])
    ex_p = prep_expand(params["expand"])
    tr_p = prep_trans(params["trans"])

    x_flat = jnp.transpose(x_nchw, (0, 2, 3, 1)).astype(jnp.float32).reshape(B, H * W, c1)

    x_flat, x2_flat = conv_block_fused(x_flat, cnn_p, H, W)              # cnn_block
    x_st = fcu_down(x2_flat, x_t, sq_p, B, H, W, dw_stride)             # squeeze_block
    x_t = trans_block_fwd(x_st + x_t, tr_p, head)                       # trans_block
    Hp, Wp = H // dw_stride, W // dw_stride
    x_t_r = fcu_up(x_t, ex_p, B, Hp, Wp, dw_stride)                     # expand_block
    x_out, _ = conv_block_fused(x_flat, fus_p, H, W, x_t_flat=x_t_r,    # fusion_block
                                want_x2=False)

    c2 = x_out.shape[-1]
    x_out = x_out.reshape(B, H, W, c2).transpose(0, 3, 1, 2)            # back to NCHW
    return x_out, x_t


# ----------------------------------------------------------------------------
# Deterministic synthetic parameters (inference-mode BN statistics)
# ----------------------------------------------------------------------------
def init_params(key, c1, c2, embed_dim, head):
    ch = c2 // 4
    keys = iter(jax.random.split(key, 80))

    def w(shape, s=0.05):
        return s * jax.random.normal(next(keys), shape, jnp.float32)

    def bn(c):
        gamma = 1.0 + 0.1 * jax.random.normal(next(keys), (c,), jnp.float32)
        beta = 0.1 * jax.random.normal(next(keys), (c,), jnp.float32)
        mean = 0.1 * jax.random.normal(next(keys), (c,), jnp.float32)
        var = 1.0 + 0.1 * jnp.abs(jax.random.normal(next(keys), (c,), jnp.float32))
        return (gamma, beta, mean, var)

    def convblock(cin, cout):
        chh = cout // 4
        return dict(conv1_w=w((chh, cin, 1, 1)), bn1=bn(chh),
                    conv2_w=w((chh, chh, 3, 3)), bn2=bn(chh),
                    conv3_w=w((cout, chh, 1, 1)), bn3=bn(cout))

    E = embed_dim
    params = dict(
        cnn=convblock(c1, c2),
        fusion=convblock(c2, c2),
        squeeze=dict(proj_w=w((E, ch, 1, 1)), proj_b=w((E,)),
                     ln_g=1.0 + 0.1 * jax.random.normal(next(keys), (E,), jnp.float32),
                     ln_b=0.1 * jax.random.normal(next(keys), (E,), jnp.float32)),
        expand=dict(proj_w=w((ch, E, 1, 1)), proj_b=w((ch,)), bn=bn(ch)),
        trans=dict(ln1_g=1.0 + 0.1 * jax.random.normal(next(keys), (E,), jnp.float32),
                   ln1_b=0.1 * jax.random.normal(next(keys), (E,), jnp.float32),
                   qkv_w=w((3 * E, E)), qkv_b=w((3 * E,)),
                   proj_w=w((E, E)), proj_b=w((E,)),
                   ln2_g=1.0 + 0.1 * jax.random.normal(next(keys), (E,), jnp.float32),
                   ln2_b=0.1 * jax.random.normal(next(keys), (E,), jnp.float32),
                   fc1_w=w((4 * E, E)), fc1_b=w((4 * E,)),
                   fc2_w=w((E, 4 * E)), fc2_b=w((E,))),
    )
    return params


# ----------------------------------------------------------------------------
if __name__ == "__main__":
    B, c1, c2, H, W = 2, 16, 16, 8, 8
    embed_dim, head, dw_stride = 32, 4, 2

    root = jax.random.PRNGKey(0)
    kp, kx, kt = jax.random.split(root, 3)
    params = init_params(kp, c1, c2, embed_dim, head)

    x = jax.random.normal(kx, (B, c1, H, W), jnp.float32)
    N = (H // dw_stride) * (W // dw_stride) + 1                  # +1 cls token
    x_t = jax.random.normal(kt, (B, N, embed_dim), jnp.float32)

    fwd = jax.jit(functools.partial(conv_trans_block, dw_stride=dw_stride, head=head))
    out_x, out_xt = fwd(x, x_t, params)
    jax.block_until_ready((out_x, out_xt))

    assert out_x.shape == (B, c2, H, W), out_x.shape
    assert out_xt.shape == (B, N, embed_dim), out_xt.shape
    assert jnp.all(jnp.isfinite(out_x)) and jnp.all(jnp.isfinite(out_xt))
    print("KERNEL_OK")
</pallas_src>

<mosaic_0001>
module attributes {stable_mosaic.version = 11 : i64} {
  func.func @_conv_block_kernel(%arg0: i32, %arg1: memref<1x64x16xf32, #tpu.memory_space<vmem>>, %arg2: memref<16x4xbf16, #tpu.memory_space<vmem>>, %arg3: memref<1x4xf32, #tpu.memory_space<vmem>>, %arg4: memref<36x4xbf16, #tpu.memory_space<vmem>>, %arg5: memref<1x4xf32, #tpu.memory_space<vmem>>, %arg6: memref<4x16xbf16, #tpu.memory_space<vmem>>, %arg7: memref<1x16xf32, #tpu.memory_space<vmem>>, %arg8: memref<1x64x16xf32, #tpu.memory_space<vmem>>, %arg9: memref<1x64x4xf32, #tpu.memory_space<vmem>>, %arg10: memref<96x4xf32, #tpu.memory_space<vmem>>) attributes {dimension_semantics = [#tpu.dimension_semantics<parallel>], iteration_bounds = array<i64: 2>, scalar_prefetch = 0 : i64, scratch_operands = 1 : i64, tpu.core_type = #tpu.core_type<tc>, window_params = [{transform_indices = @transform_0, window_bounds = array<i64: 1, 64, 16>}, {pipeline_mode = #tpu.pipeline_mode<synchronous>, transform_indices = @transform_1, window_bounds = array<i64: 16, 4>}, {pipeline_mode = #tpu.pipeline_mode<synchronous>, transform_indices = @transform_2, window_bounds = array<i64: 1, 4>}, {pipeline_mode = #tpu.pipeline_mode<synchronous>, transform_indices = @transform_3, window_bounds = array<i64: 36, 4>}, {pipeline_mode = #tpu.pipeline_mode<synchronous>, transform_indices = @transform_4, window_bounds = array<i64: 1, 4>}, {pipeline_mode = #tpu.pipeline_mode<synchronous>, transform_indices = @transform_5, window_bounds = array<i64: 4, 16>}, {pipeline_mode = #tpu.pipeline_mode<synchronous>, transform_indices = @transform_6, window_bounds = array<i64: 1, 16>}, {transform_indices = @transform_7, window_bounds = array<i64: 1, 64, 16>}, {transform_indices = @transform_8, window_bounds = array<i64: 1, 64, 4>}]} {
    %c0 = arith.constant 0 : index
    %c0_0 = arith.constant 0 : index
    %c0_1 = arith.constant 0 : index
    %0 = vector.load %arg1[%c0, %c0_0, %c0_1] : memref<1x64x16xf32, #tpu.memory_space<vmem>>, vector<1x64x16xf32>
    %1 = vector.shape_cast %0 : vector<1x64x16xf32> to vector<64x16xf32>
    %2 = arith.truncf %1 : vector<64x16xf32> to vector<64x16xbf16>
    %c0_2 = arith.constant 0 : index
    %c0_3 = arith.constant 0 : index
    %3 = vector.load %arg2[%c0_2, %c0_3] : memref<16x4xbf16, #tpu.memory_space<vmem>>, vector<16x4xbf16>
    %cst = arith.constant dense<0.000000e+00> : vector<64x4xf32>
    %4 = tpu.matmul %2, %3, %cst {dimension_numbers = #tpu.dot_dimension_numbers<[1], [0], [0], [1], [0, 0, 1, 1], [], []>} : vector<64x16xbf16>, vector<16x4xbf16>, vector<64x4xf32> -> vector<64x4xf32>
    %c0_4 = arith.constant 0 : index
    %c0_5 = arith.constant 0 : index
    %5 = vector.load %arg3[%c0_4, %c0_5] : memref<1x4xf32, #tpu.memory_space<vmem>>, vector<1x4xf32>
    %6 = vector.broadcast %5 : vector<1x4xf32> to vector<64x4xf32>
    %7 = arith.addf %4, %6 : vector<64x4xf32>
    %cst_6 = arith.constant 0.000000e+00 : f32
    %8 = vector.broadcast %cst_6 : f32 to vector<64x4xf32>
    %9 = arith.maximumf %7, %8 : vector<64x4xf32>
    %cst_7 = arith.constant 0.000000e+00 : f32
    %10 = vector.broadcast %cst_7 : f32 to vector<16x4xf32>
    %c0_8 = arith.constant 0 : index
    %c0_9 = arith.constant 0 : index
    %11 = vector.load %arg10[%c0_8, %c0_9] : memref<96x4xf32, #tpu.memory_space<vmem>>, vector<16x4xf32>
    tpu.vector_store %arg10[%c0_8, %c0_9], %10 {strides = array<i32>} : memref<96x4xf32, #tpu.memory_space<vmem>>, vector<16x4xf32>,
    %cst_10 = arith.constant 0.000000e+00 : f32
    %12 = vector.broadcast %cst_10 : f32 to vector<16x4xf32>
    %c80 = arith.constant 80 : index
    %c0_11 = arith.constant 0 : index
    %13 = vector.load %arg10[%c80, %c0_11] : memref<96x4xf32, #tpu.memory_space<vmem>>, vector<16x4xf32>
    tpu.vector_store %arg10[%c80, %c0_11], %12 {strides = array<i32>} : memref<96x4xf32, #tpu.memory_space<vmem>>, vector<16x4xf32>,
    %c16 = arith.constant 16 : index
    %c0_12 = arith.constant 0 : index
    %14 = vector.load %arg10[%c16, %c0_12] : memref<96x4xf32, #tpu.memory_space<vmem>>, vector<64x4xf32>
    tpu.vector_store %arg10[%c16, %c0_12], %9 {strides = array<i32>} : memref<96x4xf32, #tpu.memory_space<vmem>>, vector<64x4xf32>,
    %15 = tpu.iota {dimensions = array<i32: 0>} : vector<64x1xi32>
    %c8_i32 = arith.constant 8 : i32
    %c0_i32 = arith.constant 0 : i32
    %16 = arith.cmpi eq, %c8_i32, %c0_i32 : i32
    %c1_i32 = arith.constant 1 : i32
    %17 = arith.select %16, %c1_i32, %c8_i32 : i32
    %18 = vector.broadcast %17 : i32 to vector<64x1xi32>
    %19 = arith.remsi %15, %18 : vector<64x1xi32>
    %c0_i32_13 = arith.constant 0 : i32
    %20 = vector.broadcast %c0_i32_13 : i32 to vector<64x1xi32>
    %21 = arith.cmpi ne, %19, %20 : vector<64x1xi32>
    %c0_i32_14 = arith.constant 0 : i32
    %22 = vector.broadcast %c0_i32_14 : i32 to vector<64x1xi32>
    %23 = arith.cmpi slt, %19, %22 : vector<64x1xi32>
    %c0_i32_15 = arith.constant 0 : i32
    %24 = arith.cmpi slt, %17, %c0_i32_15 : i32
    %25 = vector.broadcast %24 : i1 to vector<64x1xi1>
    %26 = vector.broadcast %25 : vector<64x1xi1> to vector<64x1xi1>
    %27 = arith.xori %23, %26 : vector<64x1xi1>
    %28 = arith.andi %27, %21 : vector<64x1xi1>
    %29 = vector.broadcast %17 : i32 to vector<64x1xi32>
    %30 = arith.addi %19, %29 : vector<64x1xi32>
    %31 = arith.select %28, %30, %19 : vector<64x1xi1>, vector<64x1xi32>
    %c1_i32_16 = arith.constant 1 : i32
    %32 = vector.broadcast %c1_i32_16 : i32 to vector<64x1xi32>
    %33 = arith.cmpi sge, %31, %32 : vector<64x1xi32>
    %34 = arith.extui %33 : vector<64x1xi1> to vector<64x1xi32>
    %35 = arith.sitofp %34 : vector<64x1xi32> to vector<64x1xf32>
    %c7_i32 = arith.constant 7 : i32
    %36 = vector.broadcast %c7_i32 : i32 to vector<64x1xi32>
    %37 = arith.cmpi slt, %31, %36 : vector<64x1xi32>
    %38 = arith.extui %37 : vector<64x1xi1> to vector<64x1xi32>
    %39 = arith.sitofp %38 : vector<64x1xi32> to vector<64x1xf32>
    %c7 = arith.constant 7 : index
    %c0_17 = arith.constant 0 : index
    %40 = vector.load %arg10[%c7, %c0_17] : memref<96x4xf32, #tpu.memory_space<vmem>>, vector<64x4xf32>
    %41 = vector.broadcast %35 : vector<64x1xf32> to vector<64x4xf32>
    %42 = arith.mulf %40, %41 : vector<64x4xf32>
    %c8 = arith.constant 8 : index
    %c0_18 = arith.constant 0 : index
    %43 = vector.load %arg10[%c8, %c0_18] : memref<96x4xf32, #tpu.memory_space<vmem>>, vector<64x4xf32>
    %c9 = arith.constant 9 : index
    %c0_19 = arith.constant 0 : index
    %44 = vector.load %arg10[%c9, %c0_19] : memref<96x4xf32, #tpu.memory_space<vmem>>, vector<64x4xf32>
    %45 = vector.broadcast %39 : vector<64x1xf32> to vector<64x4xf32>
    %46 = arith.mulf %44, %45 : vector<64x4xf32>
    %c15 = arith.constant 15 : index
    %c0_20 = arith.constant 0 : index
    %47 = vector.load %arg10[%c15, %c0_20] : memref<96x4xf32, #tpu.memory_space<vmem>>, vector<64x4xf32>
    %48 = vector.broadcast %35 : vector<64x1xf32> to vector<64x4xf32>
    %49 = arith.mulf %47, %48 : vector<64x4xf32>
    %c16_21 = arith.constant 16 : index
    %c0_22 = arith.constant 0 : index
    %50 = vector.load %arg10[%c16_21, %c0_22] : memref<96x4xf32, #tpu.memory_space<vmem>>, vector<64x4xf32>
    %c17 = arith.constant 17 : index
    %c0_23 = arith.constant 0 : index
    %51 = vector.load %arg10[%c17, %c0_23] : memref<96x4xf32, #tpu.memory_space<vmem>>, vector<64x4xf32>
    %52 = vector.broadcast %39 : vector<64x1xf32> to vector<64x4xf32>
    %53 = arith.mulf %51, %52 : vector<64x4xf32>
    %c23 = arith.constant 23 : index
    %c0_24 = arith.constant 0 : index
    %54 = vector.load %arg10[%c23, %c0_24] : memref<96x4xf32, #tpu.memory_space<vmem>>, vector<64x4xf32>
    %55 = vector.broadcast %35 : vector<64x1xf32> to vector<64x4xf32>
    %56 = arith.mulf %54, %55 : vector<64x4xf32>
    %c24 = arith.constant 24 : index
    %c0_25 = arith.constant 0 : index
    %57 = vector.load %arg10[%c24, %c0_25] : memref<96x4xf32, #tpu.memory_space<vmem>>, vector<64x4xf32>
    %c25 = arith.constant 25 : index
    %c0_26 = arith.constant 0 : index
    %58 = vector.load %arg10[%c25, %c0_26] : memref<96x4xf32, #tpu.memory_space<vmem>>, vector<64x4xf32>
    %59 = vector.broadcast %39 : vector<64x1xf32> to vector<64x4xf32>
    %60 = arith.mulf %58, %59 : vector<64x4xf32>
    %61 = tpu.concatenate %42, %43, %46, %49, %50, %53, %56, %57, %60 in 1 : vector<64x4xf32>, vector<64x4xf32>, vector<64x4xf32>, vector<64x4xf32>, vector<64x4xf32>, vector<64x4xf32>, vector<64x4xf32>, vector<64x4xf32>, vector<64x4xf32> -> vector<64x36xf32>
    %62 = arith.truncf %61 : vector<64x36xf32> to vector<64x36xbf16>
    %c0_27 = arith.constant 0 : index
    %c0_28 = arith.constant 0 : index
    %63 = vector.load %arg4[%c0_27, %c0_28] : memref<36x4xbf16, #tpu.memory_space<vmem>>, vector<36x4xbf16>
    %cst_29 = arith.constant dense<0.000000e+00> : vector<64x4xf32>
    %64 = tpu.matmul %62, %63, %cst_29 {dimension_numbers = #tpu.dot_dimension_numbers<[1], [0], [0], [1], [0, 0, 1, 1], [], []>} : vector<64x36xbf16>, vector<36x4xbf16>, vector<64x4xf32> -> vector<64x4xf32>
    %c0_30 = arith.constant 0 : index
    %c0_31 = arith.constant 0 : index
    %65 = vector.load %arg5[%c0_30, %c0_31] : memref<1x4xf32, #tpu.memory_space<vmem>>, vector<1x4xf32>
    %66 = vector.broadcast %65 : vector<1x4xf32> to vector<64x4xf32>
    %67 = arith.addf %64, %66 : vector<64x4xf32>
    %cst_32 = arith.constant 0.000000e+00 : f32
    %68 = vector.broadcast %cst_32 : f32 to vector<64x4xf32>
    %69 = arith.maximumf %67, %68 : vector<64x4xf32>
    %c0_33 = arith.constant 0 : index
    %c0_34 = arith.constant 0 : index
    %c0_35 = arith.constant 0 : index
    %70 = vector.load %arg9[%c0_33, %c0_34, %c0_35] : memref<1x64x4xf32, #tpu.memory_space<vmem>>, vector<1x64x4xf32>
    %71 = vector.shape_cast %70 : vector<1x64x4xf32> to vector<64x4xf32>
    %72 = vector.shape_cast %69 : vector<64x4xf32> to vector<1x64x4xf32>
    tpu.vector_store %arg9[%c0_33, %c0_34, %c0_35], %72 {strides = array<i32>} : memref<1x64x4xf32, #tpu.memory_space<vmem>>, vector<1x64x4xf32>,
    %73 = arith.truncf %69 : vector<64x4xf32> to vector<64x4xbf16>
    %c0_36 = arith.constant 0 : index
    %c0_37 = arith.constant 0 : index
    %74 = vector.load %arg6[%c0_36, %c0_37] : memref<4x16xbf16, #tpu.memory_space<vmem>>, vector<4x16xbf16>
    %cst_38 = arith.constant dense<0.000000e+00> : vector<64x16xf32>
    %75 = tpu.matmul %73, %74, %cst_38 {dimension_numbers = #tpu.dot_dimension_numbers<[1], [0], [0], [1], [0, 0, 1, 1], [], []>} : vector<64x4xbf16>, vector<4x16xbf16>, vector<64x16xf32> -> vector<64x16xf32>
    %c0_39 = arith.constant 0 : index
    %c0_40 = arith.constant 0 : index
    %76 = vector.load %arg7[%c0_39, %c0_40] : memref<1x16xf32, #tpu.memory_space<vmem>>, vector<1x16xf32>
    %77 = vector.broadcast %76 : vector<1x16xf32> to vector<64x16xf32>
    %78 = arith.addf %75, %77 : vector<64x16xf32>
    %79 = arith.addf %78, %1 : vector<64x16xf32>
    %cst_41 = arith.constant 0.000000e+00 : f32
    %80 = vector.broadcast %cst_41 : f32 to vector<64x16xf32>
    %81 = arith.maximumf %79, %80 : vector<64x16xf32>
    %c0_42 = arith.constant 0 : index
    %c0_43 = arith.constant 0 : index
    %c0_44 = arith.constant 0 : index
    %82 = vector.load %arg8[%c0_42, %c0_43, %c0_44] : memref<1x64x16xf32, #tpu.memory_space<vmem>>, vector<1x64x16xf32>
    %83 = vector.shape_cast %82 : vector<1x64x16xf32> to vector<64x16xf32>
    %84 = vector.shape_cast %81 : vector<64x16xf32> to vector<1x64x16xf32>
    tpu.vector_store %arg8[%c0_42, %c0_43, %c0_44], %84 {strides = array<i32>} : memref<1x64x16xf32, #tpu.memory_space<vmem>>, vector<1x64x16xf32>,
    return
  }
  func.func @transform_0(%arg0: i32) -> (i32, i32, i32) {
    %c0_i32 = arith.constant 0 : i32
    %c0_i32_0 = arith.constant 0 : i32
    %c0_i32_1 = arith.constant 0 : i32
    return %arg0, %c0_i32, %c0_i32_0 : i32, i32, i32
  }
  func.func @transform_1(%arg0: i32) -> (i32, i32) {
    %c0_i32 = arith.constant 0 : i32
    %c0_i32_0 = arith.constant 0 : i32
    %c0_i32_1 = arith.constant 0 : i32
    return %c0_i32, %c0_i32_0 : i32, i32
  }
  func.func @transform_2(%arg0: i32) -> (i32, i32) {
    %c0_i32 = arith.constant 0 : i32
    %c0_i32_0 = arith.constant 0 : i32
    %c0_i32_1 = arith.constant 0 : i32
    return %c0_i32, %c0_i32_0 : i32, i32
  }
  func.func @transform_3(%arg0: i32) -> (i32, i32) {
    %c0_i32 = arith.constant 0 : i32
    %c0_i32_0 = arith.constant 0 : i32
    %c0_i32_1 = arith.constant 0 : i32
    return %c0_i32, %c0_i32_0 : i32, i32
  }
  func.func @transform_4(%arg0: i32) -> (i32, i32) {
    %c0_i32 = arith.constant 0 : i32
    %c0_i32_0 = arith.constant 0 : i32
    %c0_i32_1 = arith.constant 0 : i32
    return %c0_i32, %c0_i32_0 : i32, i32
  }
  func.func @transform_5(%arg0: i32) -> (i32, i32) {
    %c0_i32 = arith.constant 0 : i32
    %c0_i32_0 = arith.constant 0 : i32
    %c0_i32_1 = arith.constant 0 : i32
    return %c0_i32, %c0_i32_0 : i32, i32
  }
  func.func @transform_6(%arg0: i32) -> (i32, i32) {
    %c0_i32 = arith.constant 0 : i32
    %c0_i32_0 = arith.constant 0 : i32
    %c0_i32_1 = arith.constant 0 : i32
    return %c0_i32, %c0_i32_0 : i32, i32
  }
  func.func @transform_7(%arg0: i32) -> (i32, i32, i32) {
    %c0_i32 = arith.constant 0 : i32
    %c0_i32_0 = arith.constant 0 : i32
    %c0_i32_1 = arith.constant 0 : i32
    return %arg0, %c0_i32, %c0_i32_0 : i32, i32, i32
  }
  func.func @transform_8(%arg0: i32) -> (i32, i32, i32) {
    %c0_i32 = arith.constant 0 : i32
    %c0_i32_0 = arith.constant 0 : i32
    %c0_i32_1 = arith.constant 0 : i32
    return %arg0, %c0_i32, %c0_i32_0 : i32, i32, i32
  }
}

module attributes {stable_mosaic.version = 11 : i64} {
  func.func @_fused_mm_kernel(%arg0: i32, %arg1: memref<32x4xbf16, #tpu.memory_space<vmem>>, %arg2: memref<4x32xbf16, #tpu.memory_space<vmem>>, %arg3: memref<1x32xf32, #tpu.memory_space<vmem>>, %arg4: memref<1x32xf32, #tpu.memory_space<vmem>>, %arg5: memref<1x32xf32, #tpu.memory_space<vmem>>, %arg6: memref<32x32xf32, #tpu.memory_space<vmem>>) attributes {dimension_semantics = [#tpu.dimension_semantics<parallel>], iteration_bounds = array<i64: 1>, scalar_prefetch = 0 : i64, scratch_operands = 0 : i64, tpu.core_type = #tpu.core_type<tc>, window_params = [{transform_indices = @transform_0, window_bounds = array<i64: 32, 4>}, {pipeline_mode = #tpu.pipeline_mode<synchronous>, transform_indices = @transform_1, window_bounds = array<i64: 4, 32>}, {pipeline_mode = #tpu.pipeline_mode<synchronous>, transform_indices = @transform_2, window_bounds = array<i64: 1, 32>}, {pipeline_mode = #tpu.pipeline_mode<synchronous>, transform_indices = @transform_3, window_bounds = array<i64: 1, 32>}, {pipeline_mode = #tpu.pipeline_mode<synchronous>, transform_indices = @transform_4, window_bounds = array<i64: 1, 32>}, {transform_indices = @transform_5, window_bounds = array<i64: 32, 32>}]} {
    %c0 = arith.constant 0 : index
    %c0_0 = arith.constant 0 : index
    %0 = vector.load %arg1[%c0, %c0_0] : memref<32x4xbf16, #tpu.memory_space<vmem>>, vector<32x4xbf16>
    %c0_1 = arith.constant 0 : index
    %c0_2 = arith.constant 0 : index
    %1 = vector.load %arg2[%c0_1, %c0_2] : memref<4x32xbf16, #tpu.memory_space<vmem>>, vector<4x32xbf16>
    %cst = arith.constant dense<0.000000e+00> : vector<32x32xf32>
    %2 = tpu.matmul %0, %1, %cst {dimension_numbers = #tpu.dot_dimension_numbers<[1], [0], [0], [1], [0, 0, 1, 1], [], []>} : vector<32x4xbf16>, vector<4x32xbf16>, vector<32x32xf32> -> vector<32x32xf32>
    %c0_3 = arith.constant 0 : index
    %c0_4 = arith.constant 0 : index
    %3 = vector.load %arg3[%c0_3, %c0_4] : memref<1x32xf32, #tpu.memory_space<vmem>>, vector<1x32xf32>
    %4 = vector.broadcast %3 : vector<1x32xf32> to vector<32x32xf32>
    %5 = arith.addf %2, %4 : vector<32x32xf32>
    %cst_5 = arith.constant dense<0.000000e+00> : vector<32xf32>
    %6 = vector.multi_reduction <add>, %5, %cst_5 [1] : vector<32x32xf32> to vector<32xf32>
    %7 = vector.shape_cast %6 : vector<32xf32> to vector<32x1xf32>
    %cst_6 = arith.constant 3.200000e+01 : f32
    %8 = vector.broadcast %cst_6 : f32 to vector<32x1xf32>
    %9 = arith.divf %7, %8 : vector<32x1xf32>
    %10 = vector.broadcast %9 : vector<32x1xf32> to vector<32x32xf32>
    %11 = arith.subf %5, %10 : vector<32x32xf32>
    %12 = arith.mulf %11, %11 : vector<32x32xf32>
    %cst_7 = arith.constant dense<0.000000e+00> : vector<32xf32>
    %13 = vector.multi_reduction <add>, %12, %cst_7 [1] : vector<32x32xf32> to vector<32xf32>
    %14 = vector.shape_cast %13 : vector<32xf32> to vector<32x1xf32>
    %cst_8 = arith.constant 3.200000e+01 : f32
    %15 = vector.broadcast %cst_8 : f32 to vector<32x1xf32>
    %16 = arith.divf %14, %15 : vector<32x1xf32>
    %17 = vector.broadcast %9 : vector<32x1xf32> to vector<32x32xf32>
    %18 = arith.subf %5, %17 : vector<32x32xf32>
    %cst_9 = arith.constant 9.99999974E-6 : f32
    %19 = vector.broadcast %cst_9 : f32 to vector<32x1xf32>
    %20 = arith.addf %16, %19 : vector<32x1xf32>
    %21 = math.rsqrt %20 : vector<32x1xf32>
    %22 = vector.broadcast %21 : vector<32x1xf32> to vector<32x32xf32>
    %23 = arith.mulf %18, %22 : vector<32x32xf32>
    %c0_10 = arith.constant 0 : index
    %c0_11 = arith.constant 0 : index
    %24 = vector.load %arg4[%c0_10, %c0_11] : memref<1x32xf32, #tpu.memory_space<vmem>>, vector<1x32xf32>
    %25 = vector.broadcast %24 : vector<1x32xf32> to vector<32x32xf32>
    %26 = arith.mulf %23, %25 : vector<32x32xf32>
    %c0_12 = arith.constant 0 : index
    %c0_13 = arith.constant 0 : index
    %27 = vector.load %arg5[%c0_12, %c0_13] : memref<1x32xf32, #tpu.memory_space<vmem>>, vector<1x32xf32>
    %28 = vector.broadcast %27 : vector<1x32xf32> to vector<32x32xf32>
    %29 = arith.addf %26, %28 : vector<32x32xf32>
    %cst_14 = arith.constant 5.000000e-01 : f32
    %30 = vector.broadcast %cst_14 : f32 to vector<32x32xf32>
    %31 = arith.mulf %30, %29 : vector<32x32xf32>
    %cst_15 = arith.constant 0.707106769 : f32
    %32 = vector.broadcast %cst_15 : f32 to vector<32x32xf32>
    %33 = arith.mulf %29, %32 : vector<32x32xf32>
    %34 = math.absf %33 : vector<32x32xf32>
    %cst_16 = arith.constant 0.327591091 : f32
    %35 = vector.broadcast %cst_16 : f32 to vector<32x32xf32>
    %36 = arith.mulf %35, %34 : vector<32x32xf32>
    %cst_17 = arith.constant 1.000000e+00 : f32
    %37 = vector.broadcast %cst_17 : f32 to vector<32x32xf32>
    %38 = arith.addf %37, %36 : vector<32x32xf32>
    %cst_18 = arith.constant 1.000000e+00 : f32
    %39 = vector.broadcast %cst_18 : f32 to vector<32x32xf32>
    %40 = arith.divf %39, %38 : vector<32x32xf32>
    %cst_19 = arith.constant 1.06140542 : f32
    %41 = vector.broadcast %cst_19 : f32 to vector<32x32xf32>
    %42 = arith.mulf %40, %41 : vector<32x32xf32>
    %cst_20 = arith.constant -1.45315206 : f32
    %43 = vector.broadcast %cst_20 : f32 to vector<32x32xf32>
    %44 = arith.addf %43, %42 : vector<32x32xf32>
    %45 = arith.mulf %40, %44 : vector<32x32xf32>
    %cst_21 = arith.constant 1.42141378 : f32
    %46 = vector.broadcast %cst_21 : f32 to vector<32x32xf32>
    %47 = arith.addf %46, %45 : vector<32x32xf32>
    %48 = arith.mulf %40, %47 : vector<32x32xf32>
    %cst_22 = arith.constant -0.284496725 : f32
    %49 = vector.broadcast %cst_22 : f32 to vector<32x32xf32>
    %50 = arith.addf %49, %48 : vector<32x32xf32>
    %51 = arith.mulf %40, %50 : vector<32x32xf32>
    %cst_23 = arith.constant 0.254829586 : f32
    %52 = vector.broadcast %cst_23 : f32 to vector<32x32xf32>
    %53 = arith.addf %52, %51 : vector<32x32xf32>
    %54 = arith.mulf %40, %53 : vector<32x32xf32>
    %cst_24 = arith.constant 0.000000e+00 : f32
    %55 = vector.broadcast %cst_24 : f32 to vector<32x32xf32>
    %56 = arith.subf %55, %34 : vector<32x32xf32>
    %57 = arith.mulf %56, %34 : vector<32x32xf32>
    %58 = math.exp %57 : vector<32x32xf32>
    %59 = arith.mulf %54, %58 : vector<32x32xf32>
    %cst_25 = arith.constant 1.000000e+00 : f32
    %60 = vector.broadcast %cst_25 : f32 to vector<32x32xf32>
    %61 = arith.subf %60, %59 : vector<32x32xf32>
    %cst_26 = arith.constant 0.000000e+00 : f32
    %62 = vector.broadcast %cst_26 : f32 to vector<32x32xf32>
    %63 = arith.cmpf olt, %33, %62 : vector<32x32xf32>
    %cst_27 = arith.constant 0.000000e+00 : f32
    %64 = vector.broadcast %cst_27 : f32 to vector<32x32xf32>
    %65 = arith.subf %64, %61 : vector<32x32xf32>
    %66 = arith.select %63, %65, %61 : vector<32x32xi1>, vector<32x32xf32>
    %cst_28 = arith.constant 1.000000e+00 : f32
    %67 = vector.broadcast %cst_28 : f32 to vector<32x32xf32>
    %68 = arith.addf %67, %66 : vector<32x32xf32>
    %69 = arith.mulf %31, %68 : vector<32x32xf32>
    %c0_29 = arith.constant 0 : index
    %c0_30 = arith.constant 0 : index
    %70 = vector.load %arg6[%c0_29, %c0_30] : memref<32x32xf32, #tpu.memory_space<vmem>>, vector<32x32xf32>
    tpu.vector_store %arg6[%c0_29, %c0_30], %69 {strides = array<i32>} : memref<32x32xf32, #tpu.memory_space<vmem>>, vector<32x32xf32>,
    return
  }
  func.func @transform_0(%arg0: i32) -> (i32, i32) {
    %c0_i32 = arith.constant 0 : i32
    %c0_i32_0 = arith.constant 0 : i32
    return %arg0, %c0_i32 : i32, i32
  }
  func.func @transform_1(%arg0: i32) -> (i32, i32) {
    %c0_i32 = arith.constant 0 : i32
    %c0_i32_0 = arith.constant 0 : i32
    %c0_i32_1 = arith.constant 0 : i32
    return %c0_i32, %c0_i32_0 : i32, i32
  }
  func.func @transform_2(%arg0: i32) -> (i32, i32) {
    %c0_i32 = arith.constant 0 : i32
    %c0_i32_0 = arith.constant 0 : i32
    %c0_i32_1 = arith.constant 0 : i32
    return %c0_i32, %c0_i32_0 : i32, i32
  }
  func.func @transform_3(%arg0: i32) -> (i32, i32) {
    %c0_i32 = arith.constant 0 : i32
    %c0_i32_0 = arith.constant 0 : i32
    %c0_i32_1 = arith.constant 0 : i32
    return %c0_i32, %c0_i32_0 : i32, i32
  }
  func.func @transform_4(%arg0: i32) -> (i32, i32) {
    %c0_i32 = arith.constant 0 : i32
    %c0_i32_0 = arith.constant 0 : i32
    %c0_i32_1 = arith.constant 0 : i32
    return %c0_i32, %c0_i32_0 : i32, i32
  }
  func.func @transform_5(%arg0: i32) -> (i32, i32) {
    %c0_i32 = arith.constant 0 : i32
    %c0_i32_0 = arith.constant 0 : i32
    return %arg0, %c0_i32 : i32, i32
  }
}

module attributes {stable_mosaic.version = 11 : i64} {
  func.func @_fused_mm_kernel(%arg0: i32, %arg1: memref<40x32xf32, #tpu.memory_space<vmem>>, %arg2: memref<32x96xbf16, #tpu.memory_space<vmem>>, %arg3: memref<1x96xf32, #tpu.memory_space<vmem>>, %arg4: memref<1x32xf32, #tpu.memory_space<vmem>>, %arg5: memref<1x32xf32, #tpu.memory_space<vmem>>, %arg6: memref<40x96xbf16, #tpu.memory_space<vmem>>) attributes {dimension_semantics = [#tpu.dimension_semantics<parallel>], iteration_bounds = array<i64: 1>, scalar_prefetch = 0 : i64, scratch_operands = 0 : i64, tpu.core_type = #tpu.core_type<tc>, window_params = [{transform_indices = @transform_0, window_bounds = array<i64: 40, 32>}, {pipeline_mode = #tpu.pipeline_mode<synchronous>, transform_indices = @transform_1, window_bounds = array<i64: 32, 96>}, {pipeline_mode = #tpu.pipeline_mode<synchronous>, transform_indices = @transform_2, window_bounds = array<i64: 1, 96>}, {pipeline_mode = #tpu.pipeline_mode<synchronous>, transform_indices = @transform_3, window_bounds = array<i64: 1, 32>}, {pipeline_mode = #tpu.pipeline_mode<synchronous>, transform_indices = @transform_4, window_bounds = array<i64: 1, 32>}, {transform_indices = @transform_5, window_bounds = array<i64: 40, 96>}]} {
    %c0 = arith.constant 0 : index
    %c0_0 = arith.constant 0 : index
    %0 = vector.load %arg1[%c0, %c0_0] : memref<40x32xf32, #tpu.memory_space<vmem>>, vector<40x32xf32>
    %cst = arith.constant dense<0.000000e+00> : vector<40xf32>
    %1 = vector.multi_reduction <add>, %0, %cst [1] : vector<40x32xf32> to vector<40xf32>
    %2 = vector.shape_cast %1 : vector<40xf32> to vector<40x1xf32>
    %cst_1 = arith.constant 3.200000e+01 : f32
    %3 = vector.broadcast %cst_1 : f32 to vector<40x1xf32>
    %4 = arith.divf %2, %3 : vector<40x1xf32>
    %5 = vector.broadcast %4 : vector<40x1xf32> to vector<40x32xf32>
    %6 = arith.subf %0, %5 : vector<40x32xf32>
    %7 = arith.mulf %6, %6 : vector<40x32xf32>
    %cst_2 = arith.constant dense<0.000000e+00> : vector<40xf32>
    %8 = vector.multi_reduction <add>, %7, %cst_2 [1] : vector<40x32xf32> to vector<40xf32>
    %9 = vector.shape_cast %8 : vector<40xf32> to vector<40x1xf32>
    %cst_3 = arith.constant 3.200000e+01 : f32
    %10 = vector.broadcast %cst_3 : f32 to vector<40x1xf32>
    %11 = arith.divf %9, %10 : vector<40x1xf32>
    %12 = vector.broadcast %4 : vector<40x1xf32> to vector<40x32xf32>
    %13 = arith.subf %0, %12 : vector<40x32xf32>
    %cst_4 = arith.constant 9.99999974E-6 : f32
    %14 = vector.broadcast %cst_4 : f32 to vector<40x1xf32>
    %15 = arith.addf %11, %14 : vector<40x1xf32>
    %16 = math.rsqrt %15 : vector<40x1xf32>
    %17 = vector.broadcast %16 : vector<40x1xf32> to vector<40x32xf32>
    %18 = arith.mulf %13, %17 : vector<40x32xf32>
    %c0_5 = arith.constant 0 : index
    %c0_6 = arith.constant 0 : index
    %19 = vector.load %arg4[%c0_5, %c0_6] : memref<1x32xf32, #tpu.memory_space<vmem>>, vector<1x32xf32>
    %20 = vector.broadcast %19 : vector<1x32xf32> to vector<40x32xf32>
    %21 = arith.mulf %18, %20 : vector<40x32xf32>
    %c0_7 = arith.constant 0 : index
    %c0_8 = arith.constant 0 : index
    %22 = vector.load %arg5[%c0_7, %c0_8] : memref<1x32xf32, #tpu.memory_space<vmem>>, vector<1x32xf32>
    %23 = vector.broadcast %22 : vector<1x32xf32> to vector<40x32xf32>
    %24 = arith.addf %21, %23 : vector<40x32xf32>
    %25 = arith.truncf %24 : vector<40x32xf32> to vector<40x32xbf16>
    %c0_9 = arith.constant 0 : index
    %c0_10 = arith.constant 0 : index
    %26 = vector.load %arg2[%c0_9, %c0_10] : memref<32x96xbf16, #tpu.memory_space<vmem>>, vector<32x96xbf16>
    %cst_11 = arith.constant dense<0.000000e+00> : vector<40x96xf32>
    %27 = tpu.matmul %25, %26, %cst_11 {dimension_numbers = #tpu.dot_dimension_numbers<[1], [0], [0], [1], [0, 0, 1, 1], [], []>} : vector<40x32xbf16>, vector<32x96xbf16>, vector<40x96xf32> -> vector<40x96xf32>
    %c0_12 = arith.constant 0 : index
    %c0_13 = arith.constant 0 : index
    %28 = vector.load %arg3[%c0_12, %c0_13] : memref<1x96xf32, #tpu.memory_space<vmem>>, vector<1x96xf32>
    %29 = vector.broadcast %28 : vector<1x96xf32> to vector<40x96xf32>
    %30 = arith.addf %27, %29 : vector<40x96xf32>
    %31 = arith.truncf %30 : vector<40x96xf32> to vector<40x96xbf16>
    %c0_14 = arith.constant 0 : index
    %c0_15 = arith.constant 0 : index
    %32 = vector.load %arg6[%c0_14, %c0_15] : memref<40x96xbf16, #tpu.memory_space<vmem>>, vector<40x96xbf16>
    tpu.vector_store %arg6[%c0_14, %c0_15], %31 {strides = array<i32>} : memref<40x96xbf16, #tpu.memory_space<vmem>>, vector<40x96xbf16>,
    return
  }
  func.func @transform_0(%arg0: i32) -> (i32, i32) {
    %c0_i32 = arith.constant 0 : i32
    %c0_i32_0 = arith.constant 0 : i32
    return %arg0, %c0_i32 : i32, i32
  }
  func.func @transform_1(%arg0: i32) -> (i32, i32) {
    %c0_i32 = arith.constant 0 : i32
    %c0_i32_0 = arith.constant 0 : i32
    %c0_i32_1 = arith.constant 0 : i32
    return %c0_i32, %c0_i32_0 : i32, i32
  }
  func.func @transform_2(%arg0: i32) -> (i32, i32) {
    %c0_i32 = arith.constant 0 : i32
    %c0_i32_0 = arith.constant 0 : i32
    %c0_i32_1 = arith.constant 0 : i32
    return %c0_i32, %c0_i32_0 : i32, i32
  }
  func.func @transform_3(%arg0: i32) -> (i32, i32) {
    %c0_i32 = arith.constant 0 : i32
    %c0_i32_0 = arith.constant 0 : i32
    %c0_i32_1 = arith.constant 0 : i32
    return %c0_i32, %c0_i32_0 : i32, i32
  }
  func.func @transform_4(%arg0: i32) -> (i32, i32) {
    %c0_i32 = arith.constant 0 : i32
    %c0_i32_0 = arith.constant 0 : i32
    %c0_i32_1 = arith.constant 0 : i32
    return %c0_i32, %c0_i32_0 : i32, i32
  }
  func.func @transform_5(%arg0: i32) -> (i32, i32) {
    %c0_i32 = arith.constant 0 : i32
    %c0_i32_0 = arith.constant 0 : i32
    return %arg0, %c0_i32 : i32, i32
  }
}

module attributes {stable_mosaic.version = 11 : i64} {
  func.func @_attn_kernel(%arg0: i32, %arg1: memref<1x4x17x8xbf16, #tpu.memory_space<vmem>>, %arg2: memref<1x4x17x8xbf16, #tpu.memory_space<vmem>>, %arg3: memref<1x4x17x8xbf16, #tpu.memory_space<vmem>>, %arg4: memref<1x4x17x8xbf16, #tpu.memory_space<vmem>>) attributes {dimension_semantics = [#tpu.dimension_semantics<parallel>], iteration_bounds = array<i64: 2>, scalar_prefetch = 0 : i64, scratch_operands = 0 : i64, tpu.core_type = #tpu.core_type<tc>, window_params = [{transform_indices = @transform_0, window_bounds = array<i64: 1, 4, 17, 8>}, {transform_indices = @transform_1, window_bounds = array<i64: 1, 4, 17, 8>}, {transform_indices = @transform_2, window_bounds = array<i64: 1, 4, 17, 8>}, {transform_indices = @transform_3, window_bounds = array<i64: 1, 4, 17, 8>}]} {
    %c0 = arith.constant 0 : index
    %c0_0 = arith.constant 0 : index
    %c0_1 = arith.constant 0 : index
    %c0_2 = arith.constant 0 : index
    %0 = vector.load %arg1[%c0, %c0_0, %c0_1, %c0_2] : memref<1x4x17x8xbf16, #tpu.memory_space<vmem>>, vector<1x4x17x8xbf16>
    %1 = vector.shape_cast %0 : vector<1x4x17x8xbf16> to vector<4x17x8xbf16>
    %c0_3 = arith.constant 0 : index
    %c0_4 = arith.constant 0 : index
    %c0_5 = arith.constant 0 : index
    %c0_6 = arith.constant 0 : index
    %2 = vector.load %arg2[%c0_3, %c0_4, %c0_5, %c0_6] : memref<1x4x17x8xbf16, #tpu.memory_space<vmem>>, vector<1x4x17x8xbf16>
    %3 = vector.shape_cast %2 : vector<1x4x17x8xbf16> to vector<4x17x8xbf16>
    %c0_7 = arith.constant 0 : index
    %c0_8 = arith.constant 0 : index
    %c0_9 = arith.constant 0 : index
    %c0_10 = arith.constant 0 : index
    %4 = vector.load %arg3[%c0_7, %c0_8, %c0_9, %c0_10] : memref<1x4x17x8xbf16, #tpu.memory_space<vmem>>, vector<1x4x17x8xbf16>
    %5 = vector.shape_cast %4 : vector<1x4x17x8xbf16> to vector<4x17x8xbf16>
    "tpu.trace_start"() <{level = 10 : i32, message = "hqd,hkd->hqk"}> : () -> ()
    %cst = arith.constant dense<0.000000e+00> : vector<4x17x17xf32>
    %6 = tpu.matmul %1, %3, %cst {dimension_numbers = #tpu.dot_dimension_numbers<[2], [2], [1], [1], [0, 0, 0, 1, 1, 1], [0], [0]>} : vector<4x17x8xbf16>, vector<4x17x8xbf16>, vector<4x17x17xf32> -> vector<4x17x17xf32>
    "tpu.trace_stop"() : () -> ()
    %cst_11 = arith.constant 0.353553385 : f32
    %7 = vector.broadcast %cst_11 : f32 to vector<4x17x17xf32>
    %8 = arith.mulf %6, %7 : vector<4x17x17xf32>
    %cst_12 = arith.constant dense<0xFF800000> : vector<4x17xf32>
    %9 = vector.multi_reduction <maximumf>, %8, %cst_12 [2] : vector<4x17x17xf32> to vector<4x17xf32>
    %10 = vector.shape_cast %9 : vector<4x17xf32> to vector<4x17x1xf32>
    %11 = vector.broadcast %10 : vector<4x17x1xf32> to vector<4x17x17xf32>
    %12 = arith.subf %8, %11 : vector<4x17x17xf32>
    %13 = math.exp %12 : vector<4x17x17xf32>
    %cst_13 = arith.constant dense<0.000000e+00> : vector<4x17xf32>
    %14 = vector.multi_reduction <add>, %13, %cst_13 [2] : vector<4x17x17xf32> to vector<4x17xf32>
    %15 = vector.shape_cast %14 : vector<4x17xf32> to vector<4x17x1xf32>
    %16 = tpu.reciprocal %15 {approx = true} : vector<4x17x1xf32> -> vector<4x17x1xf32>
    %17 = vector.broadcast %16 : vector<4x17x1xf32> to vector<4x17x17xf32>
    %18 = arith.mulf %13, %17 : vector<4x17x17xf32>
    %19 = arith.truncf %18 : vector<4x17x17xf32> to vector<4x17x17xbf16>
    "tpu.trace_start"() <{level = 10 : i32, message = "hqk,hkd->hqd"}> : () -> ()
    %cst_14 = arith.constant dense<0.000000e+00> : vector<4x17x8xf32>
    %20 = tpu.matmul %19, %5, %cst_14 {dimension_numbers = #tpu.dot_dimension_numbers<[2], [1], [1], [2], [0, 0, 0, 1, 1, 2], [0], [0]>} : vector<4x17x17xbf16>, vector<4x17x8xbf16>, vector<4x17x8xf32> -> vector<4x17x8xf32>
    "tpu.trace_stop"() : () -> ()
    %21 = arith.truncf %20 : vector<4x17x8xf32> to vector<4x17x8xbf16>
    %c0_15 = arith.constant 0 : index
    %c0_16 = arith.constant 0 : index
    %c0_17 = arith.constant 0 : index
    %c0_18 = arith.constant 0 : index
    %22 = vector.load %arg4[%c0_15, %c0_16, %c0_17, %c0_18] : memref<1x4x17x8xbf16, #tpu.memory_space<vmem>>, vector<1x4x17x8xbf16>
    %23 = vector.shape_cast %22 : vector<1x4x17x8xbf16> to vector<4x17x8xbf16>
    %24 = vector.shape_cast %21 : vector<4x17x8xbf16> to vector<1x4x17x8xbf16>
    tpu.vector_store %arg4[%c0_15, %c0_16, %c0_17, %c0_18], %24 {strides = array<i32>} : memref<1x4x17x8xbf16, #tpu.memory_space<vmem>>, vector<1x4x17x8xbf16>,
    return
  }
  func.func @transform_0(%arg0: i32) -> (i32, i32, i32, i32) {
    %c0_i32 = arith.constant 0 : i32
    %c0_i32_0 = arith.constant 0 : i32
    %c0_i32_1 = arith.constant 0 : i32
    %c0_i32_2 = arith.constant 0 : i32
    return %arg0, %c0_i32, %c0_i32_0, %c0_i32_1 : i32, i32, i32, i32
  }
  func.func @transform_1(%arg0: i32) -> (i32, i32, i32, i32) {
    %c0_i32 = arith.constant 0 : i32
    %c0_i32_0 = arith.constant 0 : i32
    %c0_i32_1 = arith.constant 0 : i32
    %c0_i32_2 = arith.constant 0 : i32
    return %arg0, %c0_i32, %c0_i32_0, %c0_i32_1 : i32, i32, i32, i32
  }
  func.func @transform_2(%arg0: i32) -> (i32, i32, i32, i32) {
    %c0_i32 = arith.constant 0 : i32
    %c0_i32_0 = arith.constant 0 : i32
    %c0_i32_1 = arith.constant 0 : i32
    %c0_i32_2 = arith.constant 0 : i32
    return %arg0, %c0_i32, %c0_i32_0, %c0_i32_1 : i32, i32, i32, i32
  }
  func.func @transform_3(%arg0: i32) -> (i32, i32, i32, i32) {
    %c0_i32 = arith.constant 0 : i32
    %c0_i32_0 = arith.constant 0 : i32
    %c0_i32_1 = arith.constant 0 : i32
    %c0_i32_2 = arith.constant 0 : i32
    return %arg0, %c0_i32, %c0_i32_0, %c0_i32_1 : i32, i32, i32, i32
  }
}

module attributes {stable_mosaic.version = 11 : i64} {
  func.func @_fused_mm_kernel(%arg0: i32, %arg1: memref<40x32xbf16, #tpu.memory_space<vmem>>, %arg2: memref<32x32xbf16, #tpu.memory_space<vmem>>, %arg3: memref<1x32xf32, #tpu.memory_space<vmem>>, %arg4: memref<40x32xf32, #tpu.memory_space<vmem>>, %arg5: memref<40x32xf32, #tpu.memory_space<vmem>>) attributes {dimension_semantics = [#tpu.dimension_semantics<parallel>], iteration_bounds = array<i64: 1>, scalar_prefetch = 0 : i64, scratch_operands = 0 : i64, tpu.core_type = #tpu.core_type<tc>, window_params = [{transform_indices = @transform_0, window_bounds = array<i64: 40, 32>}, {pipeline_mode = #tpu.pipeline_mode<synchronous>, transform_indices = @transform_1, window_bounds = array<i64: 32, 32>}, {pipeline_mode = #tpu.pipeline_mode<synchronous>, transform_indices = @transform_2, window_bounds = array<i64: 1, 32>}, {transform_indices = @transform_3, window_bounds = array<i64: 40, 32>}, {transform_indices = @transform_4, window_bounds = array<i64: 40, 32>}]} {
    %c0 = arith.constant 0 : index
    %c0_0 = arith.constant 0 : index
    %0 = vector.load %arg1[%c0, %c0_0] : memref<40x32xbf16, #tpu.memory_space<vmem>>, vector<40x32xbf16>
    %c0_1 = arith.constant 0 : index
    %c0_2 = arith.constant 0 : index
    %1 = vector.load %arg2[%c0_1, %c0_2] : memref<32x32xbf16, #tpu.memory_space<vmem>>, vector<32x32xbf16>
    %cst = arith.constant dense<0.000000e+00> : vector<40x32xf32>
    %2 = tpu.matmul %0, %1, %cst {dimension_numbers = #tpu.dot_dimension_numbers<[1], [0], [0], [1], [0, 0, 1, 1], [], []>} : vector<40x32xbf16>, vector<32x32xbf16>, vector<40x32xf32> -> vector<40x32xf32>
    %c0_3 = arith.constant 0 : index
    %c0_4 = arith.constant 0 : index
    %3 = vector.load %arg3[%c0_3, %c0_4] : memref<1x32xf32, #tpu.memory_space<vmem>>, vector<1x32xf32>
    %4 = vector.broadcast %3 : vector<1x32xf32> to vector<40x32xf32>
    %5 = arith.addf %2, %4 : vector<40x32xf32>
    %c0_5 = arith.constant 0 : index
    %c0_6 = arith.constant 0 : index
    %6 = vector.load %arg4[%c0_5, %c0_6] : memref<40x32xf32, #tpu.memory_space<vmem>>, vector<40x32xf32>
    %7 = arith.addf %5, %6 : vector<40x32xf32>
    %c0_7 = arith.constant 0 : index
    %c0_8 = arith.constant 0 : index
    %8 = vector.load %arg5[%c0_7, %c0_8] : memref<40x32xf32, #tpu.memory_space<vmem>>, vector<40x32xf32>
    tpu.vector_store %arg5[%c0_7, %c0_8], %7 {strides = array<i32>} : memref<40x32xf32, #tpu.memory_space<vmem>>, vector<40x32xf32>,
    return
  }
  func.func @transform_0(%arg0: i32) -> (i32, i32) {
    %c0_i32 = arith.constant 0 : i32
    %c0_i32_0 = arith.constant 0 : i32
    return %arg0, %c0_i32 : i32, i32
  }
  func.func @transform_1(%arg0: i32) -> (i32, i32) {
    %c0_i32 = arith.constant 0 : i32
    %c0_i32_0 = arith.constant 0 : i32
    %c0_i32_1 = arith.constant 0 : i32
    return %c0_i32, %c0_i32_0 : i32, i32
  }
  func.func @transform_2(%arg0: i32) -> (i32, i32) {
    %c0_i32 = arith.constant 0 : i32
    %c0_i32_0 = arith.constant 0 : i32
    %c0_i32_1 = arith.constant 0 : i32
    return %c0_i32, %c0_i32_0 : i32, i32
  }
  func.func @transform_3(%arg0: i32) -> (i32, i32) {
    %c0_i32 = arith.constant 0 : i32
    %c0_i32_0 = arith.constant 0 : i32
    return %arg0, %c0_i32 : i32, i32
  }
  func.func @transform_4(%arg0: i32) -> (i32, i32) {
    %c0_i32 = arith.constant 0 : i32
    %c0_i32_0 = arith.constant 0 : i32
    return %arg0, %c0_i32 : i32, i32
  }
}

module attributes {stable_mosaic.version = 11 : i64} {
  func.func @_fused_mm_kernel(%arg0: i32, %arg1: memref<40x32xf32, #tpu.memory_space<vmem>>, %arg2: memref<32x128xbf16, #tpu.memory_space<vmem>>, %arg3: memref<1x128xf32, #tpu.memory_space<vmem>>, %arg4: memref<1x32xf32, #tpu.memory_space<vmem>>, %arg5: memref<1x32xf32, #tpu.memory_space<vmem>>, %arg6: memref<40x128xbf16, #tpu.memory_space<vmem>>) attributes {dimension_semantics = [#tpu.dimension_semantics<parallel>], iteration_bounds = array<i64: 1>, scalar_prefetch = 0 : i64, scratch_operands = 0 : i64, tpu.core_type = #tpu.core_type<tc>, window_params = [{transform_indices = @transform_0, window_bounds = array<i64: 40, 32>}, {pipeline_mode = #tpu.pipeline_mode<synchronous>, transform_indices = @transform_1, window_bounds = array<i64: 32, 128>}, {pipeline_mode = #tpu.pipeline_mode<synchronous>, transform_indices = @transform_2, window_bounds = array<i64: 1, 128>}, {pipeline_mode = #tpu.pipeline_mode<synchronous>, transform_indices = @transform_3, window_bounds = array<i64: 1, 32>}, {pipeline_mode = #tpu.pipeline_mode<synchronous>, transform_indices = @transform_4, window_bounds = array<i64: 1, 32>}, {transform_indices = @transform_5, window_bounds = array<i64: 40, 128>}]} {
    %c0 = arith.constant 0 : index
    %c0_0 = arith.constant 0 : index
    %0 = vector.load %arg1[%c0, %c0_0] : memref<40x32xf32, #tpu.memory_space<vmem>>, vector<40x32xf32>
    %cst = arith.constant dense<0.000000e+00> : vector<40xf32>
    %1 = vector.multi_reduction <add>, %0, %cst [1] : vector<40x32xf32> to vector<40xf32>
    %2 = vector.shape_cast %1 : vector<40xf32> to vector<40x1xf32>
    %cst_1 = arith.constant 3.200000e+01 : f32
    %3 = vector.broadcast %cst_1 : f32 to vector<40x1xf32>
    %4 = arith.divf %2, %3 : vector<40x1xf32>
    %5 = vector.broadcast %4 : vector<40x1xf32> to vector<40x32xf32>
    %6 = arith.subf %0, %5 : vector<40x32xf32>
    %7 = arith.mulf %6, %6 : vector<40x32xf32>
    %cst_2 = arith.constant dense<0.000000e+00> : vector<40xf32>
    %8 = vector.multi_reduction <add>, %7, %cst_2 [1] : vector<40x32xf32> to vector<40xf32>
    %9 = vector.shape_cast %8 : vector<40xf32> to vector<40x1xf32>
    %cst_3 = arith.constant 3.200000e+01 : f32
    %10 = vector.broadcast %cst_3 : f32 to vector<40x1xf32>
    %11 = arith.divf %9, %10 : vector<40x1xf32>
    %12 = vector.broadcast %4 : vector<40x1xf32> to vector<40x32xf32>
    %13 = arith.subf %0, %12 : vector<40x32xf32>
    %cst_4 = arith.constant 9.99999974E-6 : f32
    %14 = vector.broadcast %cst_4 : f32 to vector<40x1xf32>
    %15 = arith.addf %11, %14 : vector<40x1xf32>
    %16 = math.rsqrt %15 : vector<40x1xf32>
    %17 = vector.broadcast %16 : vector<40x1xf32> to vector<40x32xf32>
    %18 = arith.mulf %13, %17 : vector<40x32xf32>
    %c0_5 = arith.constant 0 : index
    %c0_6 = arith.constant 0 : index
    %19 = vector.load %arg4[%c0_5, %c0_6] : memref<1x32xf32, #tpu.memory_space<vmem>>, vector<1x32xf32>
    %20 = vector.broadcast %19 : vector<1x32xf32> to vector<40x32xf32>
    %21 = arith.mulf %18, %20 : vector<40x32xf32>
    %c0_7 = arith.constant 0 : index
    %c0_8 = arith.constant 0 : index
    %22 = vector.load %arg5[%c0_7, %c0_8] : memref<1x32xf32, #tpu.memory_space<vmem>>, vector<1x32xf32>
    %23 = vector.broadcast %22 : vector<1x32xf32> to vector<40x32xf32>
    %24 = arith.addf %21, %23 : vector<40x32xf32>
    %25 = arith.truncf %24 : vector<40x32xf32> to vector<40x32xbf16>
    %c0_9 = arith.constant 0 : index
    %c0_10 = arith.constant 0 : index
    %26 = vector.load %arg2[%c0_9, %c0_10] : memref<32x128xbf16, #tpu.memory_space<vmem>>, vector<32x128xbf16>
    %cst_11 = arith.constant dense<0.000000e+00> : vector<40x128xf32>
    %27 = tpu.matmul %25, %26, %cst_11 {dimension_numbers = #tpu.dot_dimension_numbers<[1], [0], [0], [1], [0, 0, 1, 1], [], []>} : vector<40x32xbf16>, vector<32x128xbf16>, vector<40x128xf32> -> vector<40x128xf32>
    %c0_12 = arith.constant 0 : index
    %c0_13 = arith.constant 0 : index
    %28 = vector.load %arg3[%c0_12, %c0_13] : memref<1x128xf32, #tpu.memory_space<vmem>>, vector<1x128xf32>
    %29 = vector.broadcast %28 : vector<1x128xf32> to vector<40x128xf32>
    %30 = arith.addf %27, %29 : vector<40x128xf32>
    %cst_14 = arith.constant 5.000000e-01 : f32
    %31 = vector.broadcast %cst_14 : f32 to vector<40x128xf32>
    %32 = arith.mulf %31, %30 : vector<40x128xf32>
    %cst_15 = arith.constant 0.707106769 : f32
    %33 = vector.broadcast %cst_15 : f32 to vector<40x128xf32>
    %34 = arith.mulf %30, %33 : vector<40x128xf32>
    %35 = math.absf %34 : vector<40x128xf32>
    %cst_16 = arith.constant 0.327591091 : f32
    %36 = vector.broadcast %cst_16 : f32 to vector<40x128xf32>
    %37 = arith.mulf %36, %35 : vector<40x128xf32>
    %cst_17 = arith.constant 1.000000e+00 : f32
    %38 = vector.broadcast %cst_17 : f32 to vector<40x128xf32>
    %39 = arith.addf %38, %37 : vector<40x128xf32>
    %cst_18 = arith.constant 1.000000e+00 : f32
    %40 = vector.broadcast %cst_18 : f32 to vector<40x128xf32>
    %41 = arith.divf %40, %39 : vector<40x128xf32>
    %cst_19 = arith.constant 1.06140542 : f32
    %42 = vector.broadcast %cst_19 : f32 to vector<40x128xf32>
    %43 = arith.mulf %41, %42 : vector<40x128xf32>
    %cst_20 = arith.constant -1.45315206 : f32
    %44 = vector.broadcast %cst_20 : f32 to vector<40x128xf32>
    %45 = arith.addf %44, %43 : vector<40x128xf32>
    %46 = arith.mulf %41, %45 : vector<40x128xf32>
    %cst_21 = arith.constant 1.42141378 : f32
    %47 = vector.broadcast %cst_21 : f32 to vector<40x128xf32>
    %48 = arith.addf %47, %46 : vector<40x128xf32>
    %49 = arith.mulf %41, %48 : vector<40x128xf32>
    %cst_22 = arith.constant -0.284496725 : f32
    %50 = vector.broadcast %cst_22 : f32 to vector<40x128xf32>
    %51 = arith.addf %50, %49 : vector<40x128xf32>
    %52 = arith.mulf %41, %51 : vector<40x128xf32>
    %cst_23 = arith.constant 0.254829586 : f32
    %53 = vector.broadcast %cst_23 : f32 to vector<40x128xf32>
    %54 = arith.addf %53, %52 : vector<40x128xf32>
    %55 = arith.mulf %41, %54 : vector<40x128xf32>
    %cst_24 = arith.constant 0.000000e+00 : f32
    %56 = vector.broadcast %cst_24 : f32 to vector<40x128xf32>
    %57 = arith.subf %56, %35 : vector<40x128xf32>
    %58 = arith.mulf %57, %35 : vector<40x128xf32>
    %59 = math.exp %58 : vector<40x128xf32>
    %60 = arith.mulf %55, %59 : vector<40x128xf32>
    %cst_25 = arith.constant 1.000000e+00 : f32
    %61 = vector.broadcast %cst_25 : f32 to vector<40x128xf32>
    %62 = arith.subf %61, %60 : vector<40x128xf32>
    %cst_26 = arith.constant 0.000000e+00 : f32
    %63 = vector.broadcast %cst_26 : f32 to vector<40x128xf32>
    %64 = arith.cmpf olt, %34, %63 : vector<40x128xf32>
    %cst_27 = arith.constant 0.000000e+00 : f32
    %65 = vector.broadcast %cst_27 : f32 to vector<40x128xf32>
    %66 = arith.subf %65, %62 : vector<40x128xf32>
    %67 = arith.select %64, %66, %62 : vector<40x128xi1>, vector<40x128xf32>
    %cst_28 = arith.constant 1.000000e+00 : f32
    %68 = vector.broadcast %cst_28 : f32 to vector<40x128xf32>
    %69 = arith.addf %68, %67 : vector<40x128xf32>
    %70 = arith.mulf %32, %69 : vector<40x128xf32>
    %71 = arith.truncf %70 : vector<40x128xf32> to vector<40x128xbf16>
    %c0_29 = arith.constant 0 : index
    %c0_30 = arith.constant 0 : index
    %72 = vector.load %arg6[%c0_29, %c0_30] : memref<40x128xbf16, #tpu.memory_space<vmem>>, vector<40x128xbf16>
    tpu.vector_store %arg6[%c0_29, %c0_30], %71 {strides = array<i32>} : memref<40x128xbf16, #tpu.memory_space<vmem>>, vector<40x128xbf16>,
    return
  }
  func.func @transform_0(%arg0: i32) -> (i32, i32) {
    %c0_i32 = arith.constant 0 : i32
    %c0_i32_0 = arith.constant 0 : i32
    return %arg0, %c0_i32 : i32, i32
  }
  func.func @transform_1(%arg0: i32) -> (i32, i32) {
    %c0_i32 = arith.constant 0 : i32
    %c0_i32_0 = arith.constant 0 : i32
    %c0_i32_1 = arith.constant 0 : i32
    return %c0_i32, %c0_i32_0 : i32, i32
  }
  func.func @transform_2(%arg0: i32) -> (i32, i32) {
    %c0_i32 = arith.constant 0 : i32
    %c0_i32_0 = arith.constant 0 : i32
    %c0_i32_1 = arith.constant 0 : i32
    return %c0_i32, %c0_i32_0 : i32, i32
  }
  func.func @transform_3(%arg0: i32) -> (i32, i32) {
    %c0_i32 = arith.constant 0 : i32
    %c0_i32_0 = arith.constant 0 : i32
    %c0_i32_1 = arith.constant 0 : i32
    return %c0_i32, %c0_i32_0 : i32, i32
  }
  func.func @transform_4(%arg0: i32) -> (i32, i32) {
    %c0_i32 = arith.constant 0 : i32
    %c0_i32_0 = arith.constant 0 : i32
    %c0_i32_1 = arith.constant 0 : i32
    return %c0_i32, %c0_i32_0 : i32, i32
  }
  func.func @transform_5(%arg0: i32) -> (i32, i32) {
    %c0_i32 = arith.constant 0 : i32
    %c0_i32_0 = arith.constant 0 : i32
    return %arg0, %c0_i32 : i32, i32
  }
}

module attributes {stable_mosaic.version = 11 : i64} {
  func.func @_fused_mm_kernel(%arg0: i32, %arg1: memref<40x128xbf16, #tpu.memory_space<vmem>>, %arg2: memref<128x32xbf16, #tpu.memory_space<vmem>>, %arg3: memref<1x32xf32, #tpu.memory_space<vmem>>, %arg4: memref<40x32xf32, #tpu.memory_space<vmem>>, %arg5: memref<40x32xf32, #tpu.memory_space<vmem>>) attributes {dimension_semantics = [#tpu.dimension_semantics<parallel>], iteration_bounds = array<i64: 1>, scalar_prefetch = 0 : i64, scratch_operands = 0 : i64, tpu.core_type = #tpu.core_type<tc>, window_params = [{transform_indices = @transform_0, window_bounds = array<i64: 40, 128>}, {pipeline_mode = #tpu.pipeline_mode<synchronous>, transform_indices = @transform_1, window_bounds = array<i64: 128, 32>}, {pipeline_mode = #tpu.pipeline_mode<synchronous>, transform_indices = @transform_2, window_bounds = array<i64: 1, 32>}, {transform_indices = @transform_3, window_bounds = array<i64: 40, 32>}, {transform_indices = @transform_4, window_bounds = array<i64: 40, 32>}]} {
    %c0 = arith.constant 0 : index
    %c0_0 = arith.constant 0 : index
    %0 = vector.load %arg1[%c0, %c0_0] : memref<40x128xbf16, #tpu.memory_space<vmem>>, vector<40x128xbf16>
    %c0_1 = arith.constant 0 : index
    %c0_2 = arith.constant 0 : index
    %1 = vector.load %arg2[%c0_1, %c0_2] : memref<128x32xbf16, #tpu.memory_space<vmem>>, vector<128x32xbf16>
    %cst = arith.constant dense<0.000000e+00> : vector<40x32xf32>
    %2 = tpu.matmul %0, %1, %cst {dimension_numbers = #tpu.dot_dimension_numbers<[1], [0], [0], [1], [0, 0, 1, 1], [], []>} : vector<40x128xbf16>, vector<128x32xbf16>, vector<40x32xf32> -> vector<40x32xf32>
    %c0_3 = arith.constant 0 : index
    %c0_4 = arith.constant 0 : index
    %3 = vector.load %arg3[%c0_3, %c0_4] : memref<1x32xf32, #tpu.memory_space<vmem>>, vector<1x32xf32>
    %4 = vector.broadcast %3 : vector<1x32xf32> to vector<40x32xf32>
    %5 = arith.addf %2, %4 : vector<40x32xf32>
    %c0_5 = arith.constant 0 : index
    %c0_6 = arith.constant 0 : index
    %6 = vector.load %arg4[%c0_5, %c0_6] : memref<40x32xf32, #tpu.memory_space<vmem>>, vector<40x32xf32>
    %7 = arith.addf %5, %6 : vector<40x32xf32>
    %c0_7 = arith.constant 0 : index
    %c0_8 = arith.constant 0 : index
    %8 = vector.load %arg5[%c0_7, %c0_8] : memref<40x32xf32, #tpu.memory_space<vmem>>, vector<40x32xf32>
    tpu.vector_store %arg5[%c0_7, %c0_8], %7 {strides = array<i32>} : memref<40x32xf32, #tpu.memory_space<vmem>>, vector<40x32xf32>,
    return
  }
  func.func @transform_0(%arg0: i32) -> (i32, i32) {
    %c0_i32 = arith.constant 0 : i32
    %c0_i32_0 = arith.constant 0 : i32
    return %arg0, %c0_i32 : i32, i32
  }
  func.func @transform_1(%arg0: i32) -> (i32, i32) {
    %c0_i32 = arith.constant 0 : i32
    %c0_i32_0 = arith.constant 0 : i32
    %c0_i32_1 = arith.constant 0 : i32
    return %c0_i32, %c0_i32_0 : i32, i32
  }
  func.func @transform_2(%arg0: i32) -> (i32, i32) {
    %c0_i32 = arith.constant 0 : i32
    %c0_i32_0 = arith.constant 0 : i32
    %c0_i32_1 = arith.constant 0 : i32
    return %c0_i32, %c0_i32_0 : i32, i32
  }
  func.func @transform_3(%arg0: i32) -> (i32, i32) {
    %c0_i32 = arith.constant 0 : i32
    %c0_i32_0 = arith.constant 0 : i32
    return %arg0, %c0_i32 : i32, i32
  }
  func.func @transform_4(%arg0: i32) -> (i32, i32) {
    %c0_i32 = arith.constant 0 : i32
    %c0_i32_0 = arith.constant 0 : i32
    return %arg0, %c0_i32 : i32, i32
  }
}

module attributes {stable_mosaic.version = 11 : i64} {
  func.func @_fused_mm_kernel(%arg0: i32, %arg1: memref<32x32xbf16, #tpu.memory_space<vmem>>, %arg2: memref<32x4xbf16, #tpu.memory_space<vmem>>, %arg3: memref<1x4xf32, #tpu.memory_space<vmem>>, %arg4: memref<32x4xf32, #tpu.memory_space<vmem>>) attributes {dimension_semantics = [#tpu.dimension_semantics<parallel>], iteration_bounds = array<i64: 1>, scalar_prefetch = 0 : i64, scratch_operands = 0 : i64, tpu.core_type = #tpu.core_type<tc>, window_params = [{transform_indices = @transform_0, window_bounds = array<i64: 32, 32>}, {pipeline_mode = #tpu.pipeline_mode<synchronous>, transform_indices = @transform_1, window_bounds = array<i64: 32, 4>}, {pipeline_mode = #tpu.pipeline_mode<synchronous>, transform_indices = @transform_2, window_bounds = array<i64: 1, 4>}, {transform_indices = @transform_3, window_bounds = array<i64: 32, 4>}]} {
    %c0 = arith.constant 0 : index
    %c0_0 = arith.constant 0 : index
    %0 = vector.load %arg1[%c0, %c0_0] : memref<32x32xbf16, #tpu.memory_space<vmem>>, vector<32x32xbf16>
    %c0_1 = arith.constant 0 : index
    %c0_2 = arith.constant 0 : index
    %1 = vector.load %arg2[%c0_1, %c0_2] : memref<32x4xbf16, #tpu.memory_space<vmem>>, vector<32x4xbf16>
    %cst = arith.constant dense<0.000000e+00> : vector<32x4xf32>
    %2 = tpu.matmul %0, %1, %cst {dimension_numbers = #tpu.dot_dimension_numbers<[1], [0], [0], [1], [0, 0, 1, 1], [], []>} : vector<32x32xbf16>, vector<32x4xbf16>, vector<32x4xf32> -> vector<32x4xf32>
    %c0_3 = arith.constant 0 : index
    %c0_4 = arith.constant 0 : index
    %3 = vector.load %arg3[%c0_3, %c0_4] : memref<1x4xf32, #tpu.memory_space<vmem>>, vector<1x4xf32>
    %4 = vector.broadcast %3 : vector<1x4xf32> to vector<32x4xf32>
    %5 = arith.addf %2, %4 : vector<32x4xf32>
    %cst_5 = arith.constant 0.000000e+00 : f32
    %6 = vector.broadcast %cst_5 : f32 to vector<32x4xf32>
    %7 = arith.maximumf %5, %6 : vector<32x4xf32>
    %c0_6 = arith.constant 0 : index
    %c0_7 = arith.constant 0 : index
    %8 = vector.load %arg4[%c0_6, %c0_7] : memref<32x4xf32, #tpu.memory_space<vmem>>, vector<32x4xf32>
    tpu.vector_store %arg4[%c0_6, %c0_7], %7 {strides = array<i32>} : memref<32x4xf32, #tpu.memory_space<vmem>>, vector<32x4xf32>,
    return
  }
  func.func @transform_0(%arg0: i32) -> (i32, i32) {
    %c0_i32 = arith.constant 0 : i32
    %c0_i32_0 = arith.constant 0 : i32
    return %arg0, %c0_i32 : i32, i32
  }
  func.func @transform_1(%arg0: i32) -> (i32, i32) {
    %c0_i32 = arith.constant 0 : i32
    %c0_i32_0 = arith.constant 0 : i32
    %c0_i32_1 = arith.constant 0 : i32
    return %c0_i32, %c0_i32_0 : i32, i32
  }
  func.func @transform_2(%arg0: i32) -> (i32, i32) {
    %c0_i32 = arith.constant 0 : i32
    %c0_i32_0 = arith.constant 0 : i32
    %c0_i32_1 = arith.constant 0 : i32
    return %c0_i32, %c0_i32_0 : i32, i32
  }
  func.func @transform_3(%arg0: i32) -> (i32, i32) {
    %c0_i32 = arith.constant 0 : i32
    %c0_i32_0 = arith.constant 0 : i32
    return %arg0, %c0_i32 : i32, i32
  }
}

module attributes {stable_mosaic.version = 11 : i64} {
  func.func @_conv_block_kernel(%arg0: i32, %arg1: memref<1x64x16xf32, #tpu.memory_space<vmem>>, %arg2: memref<16x4xbf16, #tpu.memory_space<vmem>>, %arg3: memref<1x4xf32, #tpu.memory_space<vmem>>, %arg4: memref<36x4xbf16, #tpu.memory_space<vmem>>, %arg5: memref<1x4xf32, #tpu.memory_space<vmem>>, %arg6: memref<4x16xbf16, #tpu.memory_space<vmem>>, %arg7: memref<1x16xf32, #tpu.memory_space<vmem>>, %arg8: memref<1x64x4xf32, #tpu.memory_space<vmem>>, %arg9: memref<1x64x16xf32, #tpu.memory_space<vmem>>, %arg10: memref<96x4xf32, #tpu.memory_space<vmem>>) attributes {dimension_semantics = [#tpu.dimension_semantics<parallel>], iteration_bounds = array<i64: 2>, scalar_prefetch = 0 : i64, scratch_operands = 1 : i64, tpu.core_type = #tpu.core_type<tc>, window_params = [{transform_indices = @transform_0, window_bounds = array<i64: 1, 64, 16>}, {pipeline_mode = #tpu.pipeline_mode<synchronous>, transform_indices = @transform_1, window_bounds = array<i64: 16, 4>}, {pipeline_mode = #tpu.pipeline_mode<synchronous>, transform_indices = @transform_2, window_bounds = array<i64: 1, 4>}, {pipeline_mode = #tpu.pipeline_mode<synchronous>, transform_indices = @transform_3, window_bounds = array<i64: 36, 4>}, {pipeline_mode = #tpu.pipeline_mode<synchronous>, transform_indices = @transform_4, window_bounds = array<i64: 1, 4>}, {pipeline_mode = #tpu.pipeline_mode<synchronous>, transform_indices = @transform_5, window_bounds = array<i64: 4, 16>}, {pipeline_mode = #tpu.pipeline_mode<synchronous>, transform_indices = @transform_6, window_bounds = array<i64: 1, 16>}, {transform_indices = @transform_7, window_bounds = array<i64: 1, 64, 4>}, {transform_indices = @transform_8, window_bounds = array<i64: 1, 64, 16>}]} {
    %c0 = arith.constant 0 : index
    %c0_0 = arith.constant 0 : index
    %c0_1 = arith.constant 0 : index
    %0 = vector.load %arg1[%c0, %c0_0, %c0_1] : memref<1x64x16xf32, #tpu.memory_space<vmem>>, vector<1x64x16xf32>
    %1 = vector.shape_cast %0 : vector<1x64x16xf32> to vector<64x16xf32>
    %2 = arith.truncf %1 : vector<64x16xf32> to vector<64x16xbf16>
    %c0_2 = arith.constant 0 : index
    %c0_3 = arith.constant 0 : index
    %3 = vector.load %arg2[%c0_2, %c0_3] : memref<16x4xbf16, #tpu.memory_space<vmem>>, vector<16x4xbf16>
    %cst = arith.constant dense<0.000000e+00> : vector<64x4xf32>
    %4 = tpu.matmul %2, %3, %cst {dimension_numbers = #tpu.dot_dimension_numbers<[1], [0], [0], [1], [0, 0, 1, 1], [], []>} : vector<64x16xbf16>, vector<16x4xbf16>, vector<64x4xf32> -> vector<64x4xf32>
    %c0_4 = arith.constant 0 : index
    %c0_5 = arith.constant 0 : index
    %5 = vector.load %arg3[%c0_4, %c0_5] : memref<1x4xf32, #tpu.memory_space<vmem>>, vector<1x4xf32>
    %6 = vector.broadcast %5 : vector<1x4xf32> to vector<64x4xf32>
    %7 = arith.addf %4, %6 : vector<64x4xf32>
    %cst_6 = arith.constant 0.000000e+00 : f32
    %8 = vector.broadcast %cst_6 : f32 to vector<64x4xf32>
    %9 = arith.maximumf %7, %8 : vector<64x4xf32>
    %c0_7 = arith.constant 0 : index
    %c0_8 = arith.constant 0 : index
    %c0_9 = arith.constant 0 : index
    %10 = vector.load %arg8[%c0_7, %c0_8, %c0_9] : memref<1x64x4xf32, #tpu.memory_space<vmem>>, vector<1x64x4xf32>
    %11 = vector.shape_cast %10 : vector<1x64x4xf32> to vector<64x4xf32>
    %12 = arith.addf %9, %11 : vector<64x4xf32>
    %cst_10 = arith.constant 0.000000e+00 : f32
    %13 = vector.broadcast %cst_10 : f32 to vector<16x4xf32>
    %c0_11 = arith.constant 0 : index
    %c0_12 = arith.constant 0 : index
    %14 = vector.load %arg10[%c0_11, %c0_12] : memref<96x4xf32, #tpu.memory_space<vmem>>, vector<16x4xf32>
    tpu.vector_store %arg10[%c0_11, %c0_12], %13 {strides = array<i32>} : memref<96x4xf32, #tpu.memory_space<vmem>>, vector<16x4xf32>,
    %cst_13 = arith.constant 0.000000e+00 : f32
    %15 = vector.broadcast %cst_13 : f32 to vector<16x4xf32>
    %c80 = arith.constant 80 : index
    %c0_14 = arith.constant 0 : index
    %16 = vector.load %arg10[%c80, %c0_14] : memref<96x4xf32, #tpu.memory_space<vmem>>, vector<16x4xf32>
    tpu.vector_store %arg10[%c80, %c0_14], %15 {strides = array<i32>} : memref<96x4xf32, #tpu.memory_space<vmem>>, vector<16x4xf32>,
    %c16 = arith.constant 16 : index
    %c0_15 = arith.constant 0 : index
    %17 = vector.load %arg10[%c16, %c0_15] : memref<96x4xf32, #tpu.memory_space<vmem>>, vector<64x4xf32>
    tpu.vector_store %arg10[%c16, %c0_15], %12 {strides = array<i32>} : memref<96x4xf32, #tpu.memory_space<vmem>>, vector<64x4xf32>,
    %18 = tpu.iota {dimensions = array<i32: 0>} : vector<64x1xi32>
    %c8_i32 = arith.constant 8 : i32
    %c0_i32 = arith.constant 0 : i32
    %19 = arith.cmpi eq, %c8_i32, %c0_i32 : i32
    %c1_i32 = arith.constant 1 : i32
    %20 = arith.select %19, %c1_i32, %c8_i32 : i32
    %21 = vector.broadcast %20 : i32 to vector<64x1xi32>
    %22 = arith.remsi %18, %21 : vector<64x1xi32>
    %c0_i32_16 = arith.constant 0 : i32
    %23 = vector.broadcast %c0_i32_16 : i32 to vector<64x1xi32>
    %24 = arith.cmpi ne, %22, %23 : vector<64x1xi32>
    %c0_i32_17 = arith.constant 0 : i32
    %25 = vector.broadcast %c0_i32_17 : i32 to vector<64x1xi32>
    %26 = arith.cmpi slt, %22, %25 : vector<64x1xi32>
    %c0_i32_18 = arith.constant 0 : i32
    %27 = arith.cmpi slt, %20, %c0_i32_18 : i32
    %28 = vector.broadcast %27 : i1 to vector<64x1xi1>
    %29 = vector.broadcast %28 : vector<64x1xi1> to vector<64x1xi1>
    %30 = arith.xori %26, %29 : vector<64x1xi1>
    %31 = arith.andi %30, %24 : vector<64x1xi1>
    %32 = vector.broadcast %20 : i32 to vector<64x1xi32>
    %33 = arith.addi %22, %32 : vector<64x1xi32>
    %34 = arith.select %31, %33, %22 : vector<64x1xi1>, vector<64x1xi32>
    %c1_i32_19 = arith.constant 1 : i32
    %35 = vector.broadcast %c1_i32_19 : i32 to vector<64x1xi32>
    %36 = arith.cmpi sge, %34, %35 : vector<64x1xi32>
    %37 = arith.extui %36 : vector<64x1xi1> to vector<64x1xi32>
    %38 = arith.sitofp %37 : vector<64x1xi32> to vector<64x1xf32>
    %c7_i32 = arith.constant 7 : i32
    %39 = vector.broadcast %c7_i32 : i32 to vector<64x1xi32>
    %40 = arith.cmpi slt, %34, %39 : vector<64x1xi32>
    %41 = arith.extui %40 : vector<64x1xi1> to vector<64x1xi32>
    %42 = arith.sitofp %41 : vector<64x1xi32> to vector<64x1xf32>
    %c7 = arith.constant 7 : index
    %c0_20 = arith.constant 0 : index
    %43 = vector.load %arg10[%c7, %c0_20] : memref<96x4xf32, #tpu.memory_space<vmem>>, vector<64x4xf32>
    %44 = vector.broadcast %38 : vector<64x1xf32> to vector<64x4xf32>
    %45 = arith.mulf %43, %44 : vector<64x4xf32>
    %c8 = arith.constant 8 : index
    %c0_21 = arith.constant 0 : index
    %46 = vector.load %arg10[%c8, %c0_21] : memref<96x4xf32, #tpu.memory_space<vmem>>, vector<64x4xf32>
    %c9 = arith.constant 9 : index
    %c0_22 = arith.constant 0 : index
    %47 = vector.load %arg10[%c9, %c0_22] : memref<96x4xf32, #tpu.memory_space<vmem>>, vector<64x4xf32>
    %48 = vector.broadcast %42 : vector<64x1xf32> to vector<64x4xf32>
    %49 = arith.mulf %47, %48 : vector<64x4xf32>
    %c15 = arith.constant 15 : index
    %c0_23 = arith.constant 0 : index
    %50 = vector.load %arg10[%c15, %c0_23] : memref<96x4xf32, #tpu.memory_space<vmem>>, vector<64x4xf32>
    %51 = vector.broadcast %38 : vector<64x1xf32> to vector<64x4xf32>
    %52 = arith.mulf %50, %51 : vector<64x4xf32>
    %c16_24 = arith.constant 16 : index
    %c0_25 = arith.constant 0 : index
    %53 = vector.load %arg10[%c16_24, %c0_25] : memref<96x4xf32, #tpu.memory_space<vmem>>, vector<64x4xf32>
    %c17 = arith.constant 17 : index
    %c0_26 = arith.constant 0 : index
    %54 = vector.load %arg10[%c17, %c0_26] : memref<96x4xf32, #tpu.memory_space<vmem>>, vector<64x4xf32>
    %55 = vector.broadcast %42 : vector<64x1xf32> to vector<64x4xf32>
    %56 = arith.mulf %54, %55 : vector<64x4xf32>
    %c23 = arith.constant 23 : index
    %c0_27 = arith.constant 0 : index
    %57 = vector.load %arg10[%c23, %c0_27] : memref<96x4xf32, #tpu.memory_space<vmem>>, vector<64x4xf32>
    %58 = vector.broadcast %38 : vector<64x1xf32> to vector<64x4xf32>
    %59 = arith.mulf %57, %58 : vector<64x4xf32>
    %c24 = arith.constant 24 : index
    %c0_28 = arith.constant 0 : index
    %60 = vector.load %arg10[%c24, %c0_28] : memref<96x4xf32, #tpu.memory_space<vmem>>, vector<64x4xf32>
    %c25 = arith.constant 25 : index
    %c0_29 = arith.constant 0 : index
    %61 = vector.load %arg10[%c25, %c0_29] : memref<96x4xf32, #tpu.memory_space<vmem>>, vector<64x4xf32>
    %62 = vector.broadcast %42 : vector<64x1xf32> to vector<64x4xf32>
    %63 = arith.mulf %61, %62 : vector<64x4xf32>
    %64 = tpu.concatenate %45, %46, %49, %52, %53, %56, %59, %60, %63 in 1 : vector<64x4xf32>, vector<64x4xf32>, vector<64x4xf32>, vector<64x4xf32>, vector<64x4xf32>, vector<64x4xf32>, vector<64x4xf32>, vector<64x4xf32>, vector<64x4xf32> -> vector<64x36xf32>
    %65 = arith.truncf %64 : vector<64x36xf32> to vector<64x36xbf16>
    %c0_30 = arith.constant 0 : index
    %c0_31 = arith.constant 0 : index
    %66 = vector.load %arg4[%c0_30, %c0_31] : memref<36x4xbf16, #tpu.memory_space<vmem>>, vector<36x4xbf16>
    %cst_32 = arith.constant dense<0.000000e+00> : vector<64x4xf32>
    %67 = tpu.matmul %65, %66, %cst_32 {dimension_numbers = #tpu.dot_dimension_numbers<[1], [0], [0], [1], [0, 0, 1, 1], [], []>} : vector<64x36xbf16>, vector<36x4xbf16>, vector<64x4xf32> -> vector<64x4xf32>
    %c0_33 = arith.constant 0 : index
    %c0_34 = arith.constant 0 : index
    %68 = vector.load %arg5[%c0_33, %c0_34] : memref<1x4xf32, #tpu.memory_space<vmem>>, vector<1x4xf32>
    %69 = vector.broadcast %68 : vector<1x4xf32> to vector<64x4xf32>
    %70 = arith.addf %67, %69 : vector<64x4xf32>
    %cst_35 = arith.constant 0.000000e+00 : f32
    %71 = vector.broadcast %cst_35 : f32 to vector<64x4xf32>
    %72 = arith.maximumf %70, %71 : vector<64x4xf32>
    %73 = arith.truncf %72 : vector<64x4xf32> to vector<64x4xbf16>
    %c0_36 = arith.constant 0 : index
    %c0_37 = arith.constant 0 : index
    %74 = vector.load %arg6[%c0_36, %c0_37] : memref<4x16xbf16, #tpu.memory_space<vmem>>, vector<4x16xbf16>
    %cst_38 = arith.constant dense<0.000000e+00> : vector<64x16xf32>
    %75 = tpu.matmul %73, %74, %cst_38 {dimension_numbers = #tpu.dot_dimension_numbers<[1], [0], [0], [1], [0, 0, 1, 1], [], []>} : vector<64x4xbf16>, vector<4x16xbf16>, vector<64x16xf32> -> vector<64x16xf32>
    %c0_39 = arith.constant 0 : index
    %c0_40 = arith.constant 0 : index
    %76 = vector.load %arg7[%c0_39, %c0_40] : memref<1x16xf32, #tpu.memory_space<vmem>>, vector<1x16xf32>
    %77 = vector.broadcast %76 : vector<1x16xf32> to vector<64x16xf32>
    %78 = arith.addf %75, %77 : vector<64x16xf32>
    %79 = arith.addf %78, %1 : vector<64x16xf32>
    %cst_41 = arith.constant 0.000000e+00 : f32
    %80 = vector.broadcast %cst_41 : f32 to vector<64x16xf32>
    %81 = arith.maximumf %79, %80 : vector<64x16xf32>
    %c0_42 = arith.constant 0 : index
    %c0_43 = arith.constant 0 : index
    %c0_44 = arith.constant 0 : index
    %82 = vector.load %arg9[%c0_42, %c0_43, %c0_44] : memref<1x64x16xf32, #tpu.memory_space<vmem>>, vector<1x64x16xf32>
    %83 = vector.shape_cast %82 : vector<1x64x16xf32> to vector<64x16xf32>
    %84 = vector.shape_cast %81 : vector<64x16xf32> to vector<1x64x16xf32>
    tpu.vector_store %arg9[%c0_42, %c0_43, %c0_44], %84 {strides = array<i32>} : memref<1x64x16xf32, #tpu.memory_space<vmem>>, vector<1x64x16xf32>,
    return
  }
  func.func @transform_0(%arg0: i32) -> (i32, i32, i32) {
    %c0_i32 = arith.constant 0 : i32
    %c0_i32_0 = arith.constant 0 : i32
    %c0_i32_1 = arith.constant 0 : i32
    return %arg0, %c0_i32, %c0_i32_0 : i32, i32, i32
  }
  func.func @transform_1(%arg0: i32) -> (i32, i32) {
    %c0_i32 = arith.constant 0 : i32
    %c0_i32_0 = arith.constant 0 : i32
    %c0_i32_1 = arith.constant 0 : i32
    return %c0_i32, %c0_i32_0 : i32, i32
  }
  func.func @transform_2(%arg0: i32) -> (i32, i32) {
    %c0_i32 = arith.constant 0 : i32
    %c0_i32_0 = arith.constant 0 : i32
    %c0_i32_1 = arith.constant 0 : i32
    return %c0_i32, %c0_i32_0 : i32, i32
  }
  func.func @transform_3(%arg0: i32) -> (i32, i32) {
    %c0_i32 = arith.constant 0 : i32
    %c0_i32_0 = arith.constant 0 : i32
    %c0_i32_1 = arith.constant 0 : i32
    return %c0_i32, %c0_i32_0 : i32, i32
  }
  func.func @transform_4(%arg0: i32) -> (i32, i32) {
    %c0_i32 = arith.constant 0 : i32
    %c0_i32_0 = arith.constant 0 : i32
    %c0_i32_1 = arith.constant 0 : i32
    return %c0_i32, %c0_i32_0 : i32, i32
  }
  func.func @transform_5(%arg0: i32) -> (i32, i32) {
    %c0_i32 = arith.constant 0 : i32
    %c0_i32_0 = arith.constant 0 : i32
    %c0_i32_1 = arith.constant 0 : i32
    return %c0_i32, %c0_i32_0 : i32, i32
  }
  func.func @transform_6(%arg0: i32) -> (i32, i32) {
    %c0_i32 = arith.constant 0 : i32
    %c0_i32_0 = arith.constant 0 : i32
    %c0_i32_1 = arith.constant 0 : i32
    return %c0_i32, %c0_i32_0 : i32, i32
  }
  func.func @transform_7(%arg0: i32) -> (i32, i32, i32) {
    %c0_i32 = arith.constant 0 : i32
    %c0_i32_0 = arith.constant 0 : i32
    %c0_i32_1 = arith.constant 0 : i32
    return %arg0, %c0_i32, %c0_i32_0 : i32, i32, i32
  }
  func.func @transform_8(%arg0: i32) -> (i32, i32, i32) {
    %c0_i32 = arith.constant 0 : i32
    %c0_i32_0 = arith.constant 0 : i32
    %c0_i32_1 = arith.constant 0 : i32
    return %arg0, %c0_i32, %c0_i32_0 : i32, i32, i32
  }
}

</mosaic_0001>

<llo_original>
// kernel: conv_trans_block.10
$region0: #{conv_trans_block.10}
  #allocation0 [shape = 'u32[]', space=smem, size = 0x4, offset = 0x4, fixed_abs, tag = 'smem constant byte address 0x4 - core index']
  #allocation1 [shape = 'u32[144,128]{1,0:T(1,128)}', space=vmem, size = 0x12000, scoped, tag = 'internal scratch']
  %s0 = inlined_call_operand.vmem [shape: bf16[32,4], index: 0, kind: input, shape index: {}]
  %s1 = inlined_call_operand.vmem [shape: bf16[4,32], index: 1, kind: input, shape index: {}]
  %s2 = inlined_call_operand.vmem [shape: f32[1,32], index: 2, kind: input, shape index: {}]
  %s3 = inlined_call_operand.vmem [shape: f32[1,32], index: 3, kind: input, shape index: {}]
  %s4 = inlined_call_operand.vmem [shape: f32[1,32], index: 4, kind: input, shape index: {}]
  %s5 = inlined_call_operand.vmem [shape: f32[32,32], index: 5, kind: output, shape index: {}]
  %s6 = sld [smem:[#allocation0]]
  $region30: #{conv_trans_block.10} parent=0
    _
  %s8 = ssub.s32 1, %s6
  %s9 = scalar_select 0, %s8, %s6
  // Predicated region
  $region2: #{conv_trans_block.10} parent=0 // pred_check
    _
  $region3: #{conv_trans_block.10} parent=0 // pred_check_branch
    %11 = sbr.rel (0) target = $region5
  $region4: #{conv_trans_block.10} parent=0 // pred_region
    _
  $region5: #{conv_trans_block.10} parent=0 // pred_fallthru
    _
  // Predicated region
  $region6: #{conv_trans_block.10} parent=0 // pred_check
    _
  $region7: #{conv_trans_block.10} parent=0 // pred_check_branch
    %13 = sbr.rel (0) target = $region9
  $region8: #{conv_trans_block.10} parent=0 // pred_region
    _
  $region9: #{conv_trans_block.10} parent=0 // pred_fallthru
    _
  // Predicated region
  $region10: #{conv_trans_block.10} parent=0 // pred_check
    _
  $region11: #{conv_trans_block.10} parent=0 // pred_check_branch
    %15 = sbr.rel (0) target = $region13
  $region12: #{conv_trans_block.10} parent=0 // pred_region
    _
  $region13: #{conv_trans_block.10} parent=0 // pred_fallthru
    _
  // Predicated region
  $region14: #{conv_trans_block.10} parent=0 // pred_check
    _
  $region15: #{conv_trans_block.10} parent=0 // pred_check_branch
    %17 = sbr.rel (0) target = $region17
  $region16: #{conv_trans_block.10} parent=0 // pred_region
    _
  $region17: #{conv_trans_block.10} parent=0 // pred_fallthru
    _
  // Predicated region
  $region18: #{conv_trans_block.10} parent=0 // pred_check
    _
  $region19: #{conv_trans_block.10} parent=0 // pred_check_branch
    %19 = sbr.rel (0) target = $region21
  $region20: #{conv_trans_block.10} parent=0 // pred_region
    _
  $region21: #{conv_trans_block.10} parent=0 // pred_fallthru
    _
  %v21 = vld [vmem:[%s0] sm:$0xf]
  %v22 = vld [vmem:[%s0 + $0x4] sm:$0xf]
  %v23 = vld [vmem:[%s0 + $0x8] sm:$0xf]
  %v24 = vld [vmem:[%s0 + $0xc] sm:$0xf]
  %v25 = vld [vmem:[%s1] sm:$0x3]
  %v26 = vld [vmem:[%s2] sm:$0x1]
  %v28 = vlaneseq
  %v29 = vshrl.u32 %v28, 7
  %v30 = vsub.s32 0, %v29
  %v31 = vrot.slane %v26, %v30
  %v37 = vunpack.c.l.b16 %v21
  %v38 = vunpack.c.l.b16 %v22
  %v39 = vunpack.c.l.b16 %v23
  %v40 = vunpack.c.l.b16 %v24
  %v41 = vpack.c.b16 %v38, %v37
  %v42 = vpack.c.b16 %v40, %v39
  %vm43 = vcmask 31744
  %v45 = vsel %vm43, %v41, 0
  %v48 = vsel %vm43, %v42, 0
  %vm50 = vcmask 1041408
  %v52 = vsel %vm50, %v25, 0
  %54 = vmatprep.subr.bf16.mxu0 0
  %55 = vmatpush1.bf16.msra.mxu0 %v52
  %56 = vmatprep.subr.bf16.mxu0 0
  %57 = vmatpush1.bf16.msra.mxu0 0
  %58 = vmatprep.subr.bf16.mxu0 0
  %59 = vmatpush1.bf16.msra.mxu0 0
  %60 = vmatprep.subr.bf16.mxu0 0
  %61 = vmatpush1.bf16.msra.mxu0 0
  %62 = vmatprep.subr.bf16.mxu0 0
  %63 = vmatpush1.bf16.msra.mxu0 0
  %64 = vmatprep.subr.bf16.mxu0 0
  %65 = vmatpush1.bf16.msra.mxu0 0
  %66 = vmatprep.subr.bf16.mxu0 0
  %67 = vmatpush1.bf16.msra.mxu0 0
  %68 = vmatprep.subr.bf16.mxu0 0
  %69 = vmatpush1.bf16.msra.mxu0 0
  %70 = vmatprep.subr.bf16.mxu0 0
  %71 = vmatpush1.bf16.msra.mxu0 0
  %72 = vmatprep.subr.bf16.mxu0 0
  %73 = vmatpush1.bf16.msra.mxu0 0
  %74 = vmatprep.subr.bf16.mxu0 0
  %75 = vmatpush1.bf16.msra.mxu0 0
  %76 = vmatprep.subr.bf16.mxu0 0
  %77 = vmatpush1.bf16.msra.mxu0 0
  %78 = vmatprep.subr.bf16.mxu0 0
  %79 = vmatpush1.bf16.msra.mxu0 0
  %80 = vmatprep.subr.bf16.mxu0 0
  %81 = vmatpush1.bf16.msra.mxu0 0
  %82 = vmatprep.subr.bf16.mxu0 0
  %83 = vmatpush1.bf16.msra.mxu0 0
  %84 = vmatprep.subr.bf16.mxu0 0
  %85 = vmatpush1.bf16.msra.mxu0 0
  %86 = vmatprep.mubr.bf16.mxu0 0
  %87 = vmatmul.mubr.bf16.gmra.mrb[0].mxu0 %v45
  %v88 = vpop.f32.mrb[0].mxu0
  %v89 = vadd.f32 %v31, %v88
  %v90 = vpop.f32.mrb[0].mxu0
  %v91 = vpop.f32.mrb[0].mxu0
  %v92 = vadd.f32 %v31, %v91
  %v93 = vpop.f32.mrb[0].mxu0
  %94 = vmatprep.mubr.bf16.mxu0 0
  %95 = vmatmul.mubr.bf16.gmra.mrb[0].mxu0 %v48
  %v96 = vpop.f32.mrb[0].mxu0
  %v97 = vadd.f32 %v31, %v96
  %v98 = vpop.f32.mrb[0].mxu0
  %v99 = vpop.f32.mrb[0].mxu0
  %v100 = vadd.f32 %v31, %v99
  %v101 = vpop.f32.mrb[0].mxu0
  %102 = vdwg.mxu0
  %vm103 = vcmask 261120
  %v104 = vsel %vm103, %v89, 0.0
  %105 = vadd.xlane.f32.xlu0 %v104
  %v106 = vpop.xlane.xlu0 %105
  %v107 = vsel %vm103, %v92, 0.0
  %108 = vadd.xlane.f32.xlu0 %v107
  %v109 = vpop.xlane.xlu0 %108
  %v110 = vsel %vm103, %v97, 0.0
  %111 = vadd.xlane.f32.xlu0 %v110
  %v112 = vpop.xlane.xlu0 %111
  %v113 = vsel %vm103, %v100, 0.0
  %114 = vadd.xlane.f32.xlu0 %v113
  %v115 = vpop.xlane.xlu0 %114
  %v116 = vrcp.pop 32.0
  %v117 = vmul.f32 %v106, %v116
  %v118 = vmul.f32 %v109, %v116
  %v119 = vmul.f32 %v112, %v116
  %v120 = vmul.f32 %v115, %v116
  %v121 = vsub.f32 %v89, %v117
  %v122 = vsub.f32 %v92, %v118
  %v123 = vsub.f32 %v97, %v119
  %v124 = vsub.f32 %v100, %v120
  %v125 = vmul.f32 %v121, %v121
  %v126 = vmul.f32 %v122, %v122
  %v127 = vmul.f32 %v123, %v123
  %v128 = vmul.f32 %v124, %v124
  %v129 = vsel %vm103, %v125, 0.0
  %130 = vadd.xlane.f32.xlu0 %v129
  %v131 = vpop.xlane.xlu0 %130
  %v132 = vsel %vm103, %v126, 0.0
  %133 = vadd.xlane.f32.xlu0 %v132
  %v134 = vpop.xlane.xlu0 %133
  %v135 = vsel %vm103, %v127, 0.0
  %136 = vadd.xlane.f32.xlu0 %v135
  %v137 = vpop.xlane.xlu0 %136
  %v138 = vsel %vm103, %v128, 0.0
  %139 = vadd.xlane.f32.xlu0 %v138
  %v140 = vpop.xlane.xlu0 %139
  %v141 = vmul.f32 %v131, %v116
  %v142 = vmul.f32 %v134, %v116
  %v143 = vmul.f32 %v137, %v116
  %v144 = vmul.f32 %v140, %v116
  %v145 = vadd.f32 %v141, 1e-05
  %v146 = vadd.f32 %v142, 1e-05
  %v147 = vadd.f32 %v143, 1e-05
  %v148 = vadd.f32 %v144, 1e-05
  %v149 = vrsqrt.pop %v145
  %v150 = vrsqrt.pop %v146
  %v151 = vrsqrt.pop %v147
  %v152 = vrsqrt.pop %v148
  %v153 = vmul.f32 %v121, %v149
  %v154 = vmul.f32 %v122, %v150
  %v155 = vmul.f32 %v123, %v151
  %v156 = vmul.f32 %v124, %v152
  %v157 = vld [vmem:[%s3] sm:$0x1]
  %v159 = vlaneseq
  %v160 = vshrl.u32 %v159, 7
  %v161 = vsub.s32 0, %v160
  %v162 = vrot.slane %v157, %v161
  %v164 = vmul.f32 %v153, %v162
  %v165 = vmul.f32 %v154, %v162
  %v166 = vmul.f32 %v155, %v162
  %v167 = vmul.f32 %v156, %v162
  %v168 = vld [vmem:[%s4] sm:$0x1]
  %v170 = vlaneseq
  %v171 = vshrl.u32 %v170, 7
  %v172 = vsub.s32 0, %v171
  %v173 = vrot.slane %v168, %v172
  %v175 = vadd.f32 %v164, %v173
  %v176 = vadd.f32 %v165, %v173
  %v177 = vadd.f32 %v166, %v173
  %v178 = vadd.f32 %v167, %v173
  %v179 = vmul.f32 %v175, 0.5
  %v180 = vmul.f32 %v176, 0.5
  %v181 = vmul.f32 %v177, 0.5
  %v182 = vmul.f32 %v178, 0.5
  %v183 = vmul.f32 %v175, 0.70710677
  %v184 = vmul.f32 %v176, 0.70710677
  %v185 = vmul.f32 %v177, 0.70710677
  %v186 = vmul.f32 %v178, 0.70710677
  %v187 = vand.u32 2147483647, %v183
  %v188 = vand.u32 2147483647, %v184
  %v189 = vand.u32 2147483647, %v185
  %v190 = vand.u32 2147483647, %v186
  %v191 = vmul.f32 %v187, 0.3275911
  %v192 = vmul.f32 %v188, 0.3275911
  %v193 = vmul.f32 %v189, 0.3275911
  %v194 = vmul.f32 %v190, 0.3275911
  %v195 = vadd.f32 %v191, 1.0
  %v196 = vadd.f32 %v192, 1.0
  %v197 = vadd.f32 %v193, 1.0
  %v198 = vadd.f32 %v194, 1.0
  %v199 = vrcp.pop %v195
  %v200 = vmul.f32 1.0, %v199
  %v201 = vrcp.pop %v196
  %v202 = vmul.f32 1.0, %v201
  %v203 = vrcp.pop %v197
  %v204 = vmul.f32 1.0, %v203
  %v205 = vrcp.pop %v198
  %v206 = vmul.f32 1.0, %v205
  %v207 = vmul.f32 %v200, 1.0614054
  %v208 = vmul.f32 %v202, 1.0614054
  %v209 = vmul.f32 %v204, 1.0614054
  %v210 = vmul.f32 %v206, 1.0614054
  %v211 = vadd.f32 %v207, -1.4531521
  %v212 = vadd.f32 %v208, -1.4531521
  %v213 = vadd.f32 %v209, -1.4531521
  %v214 = vadd.f32 %v210, -1.4531521
  %v215 = vmul.f32 %v200, %v211
  %v216 = vmul.f32 %v202, %v212
  %v217 = vmul.f32 %v204, %v213
  %v218 = vmul.f32 %v206, %v214
  %v219 = vadd.f32 %v215, 1.4214138
  %v220 = vadd.f32 %v216, 1.4214138
  %v221 = vadd.f32 %v217, 1.4214138
  %v222 = vadd.f32 %v218, 1.4214138
  %v223 = vmul.f32 %v200, %v219
  %v224 = vmul.f32 %v202, %v220
  %v225 = vmul.f32 %v204, %v221
  %v226 = vmul.f32 %v206, %v222
  %v227 = vadd.f32 %v223, -0.28449672
  %v228 = vadd.f32 %v224, -0.28449672
  %v229 = vadd.f32 %v225, -0.28449672
  %v230 = vadd.f32 %v226, -0.28449672
  %v231 = vmul.f32 %v200, %v227
  %v232 = vmul.f32 %v202, %v228
  %v233 = vmul.f32 %v204, %v229
  %v234 = vmul.f32 %v206, %v230
  %v235 = vadd.f32 %v231, 0.2548296
  %v236 = vadd.f32 %v232, 0.2548296
  %v237 = vadd.f32 %v233, 0.2548296
  %v238 = vadd.f32 %v234, 0.2548296
  %v239 = vmul.f32 %v200, %v235
  %v240 = vmul.f32 %v202, %v236
  %v241 = vmul.f32 %v204, %v237
  %v242 = vmul.f32 %v206, %v238
  %v243 = vsub.f32 0.0, %v187
  %v244 = vsub.f32 0.0, %v188
  %v245 = vsub.f32 0.0, %v189
  %v246 = vsub.f32 0.0, %v190
  %v247 = vmul.f32 %v243, %v187
  %v248 = vmul.f32 %v244, %v188
  %v249 = vmul.f32 %v245, %v189
  %v250 = vmul.f32 %v246, %v190
  %v251 = vmul.f32 %v247, 1.442695
  %v252 = vpow.pop %v251
  %v253 = vmul.f32 %v248, 1.442695
  %v254 = vpow.pop %v253
  %v255 = vmul.f32 %v249, 1.442695
  %v256 = vpow.pop %v255
  %v257 = vmul.f32 %v250, 1.442695
  %v258 = vpow.pop %v257
  %v259 = vmul.f32 %v239, %v252
  %v260 = vmul.f32 %v240, %v254
  %v261 = vmul.f32 %v241, %v256
  %v262 = vmul.f32 %v242, %v258
  %v263 = vsub.f32 1.0, %v259
  %v264 = vsub.f32 1.0, %v260
  %v265 = vsub.f32 1.0, %v261
  %v266 = vsub.f32 1.0, %v262
  %vm267 = vcmp.lt.f32.partialorder %v183, 0.0
  %vm268 = vcmp.lt.f32.partialorder %v184, 0.0
  %vm269 = vcmp.lt.f32.partialorder %v185, 0.0
  %vm270 = vcmp.lt.f32.partialorder %v186, 0.0
  %v271 = vsub.f32 0.0, %v263
  %v272 = vsub.f32 0.0, %v264
  %v273 = vsub.f32 0.0, %v265
  %v274 = vsub.f32 0.0, %v266
  %v275 = vsel %vm267, %v271, %v263
  %v276 = vsel %vm268, %v272, %v264
  %v277 = vsel %vm269, %v273, %v265
  %v278 = vsel %vm270, %v274, %v266
  %v279 = vadd.f32 %v275, 1.0
  %v280 = vadd.f32 %v276, 1.0
  %v281 = vadd.f32 %v277, 1.0
  %v282 = vadd.f32 %v278, 1.0
  %v283 = vmul.f32 %v179, %v279
  %v284 = vmul.f32 %v180, %v280
  %v285 = vmul.f32 %v181, %v281
  %v286 = vmul.f32 %v182, %v282
  %287 = vst.msk [vmem:[%s5] sm:$0xff] %vm103, %v283
  %288 = vst.msk [vmem:[%s5 + $0x8] sm:$0xff] %vm103, %v284
  %289 = vst.msk [vmem:[%s5 + $0x10] sm:$0xff] %vm103, %v285
  %290 = vst.msk [vmem:[%s5 + $0x18] sm:$0xff] %vm103, %v286
  // Predicated region
  $region22: #{conv_trans_block.10} parent=0 // pred_check
    _
  $region23: #{conv_trans_block.10} parent=0 // pred_check_branch
    %292 = sbr.rel (0) target = $region25
  $region24: #{conv_trans_block.10} parent=0 // pred_region
    _
  $region25: #{conv_trans_block.10} parent=0 // pred_fallthru
    _
  // Predicated region
  $region26: #{conv_trans_block.10} parent=0 // pred_check
    _
  $region27: #{conv_trans_block.10} parent=0 // pred_check_branch
    %294 = sbr.rel (0) target = $region29
  $region28: #{conv_trans_block.10} parent=0 // pred_region
    _
  $region29: #{conv_trans_block.10} parent=0 // pred_fallthru
    _

// kernel: conv_trans_block.11
$region0: #{conv_trans_block.11}
  #allocation0 [shape = 'u32[]', space=smem, size = 0x4, offset = 0x4, fixed_abs, tag = 'smem constant byte address 0x4 - core index']
  #allocation1 [shape = 'u32[144,128]{1,0:T(1,128)}', space=vmem, size = 0x12000, scoped, tag = 'internal scratch']
  %s0 = inlined_call_operand.vmem [shape: f32[34,32], index: 0, kind: input, shape index: {}]
  %s1 = inlined_call_operand.vmem [shape: bf16[32,96], index: 1, kind: input, shape index: {}]
  %s2 = inlined_call_operand.vmem [shape: f32[1,96], index: 2, kind: input, shape index: {}]
  %s3 = inlined_call_operand.vmem [shape: f32[1,32], index: 3, kind: input, shape index: {}]
  %s4 = inlined_call_operand.vmem [shape: f32[1,32], index: 4, kind: input, shape index: {}]
  %s5 = inlined_call_operand.vmem [shape: bf16[34,96], index: 5, kind: output, shape index: {}]
  %s6 = sld [smem:[#allocation0]]
  $region30: #{conv_trans_block.11} parent=0
    _
  %s8 = ssub.s32 1, %s6
  %s9 = scalar_select 0, %s8, %s6
  // Predicated region
  $region2: #{conv_trans_block.11} parent=0 // pred_check
    _
  $region3: #{conv_trans_block.11} parent=0 // pred_check_branch
    %11 = sbr.rel (0) target = $region5
  $region4: #{conv_trans_block.11} parent=0 // pred_region
    _
  $region5: #{conv_trans_block.11} parent=0 // pred_fallthru
    _
  // Predicated region
  $region6: #{conv_trans_block.11} parent=0 // pred_check
    _
  $region7: #{conv_trans_block.11} parent=0 // pred_check_branch
    %13 = sbr.rel (0) target = $region9
  $region8: #{conv_trans_block.11} parent=0 // pred_region
    _
  $region9: #{conv_trans_block.11} parent=0 // pred_fallthru
    _
  // Predicated region
  $region10: #{conv_trans_block.11} parent=0 // pred_check
    _
  $region11: #{conv_trans_block.11} parent=0 // pred_check_branch
    %15 = sbr.rel (0) target = $region13
  $region12: #{conv_trans_block.11} parent=0 // pred_region
    _
  $region13: #{conv_trans_block.11} parent=0 // pred_fallthru
    _
  // Predicated region
  $region14: #{conv_trans_block.11} parent=0 // pred_check
    _
  $region15: #{conv_trans_block.11} parent=0 // pred_check_branch
    %17 = sbr.rel (0) target = $region17
  $region16: #{conv_trans_block.11} parent=0 // pred_region
    _
  $region17: #{conv_trans_block.11} parent=0 // pred_fallthru
    _
  // Predicated region
  $region18: #{conv_trans_block.11} parent=0 // pred_check
    _
  $region19: #{conv_trans_block.11} parent=0 // pred_check_branch
    %19 = sbr.rel (0) target = $region21
  $region20: #{conv_trans_block.11} parent=0 // pred_region
    _
  $region21: #{conv_trans_block.11} parent=0 // pred_fallthru
    _
  %v21 = vld [vmem:[%s0] sm:$0xff]
  %v22 = vld [vmem:[%s0 + $0x8] sm:$0xff]
  %v23 = vld [vmem:[%s0 + $0x10] sm:$0xff]
  %v24 = vld [vmem:[%s0 + $0x18] sm:$0xff]
  %v25 = vld [vmem:[%s0 + $0x20] sm:$0xff]
  %vm26 = vcmask 261120
  %v27 = vsel %vm26, %v21, 0.0
  %28 = vadd.xlane.f32.xlu0 %v27
  %v29 = vpop.xlane.xlu0 %28
  %v30 = vsel %vm26, %v22, 0.0
  %31 = vadd.xlane.f32.xlu0 %v30
  %v32 = vpop.xlane.xlu0 %31
  %v33 = vsel %vm26, %v23, 0.0
  %34 = vadd.xlane.f32.xlu0 %v33
  %v35 = vpop.xlane.xlu0 %34
  %v36 = vsel %vm26, %v24, 0.0
  %37 = vadd.xlane.f32.xlu0 %v36
  %v38 = vpop.xlane.xlu0 %37
  %v39 = vsel %vm26, %v25, 0.0
  %40 = vadd.xlane.f32.xlu0 %v39
  %v41 = vpop.xlane.xlu0 %40
  %v42 = vrcp.pop 32.0
  %v43 = vmul.f32 %v29, %v42
  %v44 = vmul.f32 %v32, %v42
  %v45 = vmul.f32 %v35, %v42
  %v46 = vmul.f32 %v38, %v42
  %v47 = vmul.f32 %v41, %v42
  %v48 = vsub.f32 %v21, %v43
  %v49 = vsub.f32 %v22, %v44
  %v50 = vsub.f32 %v23, %v45
  %v51 = vsub.f32 %v24, %v46
  %v52 = vsub.f32 %v25, %v47
  %v53 = vmul.f32 %v48, %v48
  %v54 = vmul.f32 %v49, %v49
  %v55 = vmul.f32 %v50, %v50
  %v56 = vmul.f32 %v51, %v51
  %v57 = vmul.f32 %v52, %v52
  %v58 = vsel %vm26, %v53, 0.0
  %59 = vadd.xlane.f32.xlu0 %v58
  %v60 = vpop.xlane.xlu0 %59
  %v61 = vsel %vm26, %v54, 0.0
  %62 = vadd.xlane.f32.xlu0 %v61
  %v63 = vpop.xlane.xlu0 %62
  %v64 = vsel %vm26, %v55, 0.0
  %65 = vadd.xlane.f32.xlu0 %v64
  %v66 = vpop.xlane.xlu0 %65
  %v67 = vsel %vm26, %v56, 0.0
  %68 = vadd.xlane.f32.xlu0 %v67
  %v69 = vpop.xlane.xlu0 %68
  %v70 = vsel %vm26, %v57, 0.0
  %71 = vadd.xlane.f32.xlu0 %v70
  %v72 = vpop.xlane.xlu0 %71
  %v73 = vmul.f32 %v60, %v42
  %v74 = vmul.f32 %v63, %v42
  %v75 = vmul.f32 %v66, %v42
  %v76 = vmul.f32 %v69, %v42
  %v77 = vmul.f32 %v72, %v42
  %v78 = vadd.f32 %v73, 1e-05
  %v79 = vadd.f32 %v74, 1e-05
  %v80 = vadd.f32 %v75, 1e-05
  %v81 = vadd.f32 %v76, 1e-05
  %v82 = vadd.f32 %v77, 1e-05
  %v83 = vrsqrt.pop %v78
  %v84 = vrsqrt.pop %v79
  %v85 = vrsqrt.pop %v80
  %v86 = vrsqrt.pop %v81
  %v87 = vrsqrt.pop %v82
  %v88 = vmul.f32 %v48, %v83
  %v89 = vmul.f32 %v49, %v84
  %v90 = vmul.f32 %v50, %v85
  %v91 = vmul.f32 %v51, %v86
  %v92 = vmul.f32 %v52, %v87
  %v93 = vld [vmem:[%s3] sm:$0x1]
  %v95 = vlaneseq
  %v96 = vshrl.u32 %v95, 7
  %v97 = vsub.s32 0, %v96
  %v98 = vrot.slane %v93, %v97
  %v100 = vmul.f32 %v88, %v98
  %v101 = vmul.f32 %v89, %v98
  %v102 = vmul.f32 %v90, %v98
  %v103 = vmul.f32 %v91, %v98
  %v104 = vmul.f32 %v92, %v98
  %v105 = vld [vmem:[%s4] sm:$0x1]
  %v107 = vlaneseq
  %v108 = vshrl.u32 %v107, 7
  %v109 = vsub.s32 0, %v108
  %v110 = vrot.slane %v105, %v109
  %v112 = vadd.f32 %v100, %v110
  %v113 = vadd.f32 %v101, %v110
  %v114 = vadd.f32 %v102, %v110
  %v115 = vadd.f32 %v103, %v110
  %v116 = vadd.f32 %v104, %v110
  %v117 = vpack.c.bf16 %v113, %v112
  %v118 = vpack.c.bf16 %v115, %v114
  %v119 = vpack.c.bf16 %v116, %v116
  %v120 = vld [vmem:[%s1] sm:$0xf]
  %v121 = vld [vmem:[%s1 + $0x4] sm:$0xf]
  %v122 = vld [vmem:[%s1 + $0x8] sm:$0xf]
  %v123 = vld [vmem:[%s1 + $0xc] sm:$0xf]
  %v124 = vld [vmem:[%s2] sm:$0x1]
  %v126 = vlaneseq
  %v127 = vshrl.u32 %v126, 7
  %v128 = vsub.s32 0, %v127
  %v129 = vrot.slane %v124, %v128
  %v135 = vunpack.c.l.b16 %v120
  %v136 = vunpack.c.l.b16 %v121
  %v137 = vunpack.c.l.b16 %v122
  %v138 = vunpack.c.l.b16 %v123
  %v139 = vpack.c.b16 %v136, %v135
  %v140 = vpack.c.b16 %v138, %v137
  %v144 = vsel %vm26, %v117, 0
  %v147 = vsel %vm26, %v118, 0
  %v150 = vsel %vm26, %v119, 0
  %152 = vmatprep.subr.bf16.mxu0 0
  %153 = vmatpush1.bf16.msra.mxu0 %v139
  %154 = vmatprep.subr.bf16.mxu0 0
  %155 = vmatpush1.bf16.msra.mxu0 %v140
  %156 = vmatprep.subr.bf16.mxu0 0
  %157 = vmatpush1.bf16.msra.mxu0 0
  %158 = vmatprep.subr.bf16.mxu0 0
  %159 = vmatpush1.bf16.msra.mxu0 0
  %160 = vmatprep.subr.bf16.mxu0 0
  %161 = vmatpush1.bf16.msra.mxu0 0
  %162 = vmatprep.subr.bf16.mxu0 0
  %163 = vmatpush1.bf16.msra.mxu0 0
  %164 = vmatprep.subr.bf16.mxu0 0
  %165 = vmatpush1.bf16.msra.mxu0 0
  %166 = vmatprep.subr.bf16.mxu0 0
  %167 = vmatpush1.bf16.msra.mxu0 0
  %168 = vmatprep.subr.bf16.mxu0 0
  %169 = vmatpush1.bf16.msra.mxu0 0
  %170 = vmatprep.subr.bf16.mxu0 0
  %171 = vmatpush1.bf16.msra.mxu0 0
  %172 = vmatprep.subr.bf16.mxu0 0
  %173 = vmatpush1.bf16.msra.mxu0 0
  %174 = vmatprep.subr.bf16.mxu0 0
  %175 = vmatpush1.bf16.msra.mxu0 0
  %176 = vmatprep.subr.bf16.mxu0 0
  %177 = vmatpush1.bf16.msra.mxu0 0
  %178 = vmatprep.subr.bf16.mxu0 0
  %179 = vmatpush1.bf16.msra.mxu0 0
  %180 = vmatprep.subr.bf16.mxu0 0
  %181 = vmatpush1.bf16.msra.mxu0 0
  %182 = vmatprep.subr.bf16.mxu0 0
  %183 = vmatpush1.bf16.msra.mxu0 0
  %184 = vmatprep.mubr.bf16.mxu0 0
  %185 = vmatmul.mubr.bf16.gmra.mrb[0].mxu0 %v144
  %v186 = vpop.f32.mrb[0].mxu0
  %v187 = vadd.f32 %v129, %v186
  %v188 = vpop.f32.mrb[0].mxu0
  %v189 = vpop.f32.mrb[0].mxu0
  %v190 = vadd.f32 %v129, %v189
  %v191 = vpop.f32.mrb[0].mxu0
  %192 = vmatprep.mubr.bf16.mxu0 0
  %193 = vmatmul.mubr.bf16.gmra.mrb[0].mxu0 %v147
  %v194 = vpop.f32.mrb[0].mxu0
  %v195 = vadd.f32 %v129, %v194
  %v196 = vpop.f32.mrb[0].mxu0
  %v197 = vpop.f32.mrb[0].mxu0
  %v198 = vadd.f32 %v129, %v197
  %v199 = vpop.f32.mrb[0].mxu0
  %200 = vmatprep.mubr.bf16.mxu0 0
  %201 = vmatmul.mubr.bf16.gmra.mrb[0].mxu0 %v150
  %v202 = vpop.f32.mrb[0].mxu0
  %v203 = vadd.f32 %v129, %v202
  %v204 = vpop.f32.mrb[0].mxu0
  %v205 = vpop.f32.mrb[0].mxu0
  %v206 = vpop.f32.mrb[0].mxu0
  %207 = vdwg.mxu0
  %v208 = vpack.c.bf16 %v190, %v187
  %v209 = vpack.c.bf16 %v198, %v195
  %v210 = vpack.c.bf16 %v203, %v203
  %v214 = vunpack.c.l.b16 %v208
  %v215 = vunpack.c.h.b16 %v208
  %v216 = vunpack.c.l.b16 %v209
  %v217 = vunpack.c.h.b16 %v209
  %v218 = vunpack.c.l.b16 %v210
  %v219 = vpack.c.b16 %v214, %v214
  %v220 = vpack.c.b16 %v215, %v215
  %v221 = vpack.c.b16 %v216, %v216
  %v222 = vpack.c.b16 %v217, %v217
  %v223 = vpack.c.b16 %v218, %v218
  %vm229 = vcmask 781312
  %230 = vst.msk [vmem:[%s5] sm:$0xf] %vm229, %v219
  %231 = vst.msk [vmem:[%s5 + $0x4] sm:$0xf] %vm229, %v220
  %232 = vst.msk [vmem:[%s5 + $0x8] sm:$0xf] %vm229, %v221
  %233 = vst.msk [vmem:[%s5 + $0xc] sm:$0xf] %vm229, %v222
  %234 = vst.msk [vmem:[%s5 + $0x10] sm:$0xf] %vm229, %v223
  // Predicated region
  $region22: #{conv_trans_block.11} parent=0 // pred_check
    _
  $region23: #{conv_trans_block.11} parent=0 // pred_check_branch
    %236 = sbr.rel (0) target = $region25
  $region24: #{conv_trans_block.11} parent=0 // pred_region
    _
  $region25: #{conv_trans_block.11} parent=0 // pred_fallthru
    _
  // Predicated region
  $region26: #{conv_trans_block.11} parent=0 // pred_check
    _
  $region27: #{conv_trans_block.11} parent=0 // pred_check_branch
    %238 = sbr.rel (0) target = $region29
  $region28: #{conv_trans_block.11} parent=0 // pred_region
    _
  $region29: #{conv_trans_block.11} parent=0 // pred_fallthru
    _

// kernel: conv_trans_block.9
$region0: #{conv_trans_block.9}
  #allocation0 [shape = 'u32[]', space=smem, size = 0x4, offset = 0x4, fixed_abs, tag = 'smem constant byte address 0x4 - core index']
  #allocation1 [shape = 'u32[144,128]{1,0:T(1,128)}', space=vmem, size = 0x12000, scoped, tag = 'internal scratch']
  #allocation2 [shape = 'f32[96,4]{1,0:T(8,128)}', space=vmem, size = 0xc000, scoped, tag = 'scratch operand']
  %s0 = inlined_call_operand.vmem [shape: f32[2,64,16], index: 0, kind: input, shape index: {}]
  %s1 = inlined_call_operand.vmem [shape: bf16[16,4], index: 1, kind: input, shape index: {}]
  %s2 = inlined_call_operand.vmem [shape: f32[1,4], index: 2, kind: input, shape index: {}]
  %s3 = inlined_call_operand.vmem [shape: bf16[36,4], index: 3, kind: input, shape index: {}]
  %s4 = inlined_call_operand.vmem [shape: f32[1,4], index: 4, kind: input, shape index: {}]
  %s5 = inlined_call_operand.vmem [shape: bf16[4,16], index: 5, kind: input, shape index: {}]
  %s6 = inlined_call_operand.vmem [shape: f32[1,16], index: 6, kind: input, shape index: {}]
  %s7 = inlined_call_operand.vmem [shape: f32[2,64,16], index: 7, kind: output, shape index: {0}]
  %s8 = inlined_call_operand.vmem [shape: f32[2,64,4], index: 8, kind: output, shape index: {1}]
  %9 = xla_tuple %s7, %s8
  %s10 = sld [smem:[#allocation0]]
  $region69: #{conv_trans_block.9} parent=0
    _
  %s12 = ssub.s32 1, %s10
  %s13 = scalar_select 0, %s12, %s10
  loop: start=0, step=1, limit=4
  $region2: #{conv_trans_block.9} parent=0 // loop_pre_header
    _
  $region3: #{conv_trans_block.9} parent=0 // loop_header
    %s15 = sphi 0, %s19
    %p16 = scmp.ge.s32.totalorder %s15, 4
    %s25 = sphi 0, %s27
    %s28 = sphi 0, %s25
    %s29 = sphi 0, %s28
    %s45 = sphi 0, %s29
    %s49 = sphi 0, %s49
    %s51 = sphi 0, %s49
    %s52 = sphi 0, %s51
    %s66 = sphi 0, %s52
    %s70 = sphi 0, %s70
    %s72 = sphi 0, %s70
    %s73 = sphi 0, %s72
    %s87 = sphi 0, %s73
    %s91 = sphi 0, %s91
    %s93 = sphi 0, %s91
    %s94 = sphi 0, %s93
    %s108 = sphi 0, %s94
    %s112 = sphi 0, %s112
    %s114 = sphi 0, %s112
    %s115 = sphi 0, %s114
    %s129 = sphi 0, %s115
    %s133 = sphi 0, %s133
    %s135 = sphi 0, %s133
    %s136 = sphi 0, %s135
    %s150 = sphi 0, %s136
    %s154 = sphi 0, %s154
    %s156 = sphi 0, %s154
    %s157 = sphi 0, %s156
    %s171 = sphi 0, %s157
    %s177 = sphi 0, %s179
    %s180 = sphi 0, %s177
    %s181 = sphi 0, %s180
    %s197 = sphi 0, %s181
    %s203 = sphi 0, %s205
    %s206 = sphi 0, %s203
    %s207 = sphi 0, %s206
    %s223 = sphi 0, %s207
  $region4: #{conv_trans_block.9} parent=0 // loop_header_branch
    %18 = sbr.rel (%p16) target = $region8
  $region5: #{conv_trans_block.9} parent=0 // loop_body
    %s20 = ssub.s32 %s15, 1
    %s21 = ssub.s32 %s15, 2
    %s22 = sadd.s32 %s15, 1
    %s23 = ssub.s32 %s15, %s22
    %p24 = scmp.eq.s32.totalorder %s23, 0
    %s26 = sadd.s32 %s25, 1
    %s27 = scalar_select %p24, %s25, %s26
    %p30 = pneg %p24
    %p31 = scmp.eq.s32.totalorder %s15, 1
    %p32 = por %p30, %p31
    %p33 = scmp.ne.s32.totalorder %s25, %s28
    %p34 = scmp.eq.s32.totalorder %s15, 0
    %p35 = por %p33, %p34
    %p36 = scmp.ne.s32.totalorder %s25, %s28
    %p37 = scmp.eq.s32.totalorder %s20, 1
    %p38 = por %p36, %p37
    %p39 = scmp.ne.s32.totalorder %s28, %s29
    %p40 = scmp.eq.s32.totalorder %s20, 0
    %p41 = por %p39, %p40
    %p42 = scmp.ne.s32.totalorder %s28, %s29
    %p43 = scmp.eq.s32.totalorder %s21, 1
    %p44 = por %p42, %p43
    %p46 = scmp.ne.s32.totalorder %s29, %s45
    %p47 = scmp.eq.s32.totalorder %s21, 0
    %p48 = por %p46, %p47
    %s50 = sadd.s32 %s49, 1
    %p53 = scmp.eq.s32.totalorder %s15, 1
    %p54 = scmp.ne.s32.totalorder %s49, %s51
    %p55 = scmp.eq.s32.totalorder %s15, 0
    %p56 = por %p54, %p55
    %p57 = scmp.ne.s32.totalorder %s49, %s51
    %p58 = scmp.eq.s32.totalorder %s20, 1
    %p59 = por %p57, %p58
    %p60 = scmp.ne.s32.totalorder %s51, %s52
    %p61 = scmp.eq.s32.totalorder %s20, 0
    %p62 = por %p60, %p61
    %p63 = scmp.ne.s32.totalorder %s51, %s52
    %p64 = scmp.eq.s32.totalorder %s21, 1
    %p65 = por %p63, %p64
    %p67 = scmp.ne.s32.totalorder %s52, %s66
    %p68 = scmp.eq.s32.totalorder %s21, 0
    %p69 = por %p67, %p68
    %s71 = sadd.s32 %s70, 1
    %p74 = scmp.eq.s32.totalorder %s15, 1
    %p75 = scmp.ne.s32.totalorder %s70, %s72
    %p76 = scmp.eq.s32.totalorder %s15, 0
    %p77 = por %p75, %p76
    %p78 = scmp.ne.s32.totalorder %s70, %s72
    %p79 = scmp.eq.s32.totalorder %s20, 1
    %p80 = por %p78, %p79
    %p81 = scmp.ne.s32.totalorder %s72, %s73
    %p82 = scmp.eq.s32.totalorder %s20, 0
    %p83 = por %p81, %p82
    %p84 = scmp.ne.s32.totalorder %s72, %s73
    %p85 = scmp.eq.s32.totalorder %s21, 1
    %p86 = por %p84, %p85
    %p88 = scmp.ne.s32.totalorder %s73, %s87
    %p89 = scmp.eq.s32.totalorder %s21, 0
    %p90 = por %p88, %p89
    %s92 = sadd.s32 %s91, 1
    %p95 = scmp.eq.s32.totalorder %s15, 1
    %p96 = scmp.ne.s32.totalorder %s91, %s93
    %p97 = scmp.eq.s32.totalorder %s15, 0
    %p98 = por %p96, %p97
    %p99 = scmp.ne.s32.totalorder %s91, %s93
    %p100 = scmp.eq.s32.totalorder %s20, 1
    %p101 = por %p99, %p100
    %p102 = scmp.ne.s32.totalorder %s93, %s94
    %p103 = scmp.eq.s32.totalorder %s20, 0
    %p104 = por %p102, %p103
    %p105 = scmp.ne.s32.totalorder %s93, %s94
    %p106 = scmp.eq.s32.totalorder %s21, 1
    %p107 = por %p105, %p106
    %p109 = scmp.ne.s32.totalorder %s94, %s108
    %p110 = scmp.eq.s32.totalorder %s21, 0
    %p111 = por %p109, %p110
    %s113 = sadd.s32 %s112, 1
    %p116 = scmp.eq.s32.totalorder %s15, 1
    %p117 = scmp.ne.s32.totalorder %s112, %s114
    %p118 = scmp.eq.s32.totalorder %s15, 0
    %p119 = por %p117, %p118
    %p120 = scmp.ne.s32.totalorder %s112, %s114
    %p121 = scmp.eq.s32.totalorder %s20, 1
    %p122 = por %p120, %p121
    %p123 = scmp.ne.s32.totalorder %s114, %s115
    %p124 = scmp.eq.s32.totalorder %s20, 0
    %p125 = por %p123, %p124
    %p126 = scmp.ne.s32.totalorder %s114, %s115
    %p127 = scmp.eq.s32.totalorder %s21, 1
    %p128 = por %p126, %p127
    %p130 = scmp.ne.s32.totalorder %s115, %s129
    %p131 = scmp.eq.s32.totalorder %s21, 0
    %p132 = por %p130, %p131
    %s134 = sadd.s32 %s133, 1
    %p137 = scmp.eq.s32.totalorder %s15, 1
    %p138 = scmp.ne.s32.totalorder %s133, %s135
    %p139 = scmp.eq.s32.totalorder %s15, 0
    %p140 = por %p138, %p139
    %p141 = scmp.ne.s32.totalorder %s133, %s135
    %p142 = scmp.eq.s32.totalorder %s20, 1
    %p143 = por %p141, %p142
    %p144 = scmp.ne.s32.totalorder %s135, %s136
    %p145 = scmp.eq.s32.totalorder %s20, 0
    %p146 = por %p144, %p145
    %p147 = scmp.ne.s32.totalorder %s135, %s136
    %p148 = scmp.eq.s32.totalorder %s21, 1
    %p149 = por %p147, %p148
    %p151 = scmp.ne.s32.totalorder %s136, %s150
    %p152 = scmp.eq.s32.totalorder %s21, 0
    %p153 = por %p151, %p152
    %s155 = sadd.s32 %s154, 1
    %p158 = scmp.eq.s32.totalorder %s15, 1
    %p159 = scmp.ne.s32.totalorder %s154, %s156
    %p160 = scmp.eq.s32.totalorder %s15, 0
    %p161 = por %p159, %p160
    %p162 = scmp.ne.s32.totalorder %s154, %s156
    %p163 = scmp.eq.s32.totalorder %s20, 1
    %p164 = por %p162, %p163
    %p165 = scmp.ne.s32.totalorder %s156, %s157
    %p166 = scmp.eq.s32.totalorder %s20, 0
    %p167 = por %p165, %p166
    %p168 = scmp.ne.s32.totalorder %s156, %s157
    %p169 = scmp.eq.s32.totalorder %s21, 1
    %p170 = por %p168, %p169
    %p172 = scmp.ne.s32.totalorder %s157, %s171
    %p173 = scmp.eq.s32.totalorder %s21, 0
    %p174 = por %p172, %p173
    %s175 = ssub.s32 %s15, %s22
    %p176 = scmp.eq.s32.totalorder %s175, 0
    %s178 = sadd.s32 %s177, 1
    %s179 = scalar_select %p176, %s177, %s178
    %p182 = pneg %p176
    %p183 = scmp.eq.s32.totalorder %s15, 1
    %p184 = por %p182, %p183
    %p185 = scmp.ne.s32.totalorder %s177, %s180
    %p186 = scmp.eq.s32.totalorder %s15, 0
    %p187 = por %p185, %p186
    %p188 = scmp.ne.s32.totalorder %s177, %s180
    %p189 = scmp.eq.s32.totalorder %s20, 1
    %p190 = por %p188, %p189
    %p191 = scmp.ne.s32.totalorder %s180, %s181
    %p192 = scmp.eq.s32.totalorder %s20, 0
    %p193 = por %p191, %p192
    %p194 = scmp.ne.s32.totalorder %s180, %s181
    %p195 = scmp.eq.s32.totalorder %s21, 1
    %p196 = por %p194, %p195
    %p198 = scmp.ne.s32.totalorder %s181, %s197
    %p199 = scmp.eq.s32.totalorder %s21, 0
    %p200 = por %p198, %p199
    %s201 = ssub.s32 %s15, %s22
    %p202 = scmp.eq.s32.totalorder %s201, 0
    %s204 = sadd.s32 %s203, 1
    %s205 = scalar_select %p202, %s203, %s204
    %p208 = pneg %p202
    %p209 = scmp.eq.s32.totalorder %s15, 1
    %p210 = por %p208, %p209
    %p211 = scmp.ne.s32.totalorder %s203, %s206
    %p212 = scmp.eq.s32.totalorder %s15, 0
    %p213 = por %p211, %p212
    %p214 = scmp.ne.s32.totalorder %s203, %s206
    %p215 = scmp.eq.s32.totalorder %s20, 1
    %p216 = por %p214, %p215
    %p217 = scmp.ne.s32.totalorder %s206, %s207
    %p218 = scmp.eq.s32.totalorder %s20, 0
    %p219 = por %p217, %p218
    %p220 = scmp.ne.s32.totalorder %s206, %s207
    %p221 = scmp.eq.s32.totalorder %s21, 1
    %p222 = por %p220, %p221
    %p224 = scmp.ne.s32.totalorder %s207, %s223
    %p225 = scmp.eq.s32.totalorder %s21, 0
    %p226 = por %p224, %p225
    %p227 = scmp.le.s32.totalorder 1, %s15
    %p228 = scmp.lt.s32.totalorder %s15, 3
    %p229 = pnand %p227, %p228
    %p230 = pneg %p229
    // Predicated region
    $region9: #{conv_trans_block.9} parent=5 // pred_check
      _
    $region10: #{conv_trans_block.9} parent=5 // pred_check_branch
      %232 = sbr.rel (%p229) target = $region12
    $region11: #{conv_trans_block.9} parent=5 // pred_region
      %s233 = ssub.s32 %s15, 1
      // Predicated region
      $region13: #{conv_trans_block.9} parent=11 // pred_check
        %p234 = pneg %p62
      $region14: #{conv_trans_block.9} parent=11 // pred_check_branch
        %236 = sbr.rel (%p234) target = $region16
      $region15: #{conv_trans_block.9} parent=11 // pred_region
        _
      $region16: #{conv_trans_block.9} parent=11 // pred_fallthru
        _
      // Predicated region
      $region17: #{conv_trans_block.9} parent=11 // pred_check
        %p237 = pneg %p83
      $region18: #{conv_trans_block.9} parent=11 // pred_check_branch
        %239 = sbr.rel (%p237) target = $region20
      $region19: #{conv_trans_block.9} parent=11 // pred_region
        _
      $region20: #{conv_trans_block.9} parent=11 // pred_fallthru
        _
      // Predicated region
      $region21: #{conv_trans_block.9} parent=11 // pred_check
        %p240 = pneg %p104
      $region22: #{conv_trans_block.9} parent=11 // pred_check_branch
        %242 = sbr.rel (%p240) target = $region24
      $region23: #{conv_trans_block.9} parent=11 // pred_region
        _
      $region24: #{conv_trans_block.9} parent=11 // pred_fallthru
        _
      // Predicated region
      $region25: #{conv_trans_block.9} parent=11 // pred_check
        %p243 = pneg %p125
      $region26: #{conv_trans_block.9} parent=11 // pred_check_branch
        %245 = sbr.rel (%p243) target = $region28
      $region27: #{conv_trans_block.9} parent=11 // pred_region
        _
      $region28: #{conv_trans_block.9} parent=11 // pred_fallthru
        _
      // Predicated region
      $region29: #{conv_trans_block.9} parent=11 // pred_check
        %p246 = pneg %p146
      $region30: #{conv_trans_block.9} parent=11 // pred_check_branch
        %248 = sbr.rel (%p246) target = $region32
      $region31: #{conv_trans_block.9} parent=11 // pred_region
        _
      $region32: #{conv_trans_block.9} parent=11 // pred_fallthru
        _
      // Predicated region
      $region33: #{conv_trans_block.9} parent=11 // pred_check
        %p249 = pneg %p167
      $region34: #{conv_trans_block.9} parent=11 // pred_check_branch
        %251 = sbr.rel (%p249) target = $region36
      $region35: #{conv_trans_block.9} parent=11 // pred_region
        _
      $region36: #{conv_trans_block.9} parent=11 // pred_fallthru
        _
    $region12: #{conv_trans_block.9} parent=5 // pred_fallthru
      _
    %p252 = scmp.lt.s32.totalorder %s15, 2
    // Predicated region
    $region37: #{conv_trans_block.9} parent=5 // pred_check
      %p253 = pneg %p252
    $region38: #{conv_trans_block.9} parent=5 // pred_check_branch
      %255 = sbr.rel (%p253) target = $region40
    $region39: #{conv_trans_block.9} parent=5 // pred_region
      // Predicated region
      $region41: #{conv_trans_block.9} parent=39 // pred_check
        %p256 = pneg %p35
      $region42: #{conv_trans_block.9} parent=39 // pred_check_branch
        %258 = sbr.rel (%p256) target = $region44
      $region43: #{conv_trans_block.9} parent=39 // pred_region
        %p259 = scmp.lt.s32.totalorder %s15, 1
        %s260 = scalar_select %p259, %s15, 1
        %s261 = smul.addr %s260, 8
        %s262 = smul.addr %s261, 8
        %s263 = scalar_lea.vmem %s0, %s262
      $region44: #{conv_trans_block.9} parent=39 // pred_fallthru
        _
    $region40: #{conv_trans_block.9} parent=5 // pred_fallthru
      _
    %p264 = scmp.le.s32.totalorder 1, %s15
    %p265 = scmp.lt.s32.totalorder %s15, 3
    %p266 = pnand %p264, %p265
    %p267 = pneg %p266
    // Predicated region
    $region45: #{conv_trans_block.9} parent=5 // pred_check
      _
    $region46: #{conv_trans_block.9} parent=5 // pred_check_branch
      %269 = sbr.rel (%p266) target = $region48
    $region47: #{conv_trans_block.9} parent=5 // pred_region
      %s270 = ssub.s32 %s15, 1
      %p271 = scmp.lt.s32.totalorder %s20, 1
      %s272 = scalar_select %p271, %s20, 1
      %s273 = smul.addr %s272, 8
      %s274 = smul.addr %s273, 8
      %s275 = scalar_lea.vmem %s0, %s274
      %p276 = pneg %p41
      %p277 = pneg %p38
      %p278 = pneg %p62
      %p279 = pneg %p59
      %p280 = pneg %p83
      %p281 = pneg %p80
      %p282 = pneg %p104
      %p283 = pneg %p101
      %p284 = pneg %p125
      %p285 = pneg %p122
      %p286 = pneg %p146
      %p287 = pneg %p143
      %p288 = pneg %p167
      %p289 = pneg %p164
      %p290 = pneg %p193
      %p291 = pneg %p190
      %p292 = scmp.lt.s32.totalorder %s20, 1
      %s293 = scalar_select %p292, %s20, 1
      %s294 = smul.addr %s293, 8
      %s295 = smul.addr %s294, 8
      %s296 = scalar_lea.vmem %s7, %s295
      %p297 = pneg %p219
      %p298 = pneg %p216
      %p299 = scmp.lt.s32.totalorder %s20, 1
      %s300 = scalar_select %p299, %s20, 1
      %s301 = smul.addr %s300, 8
      %s302 = smul.addr %s301, 8
      %s303 = scalar_lea.vmem %s8, %s302
      %p304 = scmp.lt.s32.totalorder %s20, 1
      %s305 = scalar_select %p304, %s20, 1
      %s306 = smul.addr %s305, 8
      %s307 = smul.addr %s306, 8
      %s308 = scalar_lea.vmem %s0, %s307
      %p309 = scmp.lt.s32.totalorder %s20, 1
      %s310 = scalar_select %p309, %s20, 1
      %s311 = smul.addr %s310, 8
      %s312 = smul.addr %s311, 8
      %s313 = scalar_lea.vmem %s7, %s312
      %p314 = scmp.lt.s32.totalorder %s20, 1
      %s315 = scalar_select %p314, %s20, 1
      %s316 = smul.addr %s315, 8
      %s317 = smul.addr %s316, 8
      %s318 = scalar_lea.vmem %s8, %s317
      %v320 = vld [vmem:[%s308] sm:$0xff]
      %v321 = vld [vmem:[%s308 + $0x8] sm:$0xff]
      %v322 = vld [vmem:[%s308 + $0x10] sm:$0xff]
      %v323 = vld [vmem:[%s308 + $0x18] sm:$0xff]
      %v324 = vld [vmem:[%s308 + $0x20] sm:$0xff]
      %v325 = vld [vmem:[%s308 + $0x28] sm:$0xff]
      %v326 = vld [vmem:[%s308 + $0x30] sm:$0xff]
      %v327 = vld [vmem:[%s308 + $0x38] sm:$0xff]
      %v328 = vpack.c.bf16 %v321, %v320
      %v329 = vpack.c.bf16 %v323, %v322
      %v330 = vpack.c.bf16 %v325, %v324
      %v331 = vpack.c.bf16 %v327, %v326
      %v332 = vld [vmem:[%s1] sm:$0xf]
      %v333 = vld [vmem:[%s1 + $0x4] sm:$0xf]
      %v334 = vld [vmem:[%s2] sm:$0x1]
      %v336 = vlaneseq
      %v337 = vshrl.u32 %v336, 7
      %v338 = vsub.s32 0, %v337
      %v339 = vrot.slane %v334, %v338
      %v343 = vunpack.c.l.b16 %v332
      %v344 = vunpack.c.l.b16 %v333
      %v345 = vpack.c.b16 %v344, %v343
      %vm347 = vcmask 130048
      %v349 = vsel %vm347, %v328, 0
      %v352 = vsel %vm347, %v329, 0
      %v355 = vsel %vm347, %v330, 0
      %v358 = vsel %vm347, %v331, 0
      %360 = vmatprep.subr.bf16.mxu0 0
      %361 = vmatpush1.bf16.msra.mxu0 %v345
      %362 = vmatprep.subr.bf16.mxu0 0
      %363 = vmatpush1.bf16.msra.mxu0 0
      %364 = vmatprep.subr.bf16.mxu0 0
      %365 = vmatpush1.bf16.msra.mxu0 0
      %366 = vmatprep.subr.bf16.mxu0 0
      %367 = vmatpush1.bf16.msra.mxu0 0
      %368 = vmatprep.subr.bf16.mxu0 0
      %369 = vmatpush1.bf16.msra.mxu0 0
      %370 = vmatprep.subr.bf16.mxu0 0
      %371 = vmatpush1.bf16.msra.mxu0 0
      %372 = vmatprep.subr.bf16.mxu0 0
      %373 = vmatpush1.bf16.msra.mxu0 0
      %374 = vmatprep.subr.bf16.mxu0 0
      %375 = vmatpush1.bf16.msra.mxu0 0
      %376 = vmatprep.subr.bf16.mxu0 0
      %377 = vmatpush1.bf16.msra.mxu0 0
      %378 = vmatprep.subr.bf16.mxu0 0
      %379 = vmatpush1.bf16.msra.mxu0 0
      %380 = vmatprep.subr.bf16.mxu0 0
      %381 = vmatpush1.bf16.msra.mxu0 0
      %382 = vmatprep.subr.bf16.mxu0 0
      %383 = vmatpush1.bf16.msra.mxu0 0
      %384 = vmatprep.subr.bf16.mxu0 0
      %385 = vmatpush1.bf16.msra.mxu0 0
      %386 = vmatprep.subr.bf16.mxu0 0
      %387 = vmatpush1.bf16.msra.mxu0 0
      %388 = vmatprep.subr.bf16.mxu0 0
      %389 = vmatpush1.bf16.msra.mxu0 0
      %390 = vmatprep.subr.bf16.mxu0 0
      %391 = vmatpush1.bf16.msra.mxu0 0
      %392 = vmatprep.mubr.bf16.mxu0 0
      %393 = vmatmul.mubr.bf16.gmra.mrb[0].mxu0 %v349
      %v394 = vpop.f32.mrb[0].mxu0
      %v395 = vadd.f32 %v339, %v394
      %v396 = vpop.f32.mrb[0].mxu0
      %v397 = vpop.f32.mrb[0].mxu0
      %v398 = vadd.f32 %v339, %v397
      %v399 = vpop.f32.mrb[0].mxu0
      %400 = vmatprep.mubr.bf16.mxu0 0
      %401 = vmatmul.mubr.bf16.gmra.mrb[0].mxu0 %v352
      %v402 = vpop.f32.mrb[0].mxu0
      %v403 = vadd.f32 %v339, %v402
      %v404 = vpop.f32.mrb[0].mxu0
      %v405 = vpop.f32.mrb[0].mxu0
      %v406 = vadd.f32 %v339, %v405
      %v407 = vpop.f32.mrb[0].mxu0
      %408 = vmatprep.mubr.bf16.mxu0 0
      %409 = vmatmul.mubr.bf16.gmra.mrb[0].mxu0 %v355
      %v410 = vpop.f32.mrb[0].mxu0
      %v411 = vadd.f32 %v339, %v410
      %v412 = vpop.f32.mrb[0].mxu0
      %v413 = vpop.f32.mrb[0].mxu0
      %v414 = vadd.f32 %v339, %v413
      %v415 = vpop.f32.mrb[0].mxu0
      %416 = vmatprep.mubr.bf16.mxu0 0
      %417 = vmatmul.mubr.bf16.gmra.mrb[0].mxu0 %v358
      %v418 = vpop.f32.mrb[0].mxu0
      %v419 = vadd.f32 %v339, %v418
      %v420 = vpop.f32.mrb[0].mxu0
      %v421 = vpop.f32.mrb[0].mxu0
      %v422 = vadd.f32 %v339, %v421
      %v423 = vpop.f32.mrb[0].mxu0
      %424 = vdwg.mxu0
      %v425 = vmax.f32 %v395, 0.0
      %v426 = vmax.f32 %v398, 0.0
      %v427 = vmax.f32 %v403, 0.0
      %v428 = vmax.f32 %v406, 0.0
      %v429 = vmax.f32 %v411, 0.0
      %v430 = vmax.f32 %v414, 0.0
      %v431 = vmax.f32 %v419, 0.0
      %v432 = vmax.f32 %v422, 0.0
      %vm433 = vcmask 31744
      %434 = vst.msk [vmem:[#allocation2] sm:$0xff] %vm433, 0.0
      %435 = vst.msk [vmem:[#allocation2 + $0x8] sm:$0xff] %vm433, 0.0
      %436 = vst.msk [vmem:[#allocation2 + $0x50] sm:$0xff] %vm433, 0.0
      %437 = vst.msk [vmem:[#allocation2 + $0x58] sm:$0xff] %vm433, 0.0
      %438 = vst.msk [vmem:[#allocation2 + $0x10] sm:$0xff] %vm433, %v425
      %439 = vst.msk [vmem:[#allocation2 + $0x18] sm:$0xff] %vm433, %v426
      %440 = vst.msk [vmem:[#allocation2 + $0x20] sm:$0xff] %vm433, %v427
      %441 = vst.msk [vmem:[#allocation2 + $0x28] sm:$0xff] %vm433, %v428
      %442 = vst.msk [vmem:[#allocation2 + $0x30] sm:$0xff] %vm433, %v429
      %443 = vst.msk [vmem:[#allocation2 + $0x38] sm:$0xff] %vm433, %v430
      %444 = vst.msk [vmem:[#allocation2 + $0x40] sm:$0xff] %vm433, %v431
      %445 = vst.msk [vmem:[#allocation2 + $0x48] sm:$0xff] %vm433, %v432
      %v446 = vlaneseq
      %v447 = vshrl.u32 %v446, 7
      %v448 = vadd.s32 %v447, 8
      %v449 = vadd.s32 %v447, 16
      %v450 = vadd.s32 %v447, 24
      %v451 = vadd.s32 %v447, 32
      %v452 = vadd.s32 %v447, 40
      %v453 = vadd.s32 %v447, 48
      %v454 = vadd.s32 %v447, 56
      %vm455 = vcmp.lt.s32.totalorder %v447, 0
      %v456 = vsub.s32 0, %v447
      %v457 = vsel %vm455, %v456, %v447
      %v458 = vshrl.u32 %v457, 3
      %v459 = vand.u32 %v457, 7
      %v460 = vsub.s32 0, %v459
      %v461 = vsel %vm455, %v460, %v459
      %vm462 = vcmp.lt.s32.totalorder %v448, 0
      %v463 = vsub.s32 0, %v448
      %v464 = vsel %vm462, %v463, %v448
      %v465 = vshrl.u32 %v464, 3
      %v466 = vand.u32 %v464, 7
      %v467 = vsub.s32 0, %v466
      %v468 = vsel %vm462, %v467, %v466
      %vm469 = vcmp.lt.s32.totalorder %v449, 0
      %v470 = vsub.s32 0, %v449
      %v471 = vsel %vm469, %v470, %v449
      %v472 = vshrl.u32 %v471, 3
      %v473 = vand.u32 %v471, 7
      %v474 = vsub.s32 0, %v473
      %v475 = vsel %vm469, %v474, %v473
      %vm476 = vcmp.lt.s32.totalorder %v450, 0
      %v477 = vsub.s32 0, %v450
      %v478 = vsel %vm476, %v477, %v450
      %v479 = vshrl.u32 %v478, 3
      %v480 = vand.u32 %v478, 7
      %v481 = vsub.s32 0, %v480
      %v482 = vsel %vm476, %v481, %v480
      %vm483 = vcmp.lt.s32.totalorder %v451, 0
      %v484 = vsub.s32 0, %v451
      %v485 = vsel %vm483, %v484, %v451
      %v486 = vshrl.u32 %v485, 3
      %v487 = vand.u32 %v485, 7
      %v488 = vsub.s32 0, %v487
      %v489 = vsel %vm483, %v488, %v487
      %vm490 = vcmp.lt.s32.totalorder %v452, 0
      %v491 = vsub.s32 0, %v452
      %v492 = vsel %vm490, %v491, %v452
      %v493 = vshrl.u32 %v492, 3
      %v494 = vand.u32 %v492, 7
      %v495 = vsub.s32 0, %v494
      %v496 = vsel %vm490, %v495, %v494
      %vm497 = vcmp.lt.s32.totalorder %v453, 0
      %v498 = vsub.s32 0, %v453
      %v499 = vsel %vm497, %v498, %v453
      %v500 = vshrl.u32 %v499, 3
      %v501 = vand.u32 %v499, 7
      %v502 = vsub.s32 0, %v501
      %v503 = vsel %vm497, %v502, %v501
      %vm504 = vcmp.lt.s32.totalorder %v454, 0
      %v505 = vsub.s32 0, %v454
      %v506 = vsel %vm504, %v505, %v454
      %v507 = vshrl.u32 %v506, 3
      %v508 = vand.u32 %v506, 7
      %v509 = vsub.s32 0, %v508
      %v510 = vsel %vm504, %v509, %v508
      %vm511 = vcmp.ne.s32.totalorder %v461, 0
      %vm512 = vcmp.ne.s32.totalorder %v468, 0
      %vm513 = vcmp.ne.s32.totalorder %v475, 0
      %vm514 = vcmp.ne.s32.totalorder %v482, 0
      %vm515 = vcmp.ne.s32.totalorder %v489, 0
      %vm516 = vcmp.ne.s32.totalorder %v496, 0
      %vm517 = vcmp.ne.s32.totalorder %v503, 0
      %vm518 = vcmp.ne.s32.totalorder %v510, 0
      %vm519 = vcmp.lt.s32.totalorder %v461, 0
      %vm520 = vcmp.lt.s32.totalorder %v468, 0
      %vm521 = vcmp.lt.s32.totalorder %v475, 0
      %vm522 = vcmp.lt.s32.totalorder %v482, 0
      %vm523 = vcmp.lt.s32.totalorder %v489, 0
      %vm524 = vcmp.lt.s32.totalorder %v496, 0
      %vm525 = vcmp.lt.s32.totalorder %v503, 0
      %vm526 = vcmp.lt.s32.totalorder %v510, 0
      %vm527 = vmand %vm519, %vm511
      %vm528 = vmand %vm520, %vm512
      %vm529 = vmand %vm521, %vm513
      %vm530 = vmand %vm522, %vm514
      %vm531 = vmand %vm523, %vm515
      %vm532 = vmand %vm524, %vm516
      %vm533 = vmand %vm525, %vm517
      %vm534 = vmand %vm526, %vm518
      %v535 = vadd.s32 %v461, 8
      %v536 = vadd.s32 %v468, 8
      %v537 = vadd.s32 %v475, 8
      %v538 = vadd.s32 %v482, 8
      %v539 = vadd.s32 %v489, 8
      %v540 = vadd.s32 %v496, 8
      %v541 = vadd.s32 %v503, 8
      %v542 = vadd.s32 %v510, 8
      %v543 = vsel %vm527, %v535, %v461
      %v544 = vsel %vm528, %v536, %v468
      %v545 = vsel %vm529, %v537, %v475
      %v546 = vsel %vm530, %v538, %v482
      %v547 = vsel %vm531, %v539, %v489
      %v548 = vsel %vm532, %v540, %v496
      %v549 = vsel %vm533, %v541, %v503
      %v550 = vsel %vm534, %v542, %v510
      %vm551 = vcmp.ge.s32.totalorder %v543, 1
      %vm552 = vcmp.ge.s32.totalorder %v544, 1
      %vm553 = vcmp.ge.s32.totalorder %v545, 1
      %vm554 = vcmp.ge.s32.totalorder %v546, 1
      %vm555 = vcmp.ge.s32.totalorder %v547, 1
      %vm556 = vcmp.ge.s32.totalorder %v548, 1
      %vm557 = vcmp.ge.s32.totalorder %v549, 1
      %vm558 = vcmp.ge.s32.totalorder %v550, 1
      %v559 = vsel %vm551, 1, 0
      %v560 = vsel %vm552, 1, 0
      %v561 = vsel %vm553, 1, 0
      %v562 = vsel %vm554, 1, 0
      %v563 = vsel %vm555, 1, 0
      %v564 = vsel %vm556, 1, 0
      %v565 = vsel %vm557, 1, 0
      %v566 = vsel %vm558, 1, 0
      %v567 = vcvt.s32.f32 %v559
      %v568 = vcvt.s32.f32 %v560
      %v569 = vcvt.s32.f32 %v561
      %v570 = vcvt.s32.f32 %v562
      %v571 = vcvt.s32.f32 %v563
      %v572 = vcvt.s32.f32 %v564
      %v573 = vcvt.s32.f32 %v565
      %v574 = vcvt.s32.f32 %v566
      %vm575 = vcmp.lt.s32.totalorder %v543, 7
      %vm576 = vcmp.lt.s32.totalorder %v544, 7
      %vm577 = vcmp.lt.s32.totalorder %v545, 7
      %vm578 = vcmp.lt.s32.totalorder %v546, 7
      %vm579 = vcmp.lt.s32.totalorder %v547, 7
      %vm580 = vcmp.lt.s32.totalorder %v548, 7
      %vm581 = vcmp.lt.s32.totalorder %v549, 7
      %vm582 = vcmp.lt.s32.totalorder %v550, 7
      %v583 = vsel %vm575, 1, 0
      %v584 = vsel %vm576, 1, 0
      %v585 = vsel %vm577, 1, 0
      %v586 = vsel %vm578, 1, 0
      %v587 = vsel %vm579, 1, 0
      %v588 = vsel %vm580, 1, 0
      %v589 = vsel %vm581, 1, 0
      %v590 = vsel %vm582, 1, 0
      %v591 = vcvt.s32.f32 %v583
      %v592 = vcvt.s32.f32 %v584
      %v593 = vcvt.s32.f32 %v585
      %v594 = vcvt.s32.f32 %v586
      %v595 = vcvt.s32.f32 %v587
      %v596 = vcvt.s32.f32 %v588
      %v597 = vcvt.s32.f32 %v589
      %v598 = vcvt.s32.f32 %v590
      %v599 = vld [vmem:[#allocation2 + $0x7] sm:$0xff]
      %v600 = vld [vmem:[#allocation2 + $0xf] sm:$0xff]
      %v601 = vld [vmem:[#allocation2 + $0x17] sm:$0xff]
      %v602 = vld [vmem:[#allocation2 + $0x1f] sm:$0xff]
      %v603 = vld [vmem:[#allocation2 + $0x27] sm:$0xff]
      %v604 = vld [vmem:[#allocation2 + $0x2f] sm:$0xff]
      %v605 = vld [vmem:[#allocation2 + $0x37] sm:$0xff]
      %v606 = vld [vmem:[#allocation2 + $0x3f] sm:$0xff]
      %v607 = vmul.f32 %v599, %v567
      %v608 = vmul.f32 %v600, %v568
      %v609 = vmul.f32 %v601, %v569
      %v610 = vmul.f32 %v602, %v570
      %v611 = vmul.f32 %v603, %v571
      %v612 = vmul.f32 %v604, %v572
      %v613 = vmul.f32 %v605, %v573
      %v614 = vmul.f32 %v606, %v574
      %v615 = vld [vmem:[#allocation2 + $0x8] sm:$0xff]
      %v616 = vld [vmem:[#allocation2 + $0x10] sm:$0xff]
      %v617 = vld [vmem:[#allocation2 + $0x18] sm:$0xff]
      %v618 = vld [vmem:[#allocation2 + $0x20] sm:$0xff]
      %v619 = vld [vmem:[#allocation2 + $0x28] sm:$0xff]
      %v620 = vld [vmem:[#allocation2 + $0x30] sm:$0xff]
      %v621 = vld [vmem:[#allocation2 + $0x38] sm:$0xff]
      %v622 = vld [vmem:[#allocation2 + $0x40] sm:$0xff]
      %v623 = vld [vmem:[#allocation2 + $0x9] sm:$0xff]
      %v624 = vld [vmem:[#allocation2 + $0x11] sm:$0xff]
      %v625 = vld [vmem:[#allocation2 + $0x19] sm:$0xff]
      %v626 = vld [vmem:[#allocation2 + $0x21] sm:$0xff]
      %v627 = vld [vmem:[#allocation2 + $0x29] sm:$0xff]
      %v628 = vld [vmem:[#allocation2 + $0x31] sm:$0xff]
      %v629 = vld [vmem:[#allocation2 + $0x39] sm:$0xff]
      %v630 = vld [vmem:[#allocation2 + $0x41] sm:$0xff]
      %v631 = vmul.f32 %v623, %v591
      %v632 = vmul.f32 %v624, %v592
      %v633 = vmul.f32 %v625, %v593
      %v634 = vmul.f32 %v626, %v594
      %v635 = vmul.f32 %v627, %v595
      %v636 = vmul.f32 %v628, %v596
      %v637 = vmul.f32 %v629, %v597
      %v638 = vmul.f32 %v630, %v598
      %v639 = vld [vmem:[#allocation2 + $0x47] sm:$0xff]
      %v640 = vmul.f32 %v600, %v567
      %v641 = vmul.f32 %v601, %v568
      %v642 = vmul.f32 %v602, %v569
      %v643 = vmul.f32 %v603, %v570
      %v644 = vmul.f32 %v604, %v571
      %v645 = vmul.f32 %v605, %v572
      %v646 = vmul.f32 %v606, %v573
      %v647 = vmul.f32 %v639, %v574
      %v648 = vld [vmem:[#allocation2 + $0x48] sm:$0xff]
      %v649 = vld [vmem:[#allocation2 + $0x49] sm:$0xff]
      %v650 = vmul.f32 %v624, %v591
      %v651 = vmul.f32 %v625, %v592
      %v652 = vmul.f32 %v626, %v593
      %v653 = vmul.f32 %v627, %v594
      %v654 = vmul.f32 %v628, %v595
      %v655 = vmul.f32 %v629, %v596
      %v656 = vmul.f32 %v630, %v597
      %v657 = vmul.f32 %v649, %v598
      %v658 = vld [vmem:[#allocation2 + $0x4f] sm:$0xff]
      %v659 = vmul.f32 %v601, %v567
      %v660 = vmul.f32 %v602, %v568
      %v661 = vmul.f32 %v603, %v569
      %v662 = vmul.f32 %v604, %v570
      %v663 = vmul.f32 %v605, %v571
      %v664 = vmul.f32 %v606, %v572
      %v665 = vmul.f32 %v639, %v573
      %v666 = vmul.f32 %v658, %v574
      %v667 = vld [vmem:[#allocation2 + $0x50] sm:$0xff]
      %v668 = vld [vmem:[#allocation2 + $0x51] sm:$0xff]
      %v669 = vmul.f32 %v625, %v591
      %v670 = vmul.f32 %v626, %v592
      %v671 = vmul.f32 %v627, %v593
      %v672 = vmul.f32 %v628, %v594
      %v673 = vmul.f32 %v629, %v595
      %v674 = vmul.f32 %v630, %v596
      %v675 = vmul.f32 %v649, %v597
      %v676 = vmul.f32 %v668, %v598
      %685 = vrot.lane.b32.xlu0 %v615, 4
      %v686 = vpop.permute.xlu0 %685
      %687 = vrot.lane.b32.xlu0 %v616, 4
      %v688 = vpop.permute.xlu0 %687
      %689 = vrot.lane.b32.xlu0 %v617, 4
      %v690 = vpop.permute.xlu0 %689
      %691 = vrot.lane.b32.xlu0 %v618, 4
      %v692 = vpop.permute.xlu0 %691
      %693 = vrot.lane.b32.xlu0 %v619, 4
      %v694 = vpop.permute.xlu0 %693
      %695 = vrot.lane.b32.xlu0 %v620, 4
      %v696 = vpop.permute.xlu0 %695
      %697 = vrot.lane.b32.xlu0 %v621, 4
      %v698 = vpop.permute.xlu0 %697
      %699 = vrot.lane.b32.xlu0 %v622, 4
      %v700 = vpop.permute.xlu0 %699
      %717 = vrot.lane.b32.xlu0 %v631, 8
      %v718 = vpop.permute.xlu0 %717
      %719 = vrot.lane.b32.xlu0 %v632, 8
      %v720 = vpop.permute.xlu0 %719
      %721 = vrot.lane.b32.xlu0 %v633, 8
      %v722 = vpop.permute.xlu0 %721
      %723 = vrot.lane.b32.xlu0 %v634, 8
      %v724 = vpop.permute.xlu0 %723
      %725 = vrot.lane.b32.xlu0 %v635, 8
      %v726 = vpop.permute.xlu0 %725
      %727 = vrot.lane.b32.xlu0 %v636, 8
      %v728 = vpop.permute.xlu0 %727
      %729 = vrot.lane.b32.xlu0 %v637, 8
      %v730 = vpop.permute.xlu0 %729
      %731 = vrot.lane.b32.xlu0 %v638, 8
      %v732 = vpop.permute.xlu0 %731
      %749 = vrot.lane.b32.xlu0 %v640, 12
      %v750 = vpop.permute.xlu0 %749
      %751 = vrot.lane.b32.xlu0 %v641, 12
      %v752 = vpop.permute.xlu0 %751
      %753 = vrot.lane.b32.xlu0 %v642, 12
      %v754 = vpop.permute.xlu0 %753
      %755 = vrot.lane.b32.xlu0 %v643, 12
      %v756 = vpop.permute.xlu0 %755
      %757 = vrot.lane.b32.xlu0 %v644, 12
      %v758 = vpop.permute.xlu0 %757
      %759 = vrot.lane.b32.xlu0 %v645, 12
      %v760 = vpop.permute.xlu0 %759
      %761 = vrot.lane.b32.xlu0 %v646, 12
      %v762 = vpop.permute.xlu0 %761
      %763 = vrot.lane.b32.xlu0 %v647, 12
      %v764 = vpop.permute.xlu0 %763
      %774 = vrot.lane.b32.xlu0 %v616, 16
      %v775 = vpop.permute.xlu0 %774
      %776 = vrot.lane.b32.xlu0 %v617, 16
      %v777 = vpop.permute.xlu0 %776
      %778 = vrot.lane.b32.xlu0 %v618, 16
      %v779 = vpop.permute.xlu0 %778
      %780 = vrot.lane.b32.xlu0 %v619, 16
      %v781 = vpop.permute.xlu0 %780
      %782 = vrot.lane.b32.xlu0 %v620, 16
      %v783 = vpop.permute.xlu0 %782
      %784 = vrot.lane.b32.xlu0 %v621, 16
      %v785 = vpop.permute.xlu0 %784
      %786 = vrot.lane.b32.xlu0 %v622, 16
      %v787 = vpop.permute.xlu0 %786
      %788 = vrot.lane.b32.xlu0 %v648, 16
      %v789 = vpop.permute.xlu0 %788
      %806 = vrot.lane.b32.xlu0 %v650, 20
      %v807 = vpop.permute.xlu0 %806
      %808 = vrot.lane.b32.xlu0 %v651, 20
      %v809 = vpop.permute.xlu0 %808
      %810 = vrot.lane.b32.xlu0 %v652, 20
      %v811 = vpop.permute.xlu0 %810
      %812 = vrot.lane.b32.xlu0 %v653, 20
      %v813 = vpop.permute.xlu0 %812
      %814 = vrot.lane.b32.xlu0 %v654, 20
      %v815 = vpop.permute.xlu0 %814
      %816 = vrot.lane.b32.xlu0 %v655, 20
      %v817 = vpop.permute.xlu0 %816
      %818 = vrot.lane.b32.xlu0 %v656, 20
      %v819 = vpop.permute.xlu0 %818
      %820 = vrot.lane.b32.xlu0 %v657, 20
      %v821 = vpop.permute.xlu0 %820
      %838 = vrot.lane.b32.xlu0 %v659, 24
      %v839 = vpop.permute.xlu0 %838
      %840 = vrot.lane.b32.xlu0 %v660, 24
      %v841 = vpop.permute.xlu0 %840
      %842 = vrot.lane.b32.xlu0 %v661, 24
      %v843 = vpop.permute.xlu0 %842
      %844 = vrot.lane.b32.xlu0 %v662, 24
      %v845 = vpop.permute.xlu0 %844
      %846 = vrot.lane.b32.xlu0 %v663, 24
      %v847 = vpop.permute.xlu0 %846
      %848 = vrot.lane.b32.xlu0 %v664, 24
      %v849 = vpop.permute.xlu0 %848
      %850 = vrot.lane.b32.xlu0 %v665, 24
      %v851 = vpop.permute.xlu0 %850
      %852 = vrot.lane.b32.xlu0 %v666, 24
      %v853 = vpop.permute.xlu0 %852
      %863 = vrot.lane.b32.xlu0 %v617, 28
      %v864 = vpop.permute.xlu0 %863
      %865 = vrot.lane.b32.xlu0 %v618, 28
      %v866 = vpop.permute.xlu0 %865
      %867 = vrot.lane.b32.xlu0 %v619, 28
      %v868 = vpop.permute.xlu0 %867
      %869 = vrot.lane.b32.xlu0 %v620, 28
      %v870 = vpop.permute.xlu0 %869
      %871 = vrot.lane.b32.xlu0 %v621, 28
      %v872 = vpop.permute.xlu0 %871
      %873 = vrot.lane.b32.xlu0 %v622, 28
      %v874 = vpop.permute.xlu0 %873
      %875 = vrot.lane.b32.xlu0 %v648, 28
      %v876 = vpop.permute.xlu0 %875
      %877 = vrot.lane.b32.xlu0 %v667, 28
      %v878 = vpop.permute.xlu0 %877
      %895 = vrot.lane.b32.xlu0 %v669, 32
      %v896 = vpop.permute.xlu0 %895
      %897 = vrot.lane.b32.xlu0 %v670, 32
      %v898 = vpop.permute.xlu0 %897
      %899 = vrot.lane.b32.xlu0 %v671, 32
      %v900 = vpop.permute.xlu0 %899
      %901 = vrot.lane.b32.xlu0 %v672, 32
      %v902 = vpop.permute.xlu0 %901
      %903 = vrot.lane.b32.xlu0 %v673, 32
      %v904 = vpop.permute.xlu0 %903
      %905 = vrot.lane.b32.xlu0 %v674, 32
      %v906 = vpop.permute.xlu0 %905
      %907 = vrot.lane.b32.xlu0 %v675, 32
      %v908 = vpop.permute.xlu0 %907
      %909 = vrot.lane.b32.xlu0 %v676, 32
      %v910 = vpop.permute.xlu0 %909
      %v919 = vsel %vm433, %v607, %v686
      %v920 = vsel %vm433, %v608, %v688
      %v921 = vsel %vm433, %v609, %v690
      %v922 = vsel %vm433, %v610, %v692
      %v923 = vsel %vm433, %v611, %v694
      %v924 = vsel %vm433, %v612, %v696
      %v925 = vsel %vm433, %v613, %v698
      %v926 = vsel %vm433, %v614, %v700
      %vm927 = vcmask 64512
      %v928 = vsel %vm927, %v919, %v718
      %v929 = vsel %vm927, %v920, %v720
      %v930 = vsel %vm927, %v921, %v722
      %v931 = vsel %vm927, %v922, %v724
      %v932 = vsel %vm927, %v923, %v726
      %v933 = vsel %vm927, %v924, %v728
      %v934 = vsel %vm927, %v925, %v730
      %v935 = vsel %vm927, %v926, %v732
      %vm936 = vcmask 97280
      %v937 = vsel %vm936, %v928, %v750
      %v938 = vsel %vm936, %v929, %v752
      %v939 = vsel %vm936, %v930, %v754
      %v940 = vsel %vm936, %v931, %v756
      %v941 = vsel %vm936, %v932, %v758
      %v942 = vsel %vm936, %v933, %v760
      %v943 = vsel %vm936, %v934, %v762
      %v944 = vsel %vm936, %v935, %v764
      %v945 = vsel %vm347, %v937, %v775
      %v946 = vsel %vm347, %v938, %v777
      %v947 = vsel %vm347, %v939, %v779
      %v948 = vsel %vm347, %v940, %v781
      %v949 = vsel %vm347, %v941, %v783
      %v950 = vsel %vm347, %v942, %v785
      %v951 = vsel %vm347, %v943, %v787
      %v952 = vsel %vm347, %v944, %v789
      %vm953 = vcmask 162816
      %v954 = vsel %vm953, %v945, %v807
      %v955 = vsel %vm953, %v946, %v809
      %v956 = vsel %vm953, %v947, %v811
      %v957 = vsel %vm953, %v948, %v813
      %v958 = vsel %vm953, %v949, %v815
      %v959 = vsel %vm953, %v950, %v817
      %v960 = vsel %vm953, %v951, %v819
      %v961 = vsel %vm953, %v952, %v821
      %vm962 = vcmask 195584
      %v963 = vsel %vm962, %v954, %v839
      %v964 = vsel %vm962, %v955, %v841
      %v965 = vsel %vm962, %v956, %v843
      %v966 = vsel %vm962, %v957, %v845
      %v967 = vsel %vm962, %v958, %v847
      %v968 = vsel %vm962, %v959, %v849
      %v969 = vsel %vm962, %v960, %v851
      %v970 = vsel %vm962, %v961, %v853
      %vm971 = vcmask 228352
      %v972 = vsel %vm971, %v963, %v864
      %v973 = vsel %vm971, %v964, %v866
      %v974 = vsel %vm971, %v965, %v868
      %v975 = vsel %vm971, %v966, %v870
      %v976 = vsel %vm971, %v967, %v872
      %v977 = vsel %vm971, %v968, %v874
      %v978 = vsel %vm971, %v969, %v876
      %v979 = vsel %vm971, %v970, %v878
      %vm980 = vcmask 261120
      %v981 = vsel %vm980, %v972, %v896
      %v982 = vsel %vm980, %v973, %v898
      %v983 = vsel %vm980, %v974, %v900
      %v984 = vsel %vm980, %v975, %v902
      %v985 = vsel %vm980, %v976, %v904
      %v986 = vsel %vm980, %v977, %v906
      %v987 = vsel %vm980, %v978, %v908
      %v988 = vsel %vm980, %v979, %v910
      %v989 = vpack.c.bf16 %v982, %v981
      %v990 = vpack.c.bf16 %v984, %v983
      %v991 = vpack.c.bf16 %v986, %v985
      %v992 = vpack.c.bf16 %v988, %v987
      %v993 = vld [vmem:[%s3] sm:$0xf]
      %v994 = vld [vmem:[%s3 + $0x4] sm:$0xf]
      %v995 = vld [vmem:[%s3 + $0x8] sm:$0xf]
      %v996 = vld [vmem:[%s3 + $0xc] sm:$0xf]
      %v997 = vld [vmem:[%s3 + $0x10] sm:$0x3]
      %v998 = vld [vmem:[%s4] sm:$0x1]
      %v1000 = vlaneseq
      %v1001 = vshrl.u32 %v1000, 7
      %v1002 = vsub.s32 0, %v1001
      %v1003 = vrot.slane %v998, %v1002
      %v1010 = vunpack.c.l.b16 %v993
      %v1011 = vunpack.c.l.b16 %v994
      %v1012 = vunpack.c.l.b16 %v995
      %v1013 = vunpack.c.l.b16 %v996
      %v1014 = vunpack.c.l.b16 %v997
      %v1015 = vpack.c.b16 %v1011, %v1010
      %v1016 = vpack.c.b16 %v1013, %v1012
      %v1017 = vpack.c.b16 %v1014, %v1014
      %vm1020 = vcmask 293888
      %v1022 = vsel %vm1020, %v989, 0
      %v1025 = vsel %vm1020, %v990, 0
      %v1028 = vsel %vm1020, %v991, 0
      %v1031 = vsel %vm1020, %v992, 0
      %vm1033 = vcmask 1041408
      %v1035 = vsel %vm1033, %v1017, 0
      %1037 = vmatprep.subr.bf16.mxu0 0
      %1038 = vmatpush1.bf16.msra.mxu0 %v1015
      %1039 = vmatprep.subr.bf16.mxu0 0
      %1040 = vmatpush1.bf16.msra.mxu0 %v1016
      %1041 = vmatprep.subr.bf16.mxu0 0
      %1042 = vmatpush1.bf16.msra.mxu0 %v1035
      %1043 = vmatprep.subr.bf16.mxu0 0
      %1044 = vmatpush1.bf16.msra.mxu0 0
      %1045 = vmatprep.subr.bf16.mxu0 0
      %1046 = vmatpush1.bf16.msra.mxu0 0
      %1047 = vmatprep.subr.bf16.mxu0 0
      %1048 = vmatpush1.bf16.msra.mxu0 0
      %1049 = vmatprep.subr.bf16.mxu0 0
      %1050 = vmatpush1.bf16.msra.mxu0 0
      %1051 = vmatprep.subr.bf16.mxu0 0
      %1052 = vmatpush1.bf16.msra.mxu0 0
      %1053 = vmatprep.subr.bf16.mxu0 0
      %1054 = vmatpush1.bf16.msra.mxu0 0
      %1055 = vmatprep.subr.bf16.mxu0 0
      %1056 = vmatpush1.bf16.msra.mxu0 0
      %1057 = vmatprep.subr.bf16.mxu0 0
      %1058 = vmatpush1.bf16.msra.mxu0 0
      %1059 = vmatprep.subr.bf16.mxu0 0
      %1060 = vmatpush1.bf16.msra.mxu0 0
      %1061 = vmatprep.subr.bf16.mxu0 0
      %1062 = vmatpush1.bf16.msra.mxu0 0
      %1063 = vmatprep.subr.bf16.mxu0 0
      %1064 = vmatpush1.bf16.msra.mxu0 0
      %1065 = vmatprep.subr.bf16.mxu0 0
      %1066 = vmatpush1.bf16.msra.mxu0 0
      %1067 = vmatprep.subr.bf16.mxu0 0
      %1068 = vmatpush1.bf16.msra.mxu0 0
      %1069 = vmatprep.mubr.bf16.mxu0 0
      %1070 = vmatmul.mubr.bf16.gmra.mrb[0].mxu0 %v1022
      %v1071 = vpop.f32.mrb[0].mxu0
      %v1072 = vadd.f32 %v1003, %v1071
      %v1073 = vpop.f32.mrb[0].mxu0
      %v1074 = vpop.f32.mrb[0].mxu0
      %v1075 = vadd.f32 %v1003, %v1074
      %v1076 = vpop.f32.mrb[0].mxu0
      %1077 = vmatprep.mubr.bf16.mxu0 0
      %1078 = vmatmul.mubr.bf16.gmra.mrb[0].mxu0 %v1025
      %v1079 = vpop.f32.mrb[0].mxu0
      %v1080 = vadd.f32 %v1003, %v1079
      %v1081 = vpop.f32.mrb[0].mxu0
      %v1082 = vpop.f32.mrb[0].mxu0
      %v1083 = vadd.f32 %v1003, %v1082
      %v1084 = vpop.f32.mrb[0].mxu0
      %1085 = vmatprep.mubr.bf16.mxu0 0
      %1086 = vmatmul.mubr.bf16.gmra.mrb[0].mxu0 %v1028
      %v1087 = vpop.f32.mrb[0].mxu0
      %v1088 = vadd.f32 %v1003, %v1087
      %v1089 = vpop.f32.mrb[0].mxu0
      %v1090 = vpop.f32.mrb[0].mxu0
      %v1091 = vadd.f32 %v1003, %v1090
      %v1092 = vpop.f32.mrb[0].mxu0
      %1093 = vmatprep.mubr.bf16.mxu0 0
      %1094 = vmatmul.mubr.bf16.gmra.mrb[0].mxu0 %v1031
      %v1095 = vpop.f32.mrb[0].mxu0
      %v1096 = vadd.f32 %v1003, %v1095
      %v1097 = vpop.f32.mrb[0].mxu0
      %v1098 = vpop.f32.mrb[0].mxu0
      %v1099 = vadd.f32 %v1003, %v1098
      %v1100 = vpop.f32.mrb[0].mxu0
      %1101 = vdwg.mxu0
      %v1102 = vmax.f32 %v1072, 0.0
      %v1103 = vmax.f32 %v1075, 0.0
      %v1104 = vmax.f32 %v1080, 0.0
      %v1105 = vmax.f32 %v1083, 0.0
      %v1106 = vmax.f32 %v1088, 0.0
      %v1107 = vmax.f32 %v1091, 0.0
      %v1108 = vmax.f32 %v1096, 0.0
      %v1109 = vmax.f32 %v1099, 0.0
      %1110 = vst.msk [vmem:[%s318] sm:$0xff] %vm433, %v1102
      %1111 = vst.msk [vmem:[%s318 + $0x8] sm:$0xff] %vm433, %v1103
      %1112 = vst.msk [vmem:[%s318 + $0x10] sm:$0xff] %vm433, %v1104
      %1113 = vst.msk [vmem:[%s318 + $0x18] sm:$0xff] %vm433, %v1105
      %1114 = vst.msk [vmem:[%s318 + $0x20] sm:$0xff] %vm433, %v1106
      %1115 = vst.msk [vmem:[%s318 + $0x28] sm:$0xff] %vm433, %v1107
      %1116 = vst.msk [vmem:[%s318 + $0x30] sm:$0xff] %vm433, %v1108
      %1117 = vst.msk [vmem:[%s318 + $0x38] sm:$0xff] %vm433, %v1109
      %v1118 = vpack.c.bf16 %v1103, %v1102
      %v1119 = vpack.c.bf16 %v1105, %v1104
      %v1120 = vpack.c.bf16 %v1107, %v1106
      %v1121 = vpack.c.bf16 %v1109, %v1108
      %v1122 = vld [vmem:[%s5] sm:$0x3]
      %v1123 = vld [vmem:[%s6] sm:$0x1]
      %v1125 = vlaneseq
      %v1126 = vshrl.u32 %v1125, 7
      %v1127 = vsub.s32 0, %v1126
      %v1128 = vrot.slane %v1123, %v1127
      %v1131 = vsel %vm433, %v1118, 0
      %v1134 = vsel %vm433, %v1119, 0
      %v1137 = vsel %vm433, %v1120, 0
      %v1140 = vsel %vm433, %v1121, 0
      %v1143 = vsel %vm1033, %v1122, 0
      %1145 = vmatprep.subr.bf16.mxu0 0
      %1146 = vmatpush1.bf16.msra.mxu0 %v1143
      %1147 = vmatprep.subr.bf16.mxu0 0
      %1148 = vmatpush1.bf16.msra.mxu0 0
      %1149 = vmatprep.subr.bf16.mxu0 0
      %1150 = vmatpush1.bf16.msra.mxu0 0
      %1151 = vmatprep.subr.bf16.mxu0 0
      %1152 = vmatpush1.bf16.msra.mxu0 0
      %1153 = vmatprep.subr.bf16.mxu0 0
      %1154 = vmatpush1.bf16.msra.mxu0 0
      %1155 = vmatprep.subr.bf16.mxu0 0
      %1156 = vmatpush1.bf16.msra.mxu0 0
      %1157 = vmatprep.subr.bf16.mxu0 0
      %1158 = vmatpush1.bf16.msra.mxu0 0
      %1159 = vmatprep.subr.bf16.mxu0 0
      %1160 = vmatpush1.bf16.msra.mxu0 0
      %1161 = vmatprep.subr.bf16.mxu0 0
      %1162 = vmatpush1.bf16.msra.mxu0 0
      %1163 = vmatprep.subr.bf16.mxu0 0
      %1164 = vmatpush1.bf16.msra.mxu0 0
      %1165 = vmatprep.subr.bf16.mxu0 0
      %1166 = vmatpush1.bf16.msra.mxu0 0
      %1167 = vmatprep.subr.bf16.mxu0 0
      %1168 = vmatpush1.bf16.msra.mxu0 0
      %1169 = vmatprep.subr.bf16.mxu0 0
      %1170 = vmatpush1.bf16.msra.mxu0 0
      %1171 = vmatprep.subr.bf16.mxu0 0
      %1172 = vmatpush1.bf16.msra.mxu0 0
      %1173 = vmatprep.subr.bf16.mxu0 0
      %1174 = vmatpush1.bf16.msra.mxu0 0
      %1175 = vmatprep.subr.bf16.mxu0 0
      %1176 = vmatpush1.bf16.msra.mxu0 0
      %1177 = vmatprep.mubr.bf16.mxu0 0
      %1178 = vmatmul.mubr.bf16.gmra.mrb[0].mxu0 %v1131
      %v1179 = vpop.f32.mrb[0].mxu0
      %v1180 = vadd.f32 %v1128, %v1179
      %v1181 = vpop.f32.mrb[0].mxu0
      %v1182 = vpop.f32.mrb[0].mxu0
      %v1183 = vadd.f32 %v1128, %v1182
      %v1184 = vpop.f32.mrb[0].mxu0
      %1185 = vmatprep.mubr.bf16.mxu0 0
      %1186 = vmatmul.mubr.bf16.gmra.mrb[0].mxu0 %v1134
      %v1187 = vpop.f32.mrb[0].mxu0
      %v1188 = vadd.f32 %v1128, %v1187
      %v1189 = vpop.f32.mrb[0].mxu0
      %v1190 = vpop.f32.mrb[0].mxu0
      %v1191 = vadd.f32 %v1128, %v1190
      %v1192 = vpop.f32.mrb[0].mxu0
      %1193 = vmatprep.mubr.bf16.mxu0 0
      %1194 = vmatmul.mubr.bf16.gmra.mrb[0].mxu0 %v1137
      %v1195 = vpop.f32.mrb[0].mxu0
      %v1196 = vadd.f32 %v1128, %v1195
      %v1197 = vpop.f32.mrb[0].mxu0
      %v1198 = vpop.f32.mrb[0].mxu0
      %v1199 = vadd.f32 %v1128, %v1198
      %v1200 = vpop.f32.mrb[0].mxu0
      %1201 = vmatprep.mubr.bf16.mxu0 0
      %1202 = vmatmul.mubr.bf16.gmra.mrb[0].mxu0 %v1140
      %v1203 = vpop.f32.mrb[0].mxu0
      %v1204 = vadd.f32 %v1128, %v1203
      %v1205 = vpop.f32.mrb[0].mxu0
      %v1206 = vpop.f32.mrb[0].mxu0
      %v1207 = vadd.f32 %v1128, %v1206
      %v1208 = vpop.f32.mrb[0].mxu0
      %1209 = vdwg.mxu0
      %v1210 = vadd.f32 %v1180, %v320
      %v1211 = vadd.f32 %v1183, %v321
      %v1212 = vadd.f32 %v1188, %v322
      %v1213 = vadd.f32 %v1191, %v323
      %v1214 = vadd.f32 %v1196, %v324
      %v1215 = vadd.f32 %v1199, %v325
      %v1216 = vadd.f32 %v1204, %v326
      %v1217 = vadd.f32 %v1207, %v327
      %v1218 = vmax.f32 %v1210, 0.0
      %v1219 = vmax.f32 %v1211, 0.0
      %v1220 = vmax.f32 %v1212, 0.0
      %v1221 = vmax.f32 %v1213, 0.0
      %v1222 = vmax.f32 %v1214, 0.0
      %v1223 = vmax.f32 %v1215, 0.0
      %v1224 = vmax.f32 %v1216, 0.0
      %v1225 = vmax.f32 %v1217, 0.0
      %1226 = vst.msk [vmem:[%s313] sm:$0xff] %vm347, %v1218
      %1227 = vst.msk [vmem:[%s313 + $0x8] sm:$0xff] %vm347, %v1219
      %1228 = vst.msk [vmem:[%s313 + $0x10] sm:$0xff] %vm347, %v1220
      %1229 = vst.msk [vmem:[%s313 + $0x18] sm:$0xff] %vm347, %v1221
      %1230 = vst.msk [vmem:[%s313 + $0x20] sm:$0xff] %vm347, %v1222
      %1231 = vst.msk [vmem:[%s313 + $0x28] sm:$0xff] %vm347, %v1223
      %1232 = vst.msk [vmem:[%s313 + $0x30] sm:$0xff] %vm347, %v1224
      %1233 = vst.msk [vmem:[%s313 + $0x38] sm:$0xff] %vm347, %v1225
      %p1234 = scmp.lt.s32.totalorder %s20, 1
      %s1235 = scalar_select %p1234, %s20, 1
      %s1236 = smul.addr %s1235, 8
      %s1237 = smul.addr %s1236, 8
      %s1238 = scalar_lea.vmem %s7, %s1237
      %p1239 = scmp.lt.s32.totalorder %s20, 1
      %s1240 = scalar_select %p1239, %s20, 1
      %s1241 = smul.addr %s1240, 8
      %s1242 = smul.addr %s1241, 8
      %s1243 = scalar_lea.vmem %s8, %s1242
      // Predicated region
      $region49: #{conv_trans_block.9} parent=47 // pred_check
        %p1244 = pneg %p190
      $region50: #{conv_trans_block.9} parent=47 // pred_check_branch
        %1246 = sbr.rel (%p1244) target = $region52
      $region51: #{conv_trans_block.9} parent=47 // pred_region
        _
      $region52: #{conv_trans_block.9} parent=47 // pred_fallthru
        _
      // Predicated region
      $region53: #{conv_trans_block.9} parent=47 // pred_check
        %p1247 = pneg %p216
      $region54: #{conv_trans_block.9} parent=47 // pred_check_branch
        %1249 = sbr.rel (%p1247) target = $region56
      $region55: #{conv_trans_block.9} parent=47 // pred_region
        _
      $region56: #{conv_trans_block.9} parent=47 // pred_fallthru
        _
    $region48: #{conv_trans_block.9} parent=5 // pred_fallthru
      _
    %p1250 = scmp.le.s32.totalorder 2, %s15
    // Predicated region
    $region57: #{conv_trans_block.9} parent=5 // pred_check
      %p1251 = pneg %p1250
    $region58: #{conv_trans_block.9} parent=5 // pred_check_branch
      %1253 = sbr.rel (%p1251) target = $region60
    $region59: #{conv_trans_block.9} parent=5 // pred_region
      %s1254 = ssub.s32 %s15, 2
      // Predicated region
      $region61: #{conv_trans_block.9} parent=59 // pred_check
        %p1255 = pneg %p196
      $region62: #{conv_trans_block.9} parent=59 // pred_check_branch
        %1257 = sbr.rel (%p1255) target = $region64
      $region63: #{conv_trans_block.9} parent=59 // pred_region
        %p1258 = scmp.lt.s32.totalorder %s21, 1
        %s1259 = scalar_select %p1258, %s21, 1
        %s1260 = smul.addr %s1259, 8
        %s1261 = smul.addr %s1260, 8
        %s1262 = scalar_lea.vmem %s7, %s1261
      $region64: #{conv_trans_block.9} parent=59 // pred_fallthru
        _
      // Predicated region
      $region65: #{conv_trans_block.9} parent=59 // pred_check
        %p1263 = pneg %p222
      $region66: #{conv_trans_block.9} parent=59 // pred_check_branch
        %1265 = sbr.rel (%p1263) target = $region68
      $region67: #{conv_trans_block.9} parent=59 // pred_region
        %p1266 = scmp.lt.s32.totalorder %s21, 1
        %s1267 = scalar_select %p1266, %s21, 1
        %s1268 = smul.addr %s1267, 8
        %s1269 = smul.addr %s1268, 8
        %s1270 = scalar_lea.vmem %s8, %s1269
      $region68: #{conv_trans_block.9} parent=59 // pred_fallthru
        _
    $region60: #{conv_trans_block.9} parent=5 // pred_fallthru
      _
  $region6: #{conv_trans_block.9} parent=0 // loop_footer
    %s19 = sadd.s32 1, %s15
  $region7: #{conv_trans_block.9} parent=0 // loop_footer_branch
    %14 = sbr.rel target = $region3
  $region8: #{conv_trans_block.9} parent=0 // loop_exit
    _

// kernel: conv_trans_block.13
$region0: #{conv_trans_block.13}
  #allocation0 [shape = 'u32[]', space=smem, size = 0x4, offset = 0x4, fixed_abs, tag = 'smem constant byte address 0x4 - core index']
  #allocation1 [shape = 'u32[144,128]{1,0:T(1,128)}', space=vmem, size = 0x12000, scoped, tag = 'internal scratch']
  %s0 = inlined_call_operand.vmem [shape: bf16[34,32], index: 0, kind: input, shape index: {}]
  %s1 = inlined_call_operand.vmem [shape: bf16[32,32], index: 1, kind: input, shape index: {}]
  %s2 = inlined_call_operand.vmem [shape: f32[1,32], index: 2, kind: input, shape index: {}]
  %s3 = inlined_call_operand.vmem [shape: f32[34,32], index: 3, kind: input, shape index: {}]
  %s4 = inlined_call_operand.vmem [shape: f32[34,32], index: 4, kind: output, shape index: {}]
  %s5 = sld [smem:[#allocation0]]
  $region26: #{conv_trans_block.13} parent=0
    _
  %s7 = ssub.s32 1, %s5
  %s8 = scalar_select 0, %s7, %s5
  // Predicated region
  $region2: #{conv_trans_block.13} parent=0 // pred_check
    _
  $region3: #{conv_trans_block.13} parent=0 // pred_check_branch
    %10 = sbr.rel (0) target = $region5
  $region4: #{conv_trans_block.13} parent=0 // pred_region
    _
  $region5: #{conv_trans_block.13} parent=0 // pred_fallthru
    _
  // Predicated region
  $region6: #{conv_trans_block.13} parent=0 // pred_check
    _
  $region7: #{conv_trans_block.13} parent=0 // pred_check_branch
    %12 = sbr.rel (0) target = $region9
  $region8: #{conv_trans_block.13} parent=0 // pred_region
    _
  $region9: #{conv_trans_block.13} parent=0 // pred_fallthru
    _
  // Predicated region
  $region10: #{conv_trans_block.13} parent=0 // pred_check
    _
  $region11: #{conv_trans_block.13} parent=0 // pred_check_branch
    %14 = sbr.rel (0) target = $region13
  $region12: #{conv_trans_block.13} parent=0 // pred_region
    _
  $region13: #{conv_trans_block.13} parent=0 // pred_fallthru
    _
  // Predicated region
  $region14: #{conv_trans_block.13} parent=0 // pred_check
    _
  $region15: #{conv_trans_block.13} parent=0 // pred_check_branch
    %16 = sbr.rel (0) target = $region17
  $region16: #{conv_trans_block.13} parent=0 // pred_region
    _
  $region17: #{conv_trans_block.13} parent=0 // pred_fallthru
    _
  %v18 = vld [vmem:[%s0] sm:$0xf]
  %v19 = vld [vmem:[%s0 + $0x4] sm:$0xf]
  %v20 = vld [vmem:[%s0 + $0x8] sm:$0xf]
  %v21 = vld [vmem:[%s0 + $0xc] sm:$0xf]
  %v22 = vld [vmem:[%s0 + $0x10] sm:$0xf]
  %v23 = vld [vmem:[%s1] sm:$0xf]
  %v24 = vld [vmem:[%s1 + $0x4] sm:$0xf]
  %v25 = vld [vmem:[%s1 + $0x8] sm:$0xf]
  %v26 = vld [vmem:[%s1 + $0xc] sm:$0xf]
  %v27 = vld [vmem:[%s2] sm:$0x1]
  %v29 = vlaneseq
  %v30 = vshrl.u32 %v29, 7
  %v31 = vsub.s32 0, %v30
  %v32 = vrot.slane %v27, %v31
  %v39 = vunpack.c.l.b16 %v18
  %v40 = vunpack.c.l.b16 %v19
  %v41 = vunpack.c.l.b16 %v20
  %v42 = vunpack.c.l.b16 %v21
  %v43 = vunpack.c.l.b16 %v22
  %v44 = vpack.c.b16 %v40, %v39
  %v45 = vpack.c.b16 %v42, %v41
  %v46 = vpack.c.b16 %v43, %v43
  %v51 = vunpack.c.l.b16 %v23
  %v52 = vunpack.c.l.b16 %v24
  %v53 = vunpack.c.l.b16 %v25
  %v54 = vunpack.c.l.b16 %v26
  %v55 = vpack.c.b16 %v52, %v51
  %v56 = vpack.c.b16 %v54, %v53
  %vm59 = vcmask 261120
  %v61 = vsel %vm59, %v44, 0
  %v64 = vsel %vm59, %v45, 0
  %v67 = vsel %vm59, %v46, 0
  %69 = vmatprep.subr.bf16.mxu0 0
  %70 = vmatpush1.bf16.msra.mxu0 %v55
  %71 = vmatprep.subr.bf16.mxu0 0
  %72 = vmatpush1.bf16.msra.mxu0 %v56
  %73 = vmatprep.subr.bf16.mxu0 0
  %74 = vmatpush1.bf16.msra.mxu0 0
  %75 = vmatprep.subr.bf16.mxu0 0
  %76 = vmatpush1.bf16.msra.mxu0 0
  %77 = vmatprep.subr.bf16.mxu0 0
  %78 = vmatpush1.bf16.msra.mxu0 0
  %79 = vmatprep.subr.bf16.mxu0 0
  %80 = vmatpush1.bf16.msra.mxu0 0
  %81 = vmatprep.subr.bf16.mxu0 0
  %82 = vmatpush1.bf16.msra.mxu0 0
  %83 = vmatprep.subr.bf16.mxu0 0
  %84 = vmatpush1.bf16.msra.mxu0 0
  %85 = vmatprep.subr.bf16.mxu0 0
  %86 = vmatpush1.bf16.msra.mxu0 0
  %87 = vmatprep.subr.bf16.mxu0 0
  %88 = vmatpush1.bf16.msra.mxu0 0
  %89 = vmatprep.subr.bf16.mxu0 0
  %90 = vmatpush1.bf16.msra.mxu0 0
  %91 = vmatprep.subr.bf16.mxu0 0
  %92 = vmatpush1.bf16.msra.mxu0 0
  %93 = vmatprep.subr.bf16.mxu0 0
  %94 = vmatpush1.bf16.msra.mxu0 0
  %95 = vmatprep.subr.bf16.mxu0 0
  %96 = vmatpush1.bf16.msra.mxu0 0
  %97 = vmatprep.subr.bf16.mxu0 0
  %98 = vmatpush1.bf16.msra.mxu0 0
  %99 = vmatprep.subr.bf16.mxu0 0
  %100 = vmatpush1.bf16.msra.mxu0 0
  %101 = vmatprep.mubr.bf16.mxu0 0
  %102 = vmatmul.mubr.bf16.gmra.mrb[0].mxu0 %v61
  %v103 = vpop.f32.mrb[0].mxu0
  %v104 = vadd.f32 %v32, %v103
  %v105 = vpop.f32.mrb[0].mxu0
  %v106 = vpop.f32.mrb[0].mxu0
  %v107 = vadd.f32 %v32, %v106
  %v108 = vpop.f32.mrb[0].mxu0
  %109 = vmatprep.mubr.bf16.mxu0 0
  %110 = vmatmul.mubr.bf16.gmra.mrb[0].mxu0 %v64
  %v111 = vpop.f32.mrb[0].mxu0
  %v112 = vadd.f32 %v32, %v111
  %v113 = vpop.f32.mrb[0].mxu0
  %v114 = vpop.f32.mrb[0].mxu0
  %v115 = vadd.f32 %v32, %v114
  %v116 = vpop.f32.mrb[0].mxu0
  %117 = vmatprep.mubr.bf16.mxu0 0
  %118 = vmatmul.mubr.bf16.gmra.mrb[0].mxu0 %v67
  %v119 = vpop.f32.mrb[0].mxu0
  %v120 = vadd.f32 %v32, %v119
  %v121 = vpop.f32.mrb[0].mxu0
  %v122 = vpop.f32.mrb[0].mxu0
  %v123 = vpop.f32.mrb[0].mxu0
  %124 = vdwg.mxu0
  %v125 = vld [vmem:[%s3] sm:$0xff]
  %v126 = vld [vmem:[%s3 + $0x8] sm:$0xff]
  %v127 = vld [vmem:[%s3 + $0x10] sm:$0xff]
  %v128 = vld [vmem:[%s3 + $0x18] sm:$0xff]
  %v129 = vld [vmem:[%s3 + $0x20] sm:$0xff]
  %v130 = vadd.f32 %v104, %v125
  %v131 = vadd.f32 %v107, %v126
  %v132 = vadd.f32 %v112, %v127
  %v133 = vadd.f32 %v115, %v128
  %v134 = vadd.f32 %v120, %v129
  %135 = vst.msk [vmem:[%s4] sm:$0xff] %vm59, %v130
  %136 = vst.msk [vmem:[%s4 + $0x8] sm:$0xff] %vm59, %v131
  %137 = vst.msk [vmem:[%s4 + $0x10] sm:$0xff] %vm59, %v132
  %138 = vst.msk [vmem:[%s4 + $0x18] sm:$0xff] %vm59, %v133
  %139 = vst.msk [vmem:[%s4 + $0x20] sm:$0xff] %vm59, %v134
  // Predicated region
  $region18: #{conv_trans_block.13} parent=0 // pred_check
    _
  $region19: #{conv_trans_block.13} parent=0 // pred_check_branch
    %141 = sbr.rel (0) target = $region21
  $region20: #{conv_trans_block.13} parent=0 // pred_region
    _
  $region21: #{conv_trans_block.13} parent=0 // pred_fallthru
    _
  // Predicated region
  $region22: #{conv_trans_block.13} parent=0 // pred_check
    _
  $region23: #{conv_trans_block.13} parent=0 // pred_check_branch
    %143 = sbr.rel (0) target = $region25
  $region24: #{conv_trans_block.13} parent=0 // pred_region
    _
  $region25: #{conv_trans_block.13} parent=0 // pred_fallthru
    _

// kernel: conv_trans_block.12
$region0: #{conv_trans_block.12}
  #allocation0 [shape = 'u32[]', space=smem, size = 0x4, offset = 0x4, fixed_abs, tag = 'smem constant byte address 0x4 - core index']
  #allocation1 [shape = 'u32[144,128]{1,0:T(1,128)}', space=vmem, size = 0x12000, scoped, tag = 'internal scratch']
  %s0 = inlined_call_operand.vmem [shape: bf16[2,4,17,8], index: 0, kind: input, shape index: {}]
  %s1 = inlined_call_operand.vmem [shape: bf16[2,4,17,8], index: 1, kind: input, shape index: {}]
  %s2 = inlined_call_operand.vmem [shape: bf16[2,4,17,8], index: 2, kind: input, shape index: {}]
  %s3 = inlined_call_operand.vmem [shape: bf16[2,4,17,8], index: 3, kind: output, shape index: {}]
  %s4 = sld [smem:[#allocation0]]
  $region45: #{conv_trans_block.12} parent=0
    _
  %s6 = ssub.s32 1, %s4
  %s7 = scalar_select 0, %s6, %s4
  loop: start=0, step=1, limit=4
  $region2: #{conv_trans_block.12} parent=0 // loop_pre_header
    _
  $region3: #{conv_trans_block.12} parent=0 // loop_header
    %s9 = sphi 0, %s13
    %p10 = scmp.ge.s32.totalorder %s9, 4
    %s19 = sphi 0, %s21
    %s22 = sphi 0, %s19
    %s23 = sphi 0, %s22
    %s39 = sphi 0, %s23
    %s45 = sphi 0, %s47
    %s48 = sphi 0, %s45
    %s49 = sphi 0, %s48
    %s65 = sphi 0, %s49
    %s71 = sphi 0, %s73
    %s74 = sphi 0, %s71
    %s75 = sphi 0, %s74
    %s91 = sphi 0, %s75
    %s97 = sphi 0, %s99
    %s100 = sphi 0, %s97
    %s101 = sphi 0, %s100
    %s117 = sphi 0, %s101
  $region4: #{conv_trans_block.12} parent=0 // loop_header_branch
    %12 = sbr.rel (%p10) target = $region8
  $region5: #{conv_trans_block.12} parent=0 // loop_body
    %s14 = ssub.s32 %s9, 1
    %s15 = ssub.s32 %s9, 2
    %s16 = sadd.s32 %s9, 1
    %s17 = ssub.s32 %s9, %s16
    %p18 = scmp.eq.s32.totalorder %s17, 0
    %s20 = sadd.s32 %s19, 1
    %s21 = scalar_select %p18, %s19, %s20
    %p24 = pneg %p18
    %p25 = scmp.eq.s32.totalorder %s9, 1
    %p26 = por %p24, %p25
    %p27 = scmp.ne.s32.totalorder %s19, %s22
    %p28 = scmp.eq.s32.totalorder %s9, 0
    %p29 = por %p27, %p28
    %p30 = scmp.ne.s32.totalorder %s19, %s22
    %p31 = scmp.eq.s32.totalorder %s14, 1
    %p32 = por %p30, %p31
    %p33 = scmp.ne.s32.totalorder %s22, %s23
    %p34 = scmp.eq.s32.totalorder %s14, 0
    %p35 = por %p33, %p34
    %p36 = scmp.ne.s32.totalorder %s22, %s23
    %p37 = scmp.eq.s32.totalorder %s15, 1
    %p38 = por %p36, %p37
    %p40 = scmp.ne.s32.totalorder %s23, %s39
    %p41 = scmp.eq.s32.totalorder %s15, 0
    %p42 = por %p40, %p41
    %s43 = ssub.s32 %s9, %s16
    %p44 = scmp.eq.s32.totalorder %s43, 0
    %s46 = sadd.s32 %s45, 1
    %s47 = scalar_select %p44, %s45, %s46
    %p50 = pneg %p44
    %p51 = scmp.eq.s32.totalorder %s9, 1
    %p52 = por %p50, %p51
    %p53 = scmp.ne.s32.totalorder %s45, %s48
    %p54 = scmp.eq.s32.totalorder %s9, 0
    %p55 = por %p53, %p54
    %p56 = scmp.ne.s32.totalorder %s45, %s48
    %p57 = scmp.eq.s32.totalorder %s14, 1
    %p58 = por %p56, %p57
    %p59 = scmp.ne.s32.totalorder %s48, %s49
    %p60 = scmp.eq.s32.totalorder %s14, 0
    %p61 = por %p59, %p60
    %p62 = scmp.ne.s32.totalorder %s48, %s49
    %p63 = scmp.eq.s32.totalorder %s15, 1
    %p64 = por %p62, %p63
    %p66 = scmp.ne.s32.totalorder %s49, %s65
    %p67 = scmp.eq.s32.totalorder %s15, 0
    %p68 = por %p66, %p67
    %s69 = ssub.s32 %s9, %s16
    %p70 = scmp.eq.s32.totalorder %s69, 0
    %s72 = sadd.s32 %s71, 1
    %s73 = scalar_select %p70, %s71, %s72
    %p76 = pneg %p70
    %p77 = scmp.eq.s32.totalorder %s9, 1
    %p78 = por %p76, %p77
    %p79 = scmp.ne.s32.totalorder %s71, %s74
    %p80 = scmp.eq.s32.totalorder %s9, 0
    %p81 = por %p79, %p80
    %p82 = scmp.ne.s32.totalorder %s71, %s74
    %p83 = scmp.eq.s32.totalorder %s14, 1
    %p84 = por %p82, %p83
    %p85 = scmp.ne.s32.totalorder %s74, %s75
    %p86 = scmp.eq.s32.totalorder %s14, 0
    %p87 = por %p85, %p86
    %p88 = scmp.ne.s32.totalorder %s74, %s75
    %p89 = scmp.eq.s32.totalorder %s15, 1
    %p90 = por %p88, %p89
    %p92 = scmp.ne.s32.totalorder %s75, %s91
    %p93 = scmp.eq.s32.totalorder %s15, 0
    %p94 = por %p92, %p93
    %s95 = ssub.s32 %s9, %s16
    %p96 = scmp.eq.s32.totalorder %s95, 0
    %s98 = sadd.s32 %s97, 1
    %s99 = scalar_select %p96, %s97, %s98
    %p102 = pneg %p96
    %p103 = scmp.eq.s32.totalorder %s9, 1
    %p104 = por %p102, %p103
    %p105 = scmp.ne.s32.totalorder %s97, %s100
    %p106 = scmp.eq.s32.totalorder %s9, 0
    %p107 = por %p105, %p106
    %p108 = scmp.ne.s32.totalorder %s97, %s100
    %p109 = scmp.eq.s32.totalorder %s14, 1
    %p110 = por %p108, %p109
    %p111 = scmp.ne.s32.totalorder %s100, %s101
    %p112 = scmp.eq.s32.totalorder %s14, 0
    %p113 = por %p111, %p112
    %p114 = scmp.ne.s32.totalorder %s100, %s101
    %p115 = scmp.eq.s32.totalorder %s15, 1
    %p116 = por %p114, %p115
    %p118 = scmp.ne.s32.totalorder %s101, %s117
    %p119 = scmp.eq.s32.totalorder %s15, 0
    %p120 = por %p118, %p119
    %p121 = scmp.le.s32.totalorder 1, %s9
    %p122 = scmp.lt.s32.totalorder %s9, 3
    %p123 = pnand %p121, %p122
    %p124 = pneg %p123
    // Predicated region
    $region9: #{conv_trans_block.12} parent=5 // pred_check
      _
    $region10: #{conv_trans_block.12} parent=5 // pred_check_branch
      %126 = sbr.rel (%p123) target = $region12
    $region11: #{conv_trans_block.12} parent=5 // pred_region
      %s127 = ssub.s32 %s9, 1
    $region12: #{conv_trans_block.12} parent=5 // pred_fallthru
      _
    %p128 = scmp.lt.s32.totalorder %s9, 2
    // Predicated region
    $region13: #{conv_trans_block.12} parent=5 // pred_check
      %p129 = pneg %p128
    $region14: #{conv_trans_block.12} parent=5 // pred_check_branch
      %131 = sbr.rel (%p129) target = $region16
    $region15: #{conv_trans_block.12} parent=5 // pred_region
      // Predicated region
      $region17: #{conv_trans_block.12} parent=15 // pred_check
        %p132 = pneg %p29
      $region18: #{conv_trans_block.12} parent=15 // pred_check_branch
        %134 = sbr.rel (%p132) target = $region20
      $region19: #{conv_trans_block.12} parent=15 // pred_region
        %p135 = scmp.lt.s32.totalorder %s9, 1
        %s136 = scalar_select %p135, %s9, 1
        %s137 = smul.addr %s136, 12
        %s138 = smul.addr %s137, 4
        %s139 = scalar_lea.vmem %s0, %s138
      $region20: #{conv_trans_block.12} parent=15 // pred_fallthru
        _
      // Predicated region
      $region21: #{conv_trans_block.12} parent=15 // pred_check
        %p140 = pneg %p55
      $region22: #{conv_trans_block.12} parent=15 // pred_check_branch
        %142 = sbr.rel (%p140) target = $region24
      $region23: #{conv_trans_block.12} parent=15 // pred_region
        %p143 = scmp.lt.s32.totalorder %s9, 1
        %s144 = scalar_select %p143, %s9, 1
        %s145 = smul.addr %s144, 12
        %s146 = smul.addr %s145, 4
        %s147 = scalar_lea.vmem %s1, %s146
      $region24: #{conv_trans_block.12} parent=15 // pred_fallthru
        _
      // Predicated region
      $region25: #{conv_trans_block.12} parent=15 // pred_check
        %p148 = pneg %p81
      $region26: #{conv_trans_block.12} parent=15 // pred_check_branch
        %150 = sbr.rel (%p148) target = $region28
      $region27: #{conv_trans_block.12} parent=15 // pred_region
        %p151 = scmp.lt.s32.totalorder %s9, 1
        %s152 = scalar_select %p151, %s9, 1
        %s153 = smul.addr %s152, 12
        %s154 = smul.addr %s153, 4
        %s155 = scalar_lea.vmem %s2, %s154
      $region28: #{conv_trans_block.12} parent=15 // pred_fallthru
        _
    $region16: #{conv_trans_block.12} parent=5 // pred_fallthru
      _
    %p156 = scmp.le.s32.totalorder 1, %s9
    %p157 = scmp.lt.s32.totalorder %s9, 3
    %p158 = pnand %p156, %p157
    %p159 = pneg %p158
    // Predicated region
    $region29: #{conv_trans_block.12} parent=5 // pred_check
      _
    $region30: #{conv_trans_block.12} parent=5 // pred_check_branch
      %161 = sbr.rel (%p158) target = $region32
    $region31: #{conv_trans_block.12} parent=5 // pred_region
      %s162 = ssub.s32 %s9, 1
      %p163 = scmp.lt.s32.totalorder %s14, 1
      %s164 = scalar_select %p163, %s14, 1
      %s165 = smul.addr %s164, 12
      %s166 = smul.addr %s165, 4
      %s167 = scalar_lea.vmem %s0, %s166
      %p168 = pneg %p35
      %p169 = pneg %p32
      %p170 = scmp.lt.s32.totalorder %s14, 1
      %s171 = scalar_select %p170, %s14, 1
      %s172 = smul.addr %s171, 12
      %s173 = smul.addr %s172, 4
      %s174 = scalar_lea.vmem %s1, %s173
      %p175 = pneg %p61
      %p176 = pneg %p58
      %p177 = scmp.lt.s32.totalorder %s14, 1
      %s178 = scalar_select %p177, %s14, 1
      %s179 = smul.addr %s178, 12
      %s180 = smul.addr %s179, 4
      %s181 = scalar_lea.vmem %s2, %s180
      %p182 = pneg %p87
      %p183 = pneg %p84
      %p184 = pneg %p113
      %p185 = pneg %p110
      %p186 = scmp.lt.s32.totalorder %s14, 1
      %s187 = scalar_select %p186, %s14, 1
      %s188 = smul.addr %s187, 12
      %s189 = smul.addr %s188, 4
      %s190 = scalar_lea.vmem %s3, %s189
      %p191 = scmp.lt.s32.totalorder %s14, 1
      %s192 = scalar_select %p191, %s14, 1
      %s193 = smul.addr %s192, 12
      %s194 = smul.addr %s193, 4
      %s195 = scalar_lea.vmem %s0, %s194
      %p196 = scmp.lt.s32.totalorder %s14, 1
      %s197 = scalar_select %p196, %s14, 1
      %s198 = smul.addr %s197, 12
      %s199 = smul.addr %s198, 4
      %s200 = scalar_lea.vmem %s1, %s199
      %p201 = scmp.lt.s32.totalorder %s14, 1
      %s202 = scalar_select %p201, %s14, 1
      %s203 = smul.addr %s202, 12
      %s204 = smul.addr %s203, 4
      %s205 = scalar_lea.vmem %s2, %s204
      %p206 = scmp.lt.s32.totalorder %s14, 1
      %s207 = scalar_select %p206, %s14, 1
      %s208 = smul.addr %s207, 12
      %s209 = smul.addr %s208, 4
      %s210 = scalar_lea.vmem %s3, %s209
      %v212 = vld [vmem:[%s195] sm:$0xf]
      %v213 = vld [vmem:[%s195 + $0x4] sm:$0xf]
      %v214 = vld [vmem:[%s195 + $0x8] sm:$0x1]
      %v215 = vld [vmem:[%s195 + $0xc] sm:$0xf]
      %v216 = vld [vmem:[%s195 + $0x10] sm:$0xf]
      %v217 = vld [vmem:[%s195 + $0x14] sm:$0x1]
      %v218 = vld [vmem:[%s195 + $0x18] sm:$0xf]
      %v219 = vld [vmem:[%s195 + $0x1c] sm:$0xf]
      %v220 = vld [vmem:[%s195 + $0x20] sm:$0x1]
      %v221 = vld [vmem:[%s195 + $0x24] sm:$0xf]
      %v222 = vld [vmem:[%s195 + $0x28] sm:$0xf]
      %v223 = vld [vmem:[%s195 + $0x2c] sm:$0x1]
      %v224 = vld [vmem:[%s200] sm:$0xf]
      %v225 = vld [vmem:[%s200 + $0x4] sm:$0xf]
      %v226 = vld [vmem:[%s200 + $0x8] sm:$0x1]
      %v227 = vld [vmem:[%s200 + $0xc] sm:$0xf]
      %v228 = vld [vmem:[%s200 + $0x10] sm:$0xf]
      %v229 = vld [vmem:[%s200 + $0x14] sm:$0x1]
      %v230 = vld [vmem:[%s200 + $0x18] sm:$0xf]
      %v231 = vld [vmem:[%s200 + $0x1c] sm:$0xf]
      %v232 = vld [vmem:[%s200 + $0x20] sm:$0x1]
      %v233 = vld [vmem:[%s200 + $0x24] sm:$0xf]
      %v234 = vld [vmem:[%s200 + $0x28] sm:$0xf]
      %v235 = vld [vmem:[%s200 + $0x2c] sm:$0x1]
      %v236 = vld [vmem:[%s205] sm:$0xf]
      %v237 = vld [vmem:[%s205 + $0x4] sm:$0xf]
      %v238 = vld [vmem:[%s205 + $0x8] sm:$0x1]
      %v239 = vld [vmem:[%s205 + $0xc] sm:$0xf]
      %v240 = vld [vmem:[%s205 + $0x10] sm:$0xf]
      %v241 = vld [vmem:[%s205 + $0x14] sm:$0x1]
      %v242 = vld [vmem:[%s205 + $0x18] sm:$0xf]
      %v243 = vld [vmem:[%s205 + $0x1c] sm:$0xf]
      %v244 = vld [vmem:[%s205 + $0x20] sm:$0x1]
      %v245 = vld [vmem:[%s205 + $0x24] sm:$0xf]
      %v246 = vld [vmem:[%s205 + $0x28] sm:$0xf]
      %v247 = vld [vmem:[%s205 + $0x2c] sm:$0x1]
      %v251 = vunpack.c.l.b16 %v212
      %v252 = vunpack.c.l.b16 %v213
      %v253 = vunpack.c.l.b16 %v214
      %v254 = vpack.c.b16 %v252, %v251
      %v255 = vpack.c.b16 %v253, %v253
      %v259 = vunpack.c.l.b16 %v224
      %v260 = vunpack.c.l.b16 %v225
      %v261 = vunpack.c.l.b16 %v226
      %v262 = vpack.c.b16 %v260, %v259
      %v263 = vpack.c.b16 %v261, %v261
      %vm264 = vcmask 64512
      %v266 = vsel %vm264, %v254, 0
      %v269 = vsel %vm264, %v255, 0
      %v272 = vsel %vm264, %v262, 0
      %v275 = vsel %vm264, %v263, 0
      %277 = vmatprep.subr.bf16.mxu0 0
      %278 = vmatpush1.bf16.xpose.msra.mxu0 %v272
      %279 = vmatprep.subr.bf16.mxu0 0
      %280 = vmatpush1.bf16.xpose.msra.mxu0 %v275
      %281 = vmatprep.subr.bf16.mxu0 0
      %282 = vmatpush1.bf16.xpose.msra.mxu0 0
      %283 = vmatprep.subr.bf16.mxu0 0
      %284 = vmatpush1.bf16.xpose.msra.mxu0 0
      %285 = vmatprep.subr.bf16.mxu0 0
      %286 = vmatpush1.bf16.xpose.msra.mxu0 0
      %287 = vmatprep.subr.bf16.mxu0 0
      %288 = vmatpush1.bf16.xpose.msra.mxu0 0
      %289 = vmatprep.subr.bf16.mxu0 0
      %290 = vmatpush1.bf16.xpose.msra.mxu0 0
      %291 = vmatprep.subr.bf16.mxu0 0
      %292 = vmatpush1.bf16.xpose.msra.mxu0 0
      %293 = vmatprep.subr.bf16.mxu0 0
      %294 = vmatpush1.bf16.xpose.msra.mxu0 0
      %295 = vmatprep.subr.bf16.mxu0 0
      %296 = vmatpush1.bf16.xpose.msra.mxu0 0
      %297 = vmatprep.subr.bf16.mxu0 0
      %298 = vmatpush1.bf16.xpose.msra.mxu0 0
      %299 = vmatprep.subr.bf16.mxu0 0
      %300 = vmatpush1.bf16.xpose.msra.mxu0 0
      %301 = vmatprep.subr.bf16.mxu0 0
      %302 = vmatpush1.bf16.xpose.msra.mxu0 0
      %303 = vmatprep.subr.bf16.mxu0 0
      %304 = vmatpush1.bf16.xpose.msra.mxu0 0
      %305 = vmatprep.subr.bf16.mxu0 0
      %306 = vmatpush1.bf16.xpose.msra.mxu0 0
      %307 = vmatprep.subr.bf16.mxu0 0
      %308 = vmatpush1.bf16.xpose.msra.mxu0 0
      %309 = vmatprep.mubr.bf16.mxu0 0
      %310 = vmatmul.mubr.bf16.gmra.mrb[0].mxu0 %v266
      %v311 = vpop.f32.mrb[0].mxu0
      %v312 = vadd.f32 0.0, %v311
      %v313 = vpop.f32.mrb[0].mxu0
      %v314 = vpop.f32.mrb[0].mxu0
      %v315 = vadd.f32 0.0, %v314
      %v316 = vpop.f32.mrb[0].mxu0
      %317 = vmatprep.mubr.bf16.mxu0 0
      %318 = vmatmul.mubr.bf16.gmra.mrb[0].mxu0 %v269
      %v319 = vpop.f32.mrb[0].mxu0
      %v320 = vadd.f32 0.0, %v319
      %v321 = vpop.f32.mrb[0].mxu0
      %v322 = vpop.f32.mrb[0].mxu0
      %v323 = vpop.f32.mrb[0].mxu0
      %324 = vdwg.mxu0
      %v328 = vunpack.c.l.b16 %v215
      %v329 = vunpack.c.l.b16 %v216
      %v330 = vunpack.c.l.b16 %v217
      %v331 = vpack.c.b16 %v329, %v328
      %v332 = vpack.c.b16 %v330, %v330
      %v336 = vunpack.c.l.b16 %v227
      %v337 = vunpack.c.l.b16 %v228
      %v338 = vunpack.c.l.b16 %v229
      %v339 = vpack.c.b16 %v337, %v336
      %v340 = vpack.c.b16 %v338, %v338
      %v342 = vsel %vm264, %v331, 0
      %v345 = vsel %vm264, %v332, 0
      %v348 = vsel %vm264, %v339, 0
      %v351 = vsel %vm264, %v340, 0
      %353 = vmatprep.subr.bf16.mxu0 0
      %354 = vmatpush1.bf16.xpose.msra.mxu0 %v348
      %355 = vmatprep.subr.bf16.mxu0 0
      %356 = vmatpush1.bf16.xpose.msra.mxu0 %v351
      %357 = vmatprep.subr.bf16.mxu0 0
      %358 = vmatpush1.bf16.xpose.msra.mxu0 0
      %359 = vmatprep.subr.bf16.mxu0 0
      %360 = vmatpush1.bf16.xpose.msra.mxu0 0
      %361 = vmatprep.subr.bf16.mxu0 0
      %362 = vmatpush1.bf16.xpose.msra.mxu0 0
      %363 = vmatprep.subr.bf16.mxu0 0
      %364 = vmatpush1.bf16.xpose.msra.mxu0 0
      %365 = vmatprep.subr.bf16.mxu0 0
      %366 = vmatpush1.bf16.xpose.msra.mxu0 0
      %367 = vmatprep.subr.bf16.mxu0 0
      %368 = vmatpush1.bf16.xpose.msra.mxu0 0
      %369 = vmatprep.subr.bf16.mxu0 0
      %370 = vmatpush1.bf16.xpose.msra.mxu0 0
      %371 = vmatprep.subr.bf16.mxu0 0
      %372 = vmatpush1.bf16.xpose.msra.mxu0 0
      %373 = vmatprep.subr.bf16.mxu0 0
      %374 = vmatpush1.bf16.xpose.msra.mxu0 0
      %375 = vmatprep.subr.bf16.mxu0 0
      %376 = vmatpush1.bf16.xpose.msra.mxu0 0
      %377 = vmatprep.subr.bf16.mxu0 0
      %378 = vmatpush1.bf16.xpose.msra.mxu0 0
      %379 = vmatprep.subr.bf16.mxu0 0
      %380 = vmatpush1.bf16.xpose.msra.mxu0 0
      %381 = vmatprep.subr.bf16.mxu0 0
      %382 = vmatpush1.bf16.xpose.msra.mxu0 0
      %383 = vmatprep.subr.bf16.mxu0 0
      %384 = vmatpush1.bf16.xpose.msra.mxu0 0
      %385 = vmatprep.mubr.bf16.mxu0 0
      %386 = vmatmul.mubr.bf16.gmra.mrb[0].mxu0 %v342
      %v387 = vpop.f32.mrb[0].mxu0
      %v388 = vadd.f32 0.0, %v387
      %v389 = vpop.f32.mrb[0].mxu0
      %v390 = vpop.f32.mrb[0].mxu0
      %v391 = vadd.f32 0.0, %v390
      %v392 = vpop.f32.mrb[0].mxu0
      %393 = vmatprep.mubr.bf16.mxu0 0
      %394 = vmatmul.mubr.bf16.gmra.mrb[0].mxu0 %v345
      %v395 = vpop.f32.mrb[0].mxu0
      %v396 = vadd.f32 0.0, %v395
      %v397 = vpop.f32.mrb[0].mxu0
      %v398 = vpop.f32.mrb[0].mxu0
      %v399 = vpop.f32.mrb[0].mxu0
      %400 = vdwg.mxu0
      %v404 = vunpack.c.l.b16 %v218
      %v405 = vunpack.c.l.b16 %v219
      %v406 = vunpack.c.l.b16 %v220
      %v407 = vpack.c.b16 %v405, %v404
      %v408 = vpack.c.b16 %v406, %v406
      %v412 = vunpack.c.l.b16 %v230
      %v413 = vunpack.c.l.b16 %v231
      %v414 = vunpack.c.l.b16 %v232
      %v415 = vpack.c.b16 %v413, %v412
      %v416 = vpack.c.b16 %v414, %v414
      %v418 = vsel %vm264, %v407, 0
      %v421 = vsel %vm264, %v408, 0
      %v424 = vsel %vm264, %v415, 0
      %v427 = vsel %vm264, %v416, 0
      %429 = vmatprep.subr.bf16.mxu0 0
      %430 = vmatpush1.bf16.xpose.msra.mxu0 %v424
      %431 = vmatprep.subr.bf16.mxu0 0
      %432 = vmatpush1.bf16.xpose.msra.mxu0 %v427
      %433 = vmatprep.subr.bf16.mxu0 0
      %434 = vmatpush1.bf16.xpose.msra.mxu0 0
      %435 = vmatprep.subr.bf16.mxu0 0
      %436 = vmatpush1.bf16.xpose.msra.mxu0 0
      %437 = vmatprep.subr.bf16.mxu0 0
      %438 = vmatpush1.bf16.xpose.msra.mxu0 0
      %439 = vmatprep.subr.bf16.mxu0 0
      %440 = vmatpush1.bf16.xpose.msra.mxu0 0
      %441 = vmatprep.subr.bf16.mxu0 0
      %442 = vmatpush1.bf16.xpose.msra.mxu0 0
      %443 = vmatprep.subr.bf16.mxu0 0
      %444 = vmatpush1.bf16.xpose.msra.mxu0 0
      %445 = vmatprep.subr.bf16.mxu0 0
      %446 = vmatpush1.bf16.xpose.msra.mxu0 0
      %447 = vmatprep.subr.bf16.mxu0 0
      %448 = vmatpush1.bf16.xpose.msra.mxu0 0
      %449 = vmatprep.subr.bf16.mxu0 0
      %450 = vmatpush1.bf16.xpose.msra.mxu0 0
      %451 = vmatprep.subr.bf16.mxu0 0
      %452 = vmatpush1.bf16.xpose.msra.mxu0 0
      %453 = vmatprep.subr.bf16.mxu0 0
      %454 = vmatpush1.bf16.xpose.msra.mxu0 0
      %455 = vmatprep.subr.bf16.mxu0 0
      %456 = vmatpush1.bf16.xpose.msra.mxu0 0
      %457 = vmatprep.subr.bf16.mxu0 0
      %458 = vmatpush1.bf16.xpose.msra.mxu0 0
      %459 = vmatprep.subr.bf16.mxu0 0
      %460 = vmatpush1.bf16.xpose.msra.mxu0 0
      %461 = vmatprep.mubr.bf16.mxu0 0
      %462 = vmatmul.mubr.bf16.gmra.mrb[0].mxu0 %v418
      %v463 = vpop.f32.mrb[0].mxu0
      %v464 = vadd.f32 0.0, %v463
      %v465 = vpop.f32.mrb[0].mxu0
      %v466 = vpop.f32.mrb[0].mxu0
      %v467 = vadd.f32 0.0, %v466
      %v468 = vpop.f32.mrb[0].mxu0
      %469 = vmatprep.mubr.bf16.mxu0 0
      %470 = vmatmul.mubr.bf16.gmra.mrb[0].mxu0 %v421
      %v471 = vpop.f32.mrb[0].mxu0
      %v472 = vadd.f32 0.0, %v471
      %v473 = vpop.f32.mrb[0].mxu0
      %v474 = vpop.f32.mrb[0].mxu0
      %v475 = vpop.f32.mrb[0].mxu0
      %476 = vdwg.mxu0
      %v480 = vunpack.c.l.b16 %v221
      %v481 = vunpack.c.l.b16 %v222
      %v482 = vunpack.c.l.b16 %v223
      %v483 = vpack.c.b16 %v481, %v480
      %v484 = vpack.c.b16 %v482, %v482
      %v488 = vunpack.c.l.b16 %v233
      %v489 = vunpack.c.l.b16 %v234
      %v490 = vunpack.c.l.b16 %v235
      %v491 = vpack.c.b16 %v489, %v488
      %v492 = vpack.c.b16 %v490, %v490
      %v494 = vsel %vm264, %v483, 0
      %v497 = vsel %vm264, %v484, 0
      %v500 = vsel %vm264, %v491, 0
      %v503 = vsel %vm264, %v492, 0
      %505 = vmatprep.subr.bf16.mxu0 0
      %506 = vmatpush1.bf16.xpose.msra.mxu0 %v500
      %507 = vmatprep.subr.bf16.mxu0 0
      %508 = vmatpush1.bf16.xpose.msra.mxu0 %v503
      %509 = vmatprep.subr.bf16.mxu0 0
      %510 = vmatpush1.bf16.xpose.msra.mxu0 0
      %511 = vmatprep.subr.bf16.mxu0 0
      %512 = vmatpush1.bf16.xpose.msra.mxu0 0
      %513 = vmatprep.subr.bf16.mxu0 0
      %514 = vmatpush1.bf16.xpose.msra.mxu0 0
      %515 = vmatprep.subr.bf16.mxu0 0
      %516 = vmatpush1.bf16.xpose.msra.mxu0 0
      %517 = vmatprep.subr.bf16.mxu0 0
      %518 = vmatpush1.bf16.xpose.msra.mxu0 0
      %519 = vmatprep.subr.bf16.mxu0 0
      %520 = vmatpush1.bf16.xpose.msra.mxu0 0
      %521 = vmatprep.subr.bf16.mxu0 0
      %522 = vmatpush1.bf16.xpose.msra.mxu0 0
      %523 = vmatprep.subr.bf16.mxu0 0
      %524 = vmatpush1.bf16.xpose.msra.mxu0 0
      %525 = vmatprep.subr.bf16.mxu0 0
      %526 = vmatpush1.bf16.xpose.msra.mxu0 0
      %527 = vmatprep.subr.bf16.mxu0 0
      %528 = vmatpush1.bf16.xpose.msra.mxu0 0
      %529 = vmatprep.subr.bf16.mxu0 0
      %530 = vmatpush1.bf16.xpose.msra.mxu0 0
      %531 = vmatprep.subr.bf16.mxu0 0
      %532 = vmatpush1.bf16.xpose.msra.mxu0 0
      %533 = vmatprep.subr.bf16.mxu0 0
      %534 = vmatpush1.bf16.xpose.msra.mxu0 0
      %535 = vmatprep.subr.bf16.mxu0 0
      %536 = vmatpush1.bf16.xpose.msra.mxu0 0
      %537 = vmatprep.mubr.bf16.mxu0 0
      %538 = vmatmul.mubr.bf16.gmra.mrb[0].mxu0 %v494
      %v539 = vpop.f32.mrb[0].mxu0
      %v540 = vadd.f32 0.0, %v539
      %v541 = vpop.f32.mrb[0].mxu0
      %v542 = vpop.f32.mrb[0].mxu0
      %v543 = vadd.f32 0.0, %v542
      %v544 = vpop.f32.mrb[0].mxu0
      %545 = vmatprep.mubr.bf16.mxu0 0
      %546 = vmatmul.mubr.bf16.gmra.mrb[0].mxu0 %v497
      %v547 = vpop.f32.mrb[0].mxu0
      %v548 = vadd.f32 0.0, %v547
      %v549 = vpop.f32.mrb[0].mxu0
      %v550 = vpop.f32.mrb[0].mxu0
      %v551 = vpop.f32.mrb[0].mxu0
      %552 = vdwg.mxu0
      %v553 = vmul.f32 %v312, 0.35355338
      %v554 = vmul.f32 %v315, 0.35355338
      %v555 = vmul.f32 %v320, 0.35355338
      %v556 = vmul.f32 %v388, 0.35355338
      %v557 = vmul.f32 %v391, 0.35355338
      %v558 = vmul.f32 %v396, 0.35355338
      %v559 = vmul.f32 %v464, 0.35355338
      %v560 = vmul.f32 %v467, 0.35355338
      %v561 = vmul.f32 %v472, 0.35355338
      %v562 = vmul.f32 %v540, 0.35355338
      %v563 = vmul.f32 %v543, 0.35355338
      %v564 = vmul.f32 %v548, 0.35355338
      %vm565 = vcmask 138240
      %v566 = vsel %vm565, %v553, -inf
      %567 = vmax.xlane.f32.xlu0 %v566
      %v568 = vpop.xlane.xlu0 %567
      %v569 = vsel %vm565, %v554, -inf
      %570 = vmax.xlane.f32.xlu0 %v569
      %v571 = vpop.xlane.xlu0 %570
      %vm572 = vcmask 131072
      %v573 = vsel %vm572, %v555, -inf
      %574 = vmax.xlane.f32.xlu0 %v573
      %v575 = vpop.xlane.xlu0 %574
      %v576 = vsel %vm565, %v556, -inf
      %577 = vmax.xlane.f32.xlu0 %v576
      %v578 = vpop.xlane.xlu0 %577
      %v579 = vsel %vm565, %v557, -inf
      %580 = vmax.xlane.f32.xlu0 %v579
      %v581 = vpop.xlane.xlu0 %580
      %v582 = vsel %vm572, %v558, -inf
      %583 = vmax.xlane.f32.xlu0 %v582
      %v584 = vpop.xlane.xlu0 %583
      %v585 = vsel %vm565, %v559, -inf
      %586 = vmax.xlane.f32.xlu0 %v585
      %v587 = vpop.xlane.xlu0 %586
      %v588 = vsel %vm565, %v560, -inf
      %589 = vmax.xlane.f32.xlu0 %v588
      %v590 = vpop.xlane.xlu0 %589
      %v591 = vsel %vm572, %v561, -inf
      %592 = vmax.xlane.f32.xlu0 %v591
      %v593 = vpop.xlane.xlu0 %592
      %v594 = vsel %vm565, %v562, -inf
      %595 = vmax.xlane.f32.xlu0 %v594
      %v596 = vpop.xlane.xlu0 %595
      %v597 = vsel %vm565, %v563, -inf
      %598 = vmax.xlane.f32.xlu0 %v597
      %v599 = vpop.xlane.xlu0 %598
      %v600 = vsel %vm572, %v564, -inf
      %601 = vmax.xlane.f32.xlu0 %v600
      %v602 = vpop.xlane.xlu0 %601
      %v603 = vsub.f32 %v553, %v568
      %v604 = vsub.f32 %v554, %v571
      %v605 = vsub.f32 %v555, %v575
      %v606 = vsub.f32 %v556, %v578
      %v607 = vsub.f32 %v557, %v581
      %v608 = vsub.f32 %v558, %v584
      %v609 = vsub.f32 %v559, %v587
      %v610 = vsub.f32 %v560, %v590
      %v611 = vsub.f32 %v561, %v593
      %v612 = vsub.f32 %v562, %v596
      %v613 = vsub.f32 %v563, %v599
      %v614 = vsub.f32 %v564, %v602
      %v615 = vmul.f32 %v603, 1.442695
      %v616 = vpow.pop %v615
      %v617 = vmul.f32 %v604, 1.442695
      %v618 = vpow.pop %v617
      %v619 = vmul.f32 %v605, 1.442695
      %v620 = vpow.pop %v619
      %v621 = vmul.f32 %v606, 1.442695
      %v622 = vpow.pop %v621
      %v623 = vmul.f32 %v607, 1.442695
      %v624 = vpow.pop %v623
      %v625 = vmul.f32 %v608, 1.442695
      %v626 = vpow.pop %v625
      %v627 = vmul.f32 %v609, 1.442695
      %v628 = vpow.pop %v627
      %v629 = vmul.f32 %v610, 1.442695
      %v630 = vpow.pop %v629
      %v631 = vmul.f32 %v611, 1.442695
      %v632 = vpow.pop %v631
      %v633 = vmul.f32 %v612, 1.442695
      %v634 = vpow.pop %v633
      %v635 = vmul.f32 %v613, 1.442695
      %v636 = vpow.pop %v635
      %v637 = vmul.f32 %v614, 1.442695
      %v638 = vpow.pop %v637
      %v639 = vsel %vm565, %v616, 0.0
      %640 = vadd.xlane.f32.xlu0 %v639
      %v641 = vpop.xlane.xlu0 %640
      %v642 = vsel %vm565, %v618, 0.0
      %643 = vadd.xlane.f32.xlu0 %v642
      %v644 = vpop.xlane.xlu0 %643
      %v645 = vsel %vm572, %v620, 0.0
      %646 = vadd.xlane.f32.xlu0 %v645
      %v647 = vpop.xlane.xlu0 %646
      %v648 = vsel %vm565, %v622, 0.0
      %649 = vadd.xlane.f32.xlu0 %v648
      %v650 = vpop.xlane.xlu0 %649
      %v651 = vsel %vm565, %v624, 0.0
      %652 = vadd.xlane.f32.xlu0 %v651
      %v653 = vpop.xlane.xlu0 %652
      %v654 = vsel %vm572, %v626, 0.0
      %655 = vadd.xlane.f32.xlu0 %v654
      %v656 = vpop.xlane.xlu0 %655
      %v657 = vsel %vm565, %v628, 0.0
      %658 = vadd.xlane.f32.xlu0 %v657
      %v659 = vpop.xlane.xlu0 %658
      %v660 = vsel %vm565, %v630, 0.0
      %661 = vadd.xlane.f32.xlu0 %v660
      %v662 = vpop.xlane.xlu0 %661
      %v663 = vsel %vm572, %v632, 0.0
      %664 = vadd.xlane.f32.xlu0 %v663
      %v665 = vpop.xlane.xlu0 %664
      %v666 = vsel %vm565, %v634, 0.0
      %667 = vadd.xlane.f32.xlu0 %v666
      %v668 = vpop.xlane.xlu0 %667
      %v669 = vsel %vm565, %v636, 0.0
      %670 = vadd.xlane.f32.xlu0 %v669
      %v671 = vpop.xlane.xlu0 %670
      %v672 = vsel %vm572, %v638, 0.0
      %673 = vadd.xlane.f32.xlu0 %v672
      %v674 = vpop.xlane.xlu0 %673
      %v675 = vrcp.pop %v641
      %v676 = vrcp.pop %v644
      %v677 = vrcp.pop %v647
      %v678 = vrcp.pop %v650
      %v679 = vrcp.pop %v653
      %v680 = vrcp.pop %v656
      %v681 = vrcp.pop %v659
      %v682 = vrcp.pop %v662
      %v683 = vrcp.pop %v665
      %v684 = vrcp.pop %v668
      %v685 = vrcp.pop %v671
      %v686 = vrcp.pop %v674
      %v687 = vmul.f32 %v616, %v675
      %v688 = vmul.f32 %v618, %v676
      %v689 = vmul.f32 %v620, %v677
      %v690 = vmul.f32 %v622, %v678
      %v691 = vmul.f32 %v624, %v679
      %v692 = vmul.f32 %v626, %v680
      %v693 = vmul.f32 %v628, %v681
      %v694 = vmul.f32 %v630, %v682
      %v695 = vmul.f32 %v632, %v683
      %v696 = vmul.f32 %v634, %v684
      %v697 = vmul.f32 %v636, %v685
      %v698 = vmul.f32 %v638, %v686
      %v699 = vpack.c.bf16 %v688, %v687
      %v700 = vpack.c.bf16 %v689, %v689
      %v701 = vpack.c.bf16 %v691, %v690
      %v702 = vpack.c.bf16 %v692, %v692
      %v703 = vpack.c.bf16 %v694, %v693
      %v704 = vpack.c.bf16 %v695, %v695
      %v705 = vpack.c.bf16 %v697, %v696
      %v706 = vpack.c.bf16 %v698, %v698
      %v710 = vunpack.c.l.b16 %v236
      %v711 = vunpack.c.l.b16 %v237
      %v712 = vunpack.c.l.b16 %v238
      %v713 = vpack.c.b16 %v711, %v710
      %v714 = vpack.c.b16 %v712, %v712
      %v717 = vsel %vm565, %v699, 0
      %v720 = vsel %vm565, %v700, 0
      %vm722 = vcmask 1040384
      %v723 = vsel 0, 4294967295, 65535
      %v724 = vsel %vm722, %v723, 0
      %v726 = vand.u32 %v714, %v724
      %728 = vmatprep.subr.bf16.mxu0 0
      %729 = vmatpush1.bf16.msra.mxu0 %v713
      %730 = vmatprep.subr.bf16.mxu0 0
      %731 = vmatpush1.bf16.msra.mxu0 %v726
      %732 = vmatprep.subr.bf16.mxu0 0
      %733 = vmatpush1.bf16.msra.mxu0 0
      %734 = vmatprep.subr.bf16.mxu0 0
      %735 = vmatpush1.bf16.msra.mxu0 0
      %736 = vmatprep.subr.bf16.mxu0 0
      %737 = vmatpush1.bf16.msra.mxu0 0
      %738 = vmatprep.subr.bf16.mxu0 0
      %739 = vmatpush1.bf16.msra.mxu0 0
      %740 = vmatprep.subr.bf16.mxu0 0
      %741 = vmatpush1.bf16.msra.mxu0 0
      %742 = vmatprep.subr.bf16.mxu0 0
      %743 = vmatpush1.bf16.msra.mxu0 0
      %744 = vmatprep.subr.bf16.mxu0 0
      %745 = vmatpush1.bf16.msra.mxu0 0
      %746 = vmatprep.subr.bf16.mxu0 0
      %747 = vmatpush1.bf16.msra.mxu0 0
      %748 = vmatprep.subr.bf16.mxu0 0
      %749 = vmatpush1.bf16.msra.mxu0 0
      %750 = vmatprep.subr.bf16.mxu0 0
      %751 = vmatpush1.bf16.msra.mxu0 0
      %752 = vmatprep.subr.bf16.mxu0 0
      %753 = vmatpush1.bf16.msra.mxu0 0
      %754 = vmatprep.subr.bf16.mxu0 0
      %755 = vmatpush1.bf16.msra.mxu0 0
      %756 = vmatprep.subr.bf16.mxu0 0
      %757 = vmatpush1.bf16.msra.mxu0 0
      %758 = vmatprep.subr.bf16.mxu0 0
      %759 = vmatpush1.bf16.msra.mxu0 0
      %760 = vmatprep.mubr.bf16.mxu0 0
      %761 = vmatmul.mubr.bf16.gmra.mrb[0].mxu0 %v717
      %v762 = vpop.f32.mrb[0].mxu0
      %v763 = vadd.f32 0.0, %v762
      %v764 = vpop.f32.mrb[0].mxu0
      %v765 = vpop.f32.mrb[0].mxu0
      %v766 = vadd.f32 0.0, %v765
      %v767 = vpop.f32.mrb[0].mxu0
      %768 = vmatprep.mubr.bf16.mxu0 0
      %769 = vmatmul.mubr.bf16.gmra.mrb[0].mxu0 %v720
      %v770 = vpop.f32.mrb[0].mxu0
      %v771 = vadd.f32 0.0, %v770
      %v772 = vpop.f32.mrb[0].mxu0
      %v773 = vpop.f32.mrb[0].mxu0
      %v774 = vpop.f32.mrb[0].mxu0
      %775 = vdwg.mxu0
      %v779 = vunpack.c.l.b16 %v239
      %v780 = vunpack.c.l.b16 %v240
      %v781 = vunpack.c.l.b16 %v241
      %v782 = vpack.c.b16 %v780, %v779
      %v783 = vpack.c.b16 %v781, %v781
      %v786 = vsel %vm565, %v701, 0
      %v789 = vsel %vm565, %v702, 0
      %v792 = vand.u32 %v783, %v724
      %794 = vmatprep.subr.bf16.mxu0 0
      %795 = vmatpush1.bf16.msra.mxu0 %v782
      %796 = vmatprep.subr.bf16.mxu0 0
      %797 = vmatpush1.bf16.msra.mxu0 %v792
      %798 = vmatprep.subr.bf16.mxu0 0
      %799 = vmatpush1.bf16.msra.mxu0 0
      %800 = vmatprep.subr.bf16.mxu0 0
      %801 = vmatpush1.bf16.msra.mxu0 0
      %802 = vmatprep.subr.bf16.mxu0 0
      %803 = vmatpush1.bf16.msra.mxu0 0
      %804 = vmatprep.subr.bf16.mxu0 0
      %805 = vmatpush1.bf16.msra.mxu0 0
      %806 = vmatprep.subr.bf16.mxu0 0
      %807 = vmatpush1.bf16.msra.mxu0 0
      %808 = vmatprep.subr.bf16.mxu0 0
      %809 = vmatpush1.bf16.msra.mxu0 0
      %810 = vmatprep.subr.bf16.mxu0 0
      %811 = vmatpush1.bf16.msra.mxu0 0
      %812 = vmatprep.subr.bf16.mxu0 0
      %813 = vmatpush1.bf16.msra.mxu0 0
      %814 = vmatprep.subr.bf16.mxu0 0
      %815 = vmatpush1.bf16.msra.mxu0 0
      %816 = vmatprep.subr.bf16.mxu0 0
      %817 = vmatpush1.bf16.msra.mxu0 0
      %818 = vmatprep.subr.bf16.mxu0 0
      %819 = vmatpush1.bf16.msra.mxu0 0
      %820 = vmatprep.subr.bf16.mxu0 0
      %821 = vmatpush1.bf16.msra.mxu0 0
      %822 = vmatprep.subr.bf16.mxu0 0
      %823 = vmatpush1.bf16.msra.mxu0 0
      %824 = vmatprep.subr.bf16.mxu0 0
      %825 = vmatpush1.bf16.msra.mxu0 0
      %826 = vmatprep.mubr.bf16.mxu0 0
      %827 = vmatmul.mubr.bf16.gmra.mrb[0].mxu0 %v786
      %v828 = vpop.f32.mrb[0].mxu0
      %v829 = vadd.f32 0.0, %v828
      %v830 = vpop.f32.mrb[0].mxu0
      %v831 = vpop.f32.mrb[0].mxu0
      %v832 = vadd.f32 0.0, %v831
      %v833 = vpop.f32.mrb[0].mxu0
      %834 = vmatprep.mubr.bf16.mxu0 0
      %835 = vmatmul.mubr.bf16.gmra.mrb[0].mxu0 %v789
      %v836 = vpop.f32.mrb[0].mxu0
      %v837 = vadd.f32 0.0, %v836
      %v838 = vpop.f32.mrb[0].mxu0
      %v839 = vpop.f32.mrb[0].mxu0
      %v840 = vpop.f32.mrb[0].mxu0
      %841 = vdwg.mxu0
      %v845 = vunpack.c.l.b16 %v242
      %v846 = vunpack.c.l.b16 %v243
      %v847 = vunpack.c.l.b16 %v244
      %v848 = vpack.c.b16 %v846, %v845
      %v849 = vpack.c.b16 %v847, %v847
      %v852 = vsel %vm565, %v703, 0
      %v855 = vsel %vm565, %v704, 0
      %v858 = vand.u32 %v849, %v724
      %860 = vmatprep.subr.bf16.mxu0 0
      %861 = vmatpush1.bf16.msra.mxu0 %v848
      %862 = vmatprep.subr.bf16.mxu0 0
      %863 = vmatpush1.bf16.msra.mxu0 %v858
      %864 = vmatprep.subr.bf16.mxu0 0
      %865 = vmatpush1.bf16.msra.mxu0 0
      %866 = vmatprep.subr.bf16.mxu0 0
      %867 = vmatpush1.bf16.msra.mxu0 0
      %868 = vmatprep.subr.bf16.mxu0 0
      %869 = vmatpush1.bf16.msra.mxu0 0
      %870 = vmatprep.subr.bf16.mxu0 0
      %871 = vmatpush1.bf16.msra.mxu0 0
      %872 = vmatprep.subr.bf16.mxu0 0
      %873 = vmatpush1.bf16.msra.mxu0 0
      %874 = vmatprep.subr.bf16.mxu0 0
      %875 = vmatpush1.bf16.msra.mxu0 0
      %876 = vmatprep.subr.bf16.mxu0 0
      %877 = vmatpush1.bf16.msra.mxu0 0
      %878 = vmatprep.subr.bf16.mxu0 0
      %879 = vmatpush1.bf16.msra.mxu0 0
      %880 = vmatprep.subr.bf16.mxu0 0
      %881 = vmatpush1.bf16.msra.mxu0 0
      %882 = vmatprep.subr.bf16.mxu0 0
      %883 = vmatpush1.bf16.msra.mxu0 0
      %884 = vmatprep.subr.bf16.mxu0 0
      %885 = vmatpush1.bf16.msra.mxu0 0
      %886 = vmatprep.subr.bf16.mxu0 0
      %887 = vmatpush1.bf16.msra.mxu0 0
      %888 = vmatprep.subr.bf16.mxu0 0
      %889 = vmatpush1.bf16.msra.mxu0 0
      %890 = vmatprep.subr.bf16.mxu0 0
      %891 = vmatpush1.bf16.msra.mxu0 0
      %892 = vmatprep.mubr.bf16.mxu0 0
      %893 = vmatmul.mubr.bf16.gmra.mrb[0].mxu0 %v852
      %v894 = vpop.f32.mrb[0].mxu0
      %v895 = vadd.f32 0.0, %v894
      %v896 = vpop.f32.mrb[0].mxu0
      %v897 = vpop.f32.mrb[0].mxu0
      %v898 = vadd.f32 0.0, %v897
      %v899 = vpop.f32.mrb[0].mxu0
      %900 = vmatprep.mubr.bf16.mxu0 0
      %901 = vmatmul.mubr.bf16.gmra.mrb[0].mxu0 %v855
      %v902 = vpop.f32.mrb[0].mxu0
      %v903 = vadd.f32 0.0, %v902
      %v904 = vpop.f32.mrb[0].mxu0
      %v905 = vpop.f32.mrb[0].mxu0
      %v906 = vpop.f32.mrb[0].mxu0
      %907 = vdwg.mxu0
      %v911 = vunpack.c.l.b16 %v245
      %v912 = vunpack.c.l.b16 %v246
      %v913 = vunpack.c.l.b16 %v247
      %v914 = vpack.c.b16 %v912, %v911
      %v915 = vpack.c.b16 %v913, %v913
      %v918 = vsel %vm565, %v705, 0
      %v921 = vsel %vm565, %v706, 0
      %v924 = vand.u32 %v915, %v724
      %926 = vmatprep.subr.bf16.mxu0 0
      %927 = vmatpush1.bf16.msra.mxu0 %v914
      %928 = vmatprep.subr.bf16.mxu0 0
      %929 = vmatpush1.bf16.msra.mxu0 %v924
      %930 = vmatprep.subr.bf16.mxu0 0
      %931 = vmatpush1.bf16.msra.mxu0 0
      %932 = vmatprep.subr.bf16.mxu0 0
      %933 = vmatpush1.bf16.msra.mxu0 0
      %934 = vmatprep.subr.bf16.mxu0 0
      %935 = vmatpush1.bf16.msra.mxu0 0
      %936 = vmatprep.subr.bf16.mxu0 0
      %937 = vmatpush1.bf16.msra.mxu0 0
      %938 = vmatprep.subr.bf16.mxu0 0
      %939 = vmatpush1.bf16.msra.mxu0 0
      %940 = vmatprep.subr.bf16.mxu0 0
      %941 = vmatpush1.bf16.msra.mxu0 0
      %942 = vmatprep.subr.bf16.mxu0 0
      %943 = vmatpush1.bf16.msra.mxu0 0
      %944 = vmatprep.subr.bf16.mxu0 0
      %945 = vmatpush1.bf16.msra.mxu0 0
      %946 = vmatprep.subr.bf16.mxu0 0
      %947 = vmatpush1.bf16.msra.mxu0 0
      %948 = vmatprep.subr.bf16.mxu0 0
      %949 = vmatpush1.bf16.msra.mxu0 0
      %950 = vmatprep.subr.bf16.mxu0 0
      %951 = vmatpush1.bf16.msra.mxu0 0
      %952 = vmatprep.subr.bf16.mxu0 0
      %953 = vmatpush1.bf16.msra.mxu0 0
      %954 = vmatprep.subr.bf16.mxu0 0
      %955 = vmatpush1.bf16.msra.mxu0 0
      %956 = vmatprep.subr.bf16.mxu0 0
      %957 = vmatpush1.bf16.msra.mxu0 0
      %958 = vmatprep.mubr.bf16.mxu0 0
      %959 = vmatmul.mubr.bf16.gmra.mrb[0].mxu0 %v918
      %v960 = vpop.f32.mrb[0].mxu0
      %v961 = vadd.f32 0.0, %v960
      %v962 = vpop.f32.mrb[0].mxu0
      %v963 = vpop.f32.mrb[0].mxu0
      %v964 = vadd.f32 0.0, %v963
      %v965 = vpop.f32.mrb[0].mxu0
      %966 = vmatprep.mubr.bf16.mxu0 0
      %967 = vmatmul.mubr.bf16.gmra.mrb[0].mxu0 %v921
      %v968 = vpop.f32.mrb[0].mxu0
      %v969 = vadd.f32 0.0, %v968
      %v970 = vpop.f32.mrb[0].mxu0
      %v971 = vpop.f32.mrb[0].mxu0
      %v972 = vpop.f32.mrb[0].mxu0
      %973 = vdwg.mxu0
      %v974 = vpack.c.bf16 %v766, %v763
      %v975 = vpack.c.bf16 %v771, %v771
      %v976 = vpack.c.bf16 %v832, %v829
      %v977 = vpack.c.bf16 %v837, %v837
      %v978 = vpack.c.bf16 %v898, %v895
      %v979 = vpack.c.bf16 %v903, %v903
      %v980 = vpack.c.bf16 %v964, %v961
      %v981 = vpack.c.bf16 %v969, %v969
      %v990 = vunpack.c.l.b16 %v974
      %v991 = vunpack.c.h.b16 %v974
      %v992 = vunpack.c.l.b16 %v975
      %v993 = vunpack.c.l.b16 %v976
      %v994 = vunpack.c.h.b16 %v976
      %v995 = vunpack.c.l.b16 %v977
      %v996 = vunpack.c.l.b16 %v978
      %v997 = vunpack.c.h.b16 %v978
      %v998 = vunpack.c.l.b16 %v979
      %v999 = vunpack.c.l.b16 %v980
      %v1000 = vunpack.c.h.b16 %v980
      %v1001 = vunpack.c.l.b16 %v981
      %v1002 = vpack.c.b16 %v990, %v990
      %v1003 = vpack.c.b16 %v991, %v991
      %v1004 = vpack.c.b16 %v992, %v992
      %v1005 = vpack.c.b16 %v993, %v993
      %v1006 = vpack.c.b16 %v994, %v994
      %v1007 = vpack.c.b16 %v995, %v995
      %v1008 = vpack.c.b16 %v996, %v996
      %v1009 = vpack.c.b16 %v997, %v997
      %v1010 = vpack.c.b16 %v998, %v998
      %v1011 = vpack.c.b16 %v999, %v999
      %v1012 = vpack.c.b16 %v1000, %v1000
      %v1013 = vpack.c.b16 %v1001, %v1001
      %vm1026 = vcmask 60416
      %1027 = vst.msk [vmem:[%s210] sm:$0xf] %vm1026, %v1002
      %1028 = vst.msk [vmem:[%s210 + $0x4] sm:$0xf] %vm1026, %v1003
      %vm1029 = vcmask 57344
      %vm1030 = vsmask.f32 256
      %vm1031 = vmand %vm1029, %vm1030
      %v1032 = vld [vmem:[%s210 + $0x8] sm:$0x1]
      %v1033 = vsel %vm1031, %v1004, %v1032
      %1034 = vst [vmem:[%s210 + $0x8] sm:$0x1] %v1033
      %1035 = vst.msk [vmem:[%s210 + $0xc] sm:$0xf] %vm1026, %v1005
      %1036 = vst.msk [vmem:[%s210 + $0x10] sm:$0xf] %vm1026, %v1006
      %v1037 = vld [vmem:[%s210 + $0x14] sm:$0x1]
      %v1038 = vsel %vm1031, %v1007, %v1037
      %1039 = vst [vmem:[%s210 + $0x14] sm:$0x1] %v1038
      %1040 = vst.msk [vmem:[%s210 + $0x18] sm:$0xf] %vm1026, %v1008
      %1041 = vst.msk [vmem:[%s210 + $0x1c] sm:$0xf] %vm1026, %v1009
      %v1042 = vld [vmem:[%s210 + $0x20] sm:$0x1]
      %v1043 = vsel %vm1031, %v1010, %v1042
      %1044 = vst [vmem:[%s210 + $0x20] sm:$0x1] %v1043
      %1045 = vst.msk [vmem:[%s210 + $0x24] sm:$0xf] %vm1026, %v1011
      %1046 = vst.msk [vmem:[%s210 + $0x28] sm:$0xf] %vm1026, %v1012
      %v1047 = vld [vmem:[%s210 + $0x2c] sm:$0x1]
      %v1048 = vsel %vm1031, %v1013, %v1047
      %1049 = vst [vmem:[%s210 + $0x2c] sm:$0x1] %v1048
      %p1050 = scmp.lt.s32.totalorder %s14, 1
      %s1051 = scalar_select %p1050, %s14, 1
      %s1052 = smul.addr %s1051, 12
      %s1053 = smul.addr %s1052, 4
      %s1054 = scalar_lea.vmem %s3, %s1053
      // Predicated region
      $region33: #{conv_trans_block.12} parent=31 // pred_check
        %p1055 = pneg %p110
      $region34: #{conv_trans_block.12} parent=31 // pred_check_branch
        %1057 = sbr.rel (%p1055) target = $region36
      $region35: #{conv_trans_block.12} parent=31 // pred_region
        _
      $region36: #{conv_trans_block.12} parent=31 // pred_fallthru
        _
    $region32: #{conv_trans_block.12} parent=5 // pred_fallthru
      _
    %p1058 = scmp.le.s32.totalorder 2, %s9
    // Predicated region
    $region37: #{conv_trans_block.12} parent=5 // pred_check
      %p1059 = pneg %p1058
    $region38: #{conv_trans_block.12} parent=5 // pred_check_branch
      %1061 = sbr.rel (%p1059) target = $region40
    $region39: #{conv_trans_block.12} parent=5 // pred_region
      %s1062 = ssub.s32 %s9, 2
      // Predicated region
      $region41: #{conv_trans_block.12} parent=39 // pred_check
        %p1063 = pneg %p116
      $region42: #{conv_trans_block.12} parent=39 // pred_check_branch
        %1065 = sbr.rel (%p1063) target = $region44
      $region43: #{conv_trans_block.12} parent=39 // pred_region
        %p1066 = scmp.lt.s32.totalorder %s15, 1
        %s1067 = scalar_select %p1066, %s15, 1
        %s1068 = smul.addr %s1067, 12
        %s1069 = smul.addr %s1068, 4
        %s1070 = scalar_lea.vmem %s3, %s1069
      $region44: #{conv_trans_block.12} parent=39 // pred_fallthru
        _
    $region40: #{conv_trans_block.12} parent=5 // pred_fallthru
      _
  $region6: #{conv_trans_block.12} parent=0 // loop_footer
    %s13 = sadd.s32 1, %s9
  $region7: #{conv_trans_block.12} parent=0 // loop_footer_branch
    %8 = sbr.rel target = $region3
  $region8: #{conv_trans_block.12} parent=0 // loop_exit
    _

// kernel: conv_trans_block.15
$region0: #{conv_trans_block.15}
  #allocation0 [shape = 'u32[]', space=smem, size = 0x4, offset = 0x4, fixed_abs, tag = 'smem constant byte address 0x4 - core index']
  #allocation1 [shape = 'u32[144,128]{1,0:T(1,128)}', space=vmem, size = 0x12000, scoped, tag = 'internal scratch']
  %s0 = inlined_call_operand.vmem [shape: bf16[34,128], index: 0, kind: input, shape index: {}]
  %s1 = inlined_call_operand.vmem [shape: bf16[128,32], index: 1, kind: input, shape index: {}]
  %s2 = inlined_call_operand.vmem [shape: f32[1,32], index: 2, kind: input, shape index: {}]
  %s3 = inlined_call_operand.vmem [shape: f32[34,32], index: 3, kind: input, shape index: {}]
  %s4 = inlined_call_operand.vmem [shape: f32[34,32], index: 4, kind: output, shape index: {}]
  %s5 = sld [smem:[#allocation0]]
  $region26: #{conv_trans_block.15} parent=0
    _
  %s7 = ssub.s32 1, %s5
  %s8 = scalar_select 0, %s7, %s5
  // Predicated region
  $region2: #{conv_trans_block.15} parent=0 // pred_check
    _
  $region3: #{conv_trans_block.15} parent=0 // pred_check_branch
    %10 = sbr.rel (0) target = $region5
  $region4: #{conv_trans_block.15} parent=0 // pred_region
    _
  $region5: #{conv_trans_block.15} parent=0 // pred_fallthru
    _
  // Predicated region
  $region6: #{conv_trans_block.15} parent=0 // pred_check
    _
  $region7: #{conv_trans_block.15} parent=0 // pred_check_branch
    %12 = sbr.rel (0) target = $region9
  $region8: #{conv_trans_block.15} parent=0 // pred_region
    _
  $region9: #{conv_trans_block.15} parent=0 // pred_fallthru
    _
  // Predicated region
  $region10: #{conv_trans_block.15} parent=0 // pred_check
    _
  $region11: #{conv_trans_block.15} parent=0 // pred_check_branch
    %14 = sbr.rel (0) target = $region13
  $region12: #{conv_trans_block.15} parent=0 // pred_region
    _
  $region13: #{conv_trans_block.15} parent=0 // pred_fallthru
    _
  // Predicated region
  $region14: #{conv_trans_block.15} parent=0 // pred_check
    _
  $region15: #{conv_trans_block.15} parent=0 // pred_check_branch
    %16 = sbr.rel (0) target = $region17
  $region16: #{conv_trans_block.15} parent=0 // pred_region
    _
  $region17: #{conv_trans_block.15} parent=0 // pred_fallthru
    _
  %v18 = vld [vmem:[%s0] sm:$0xf]
  %v19 = vld [vmem:[%s0 + $0x4] sm:$0xf]
  %v20 = vld [vmem:[%s0 + $0x8] sm:$0xf]
  %v21 = vld [vmem:[%s0 + $0xc] sm:$0xf]
  %v22 = vld [vmem:[%s0 + $0x10] sm:$0xf]
  %v23 = vld [vmem:[%s1] sm:$0xf]
  %v24 = vld [vmem:[%s1 + $0x4] sm:$0xf]
  %v25 = vld [vmem:[%s1 + $0x8] sm:$0xf]
  %v26 = vld [vmem:[%s1 + $0xc] sm:$0xf]
  %v27 = vld [vmem:[%s1 + $0x10] sm:$0xf]
  %v28 = vld [vmem:[%s1 + $0x14] sm:$0xf]
  %v29 = vld [vmem:[%s1 + $0x18] sm:$0xf]
  %v30 = vld [vmem:[%s1 + $0x1c] sm:$0xf]
  %v31 = vld [vmem:[%s1 + $0x20] sm:$0xf]
  %v32 = vld [vmem:[%s1 + $0x24] sm:$0xf]
  %v33 = vld [vmem:[%s1 + $0x28] sm:$0xf]
  %v34 = vld [vmem:[%s1 + $0x2c] sm:$0xf]
  %v35 = vld [vmem:[%s1 + $0x30] sm:$0xf]
  %v36 = vld [vmem:[%s1 + $0x34] sm:$0xf]
  %v37 = vld [vmem:[%s1 + $0x38] sm:$0xf]
  %v38 = vld [vmem:[%s1 + $0x3c] sm:$0xf]
  %v39 = vld [vmem:[%s2] sm:$0x1]
  %v41 = vlaneseq
  %v42 = vshrl.u32 %v41, 7
  %v43 = vsub.s32 0, %v42
  %v44 = vrot.slane %v39, %v43
  %v51 = vunpack.c.l.b16 %v18
  %v52 = vunpack.c.l.b16 %v19
  %v53 = vunpack.c.l.b16 %v20
  %v54 = vunpack.c.l.b16 %v21
  %v55 = vunpack.c.l.b16 %v22
  %v56 = vpack.c.b16 %v52, %v51
  %v57 = vpack.c.b16 %v54, %v53
  %v58 = vpack.c.b16 %v55, %v55
  %v78 = vunpack.c.l.b16 %v23
  %v79 = vunpack.c.l.b16 %v24
  %v80 = vunpack.c.l.b16 %v25
  %v81 = vunpack.c.l.b16 %v26
  %v82 = vunpack.c.l.b16 %v27
  %v83 = vunpack.c.l.b16 %v28
  %v84 = vunpack.c.l.b16 %v29
  %v85 = vunpack.c.l.b16 %v30
  %v86 = vunpack.c.l.b16 %v31
  %v87 = vunpack.c.l.b16 %v32
  %v88 = vunpack.c.l.b16 %v33
  %v89 = vunpack.c.l.b16 %v34
  %v90 = vunpack.c.l.b16 %v35
  %v91 = vunpack.c.l.b16 %v36
  %v92 = vunpack.c.l.b16 %v37
  %v93 = vunpack.c.l.b16 %v38
  %v94 = vpack.c.b16 %v79, %v78
  %v95 = vpack.c.b16 %v81, %v80
  %v96 = vpack.c.b16 %v83, %v82
  %v97 = vpack.c.b16 %v85, %v84
  %v98 = vpack.c.b16 %v87, %v86
  %v99 = vpack.c.b16 %v89, %v88
  %v100 = vpack.c.b16 %v91, %v90
  %v101 = vpack.c.b16 %v93, %v92
  %110 = vmatprep.subr.bf16.mxu0 0
  %111 = vmatpush1.bf16.msra.mxu0 %v94
  %112 = vmatprep.subr.bf16.mxu0 0
  %113 = vmatpush1.bf16.msra.mxu0 %v95
  %114 = vmatprep.subr.bf16.mxu0 0
  %115 = vmatpush1.bf16.msra.mxu0 %v96
  %116 = vmatprep.subr.bf16.mxu0 0
  %117 = vmatpush1.bf16.msra.mxu0 %v97
  %118 = vmatprep.subr.bf16.mxu0 0
  %119 = vmatpush1.bf16.msra.mxu0 %v98
  %120 = vmatprep.subr.bf16.mxu0 0
  %121 = vmatpush1.bf16.msra.mxu0 %v99
  %122 = vmatprep.subr.bf16.mxu0 0
  %123 = vmatpush1.bf16.msra.mxu0 %v100
  %124 = vmatprep.subr.bf16.mxu0 0
  %125 = vmatpush1.bf16.msra.mxu0 %v101
  %126 = vmatprep.subr.bf16.mxu0 0
  %127 = vmatpush1.bf16.msra.mxu0 0
  %128 = vmatprep.subr.bf16.mxu0 0
  %129 = vmatpush1.bf16.msra.mxu0 0
  %130 = vmatprep.subr.bf16.mxu0 0
  %131 = vmatpush1.bf16.msra.mxu0 0
  %132 = vmatprep.subr.bf16.mxu0 0
  %133 = vmatpush1.bf16.msra.mxu0 0
  %134 = vmatprep.subr.bf16.mxu0 0
  %135 = vmatpush1.bf16.msra.mxu0 0
  %136 = vmatprep.subr.bf16.mxu0 0
  %137 = vmatpush1.bf16.msra.mxu0 0
  %138 = vmatprep.subr.bf16.mxu0 0
  %139 = vmatpush1.bf16.msra.mxu0 0
  %140 = vmatprep.subr.bf16.mxu0 0
  %141 = vmatpush1.bf16.msra.mxu0 0
  %142 = vmatprep.mubr.bf16.mxu0 0
  %143 = vmatmul.mubr.bf16.gmra.mrb[0].mxu0 %v56
  %v144 = vpop.f32.mrb[0].mxu0
  %v145 = vadd.f32 %v44, %v144
  %v146 = vpop.f32.mrb[0].mxu0
  %v147 = vpop.f32.mrb[0].mxu0
  %v148 = vadd.f32 %v44, %v147
  %v149 = vpop.f32.mrb[0].mxu0
  %150 = vmatprep.mubr.bf16.mxu0 0
  %151 = vmatmul.mubr.bf16.gmra.mrb[0].mxu0 %v57
  %v152 = vpop.f32.mrb[0].mxu0
  %v153 = vadd.f32 %v44, %v152
  %v154 = vpop.f32.mrb[0].mxu0
  %v155 = vpop.f32.mrb[0].mxu0
  %v156 = vadd.f32 %v44, %v155
  %v157 = vpop.f32.mrb[0].mxu0
  %158 = vmatprep.mubr.bf16.mxu0 0
  %159 = vmatmul.mubr.bf16.gmra.mrb[0].mxu0 %v58
  %v160 = vpop.f32.mrb[0].mxu0
  %v161 = vadd.f32 %v44, %v160
  %v162 = vpop.f32.mrb[0].mxu0
  %v163 = vpop.f32.mrb[0].mxu0
  %v164 = vpop.f32.mrb[0].mxu0
  %165 = vdwg.mxu0
  %v166 = vld [vmem:[%s3] sm:$0xff]
  %v167 = vld [vmem:[%s3 + $0x8] sm:$0xff]
  %v168 = vld [vmem:[%s3 + $0x10] sm:$0xff]
  %v169 = vld [vmem:[%s3 + $0x18] sm:$0xff]
  %v170 = vld [vmem:[%s3 + $0x20] sm:$0xff]
  %v171 = vadd.f32 %v145, %v166
  %v172 = vadd.f32 %v148, %v167
  %v173 = vadd.f32 %v153, %v168
  %v174 = vadd.f32 %v156, %v169
  %v175 = vadd.f32 %v161, %v170
  %vm176 = vcmask 261120
  %177 = vst.msk [vmem:[%s4] sm:$0xff] %vm176, %v171
  %178 = vst.msk [vmem:[%s4 + $0x8] sm:$0xff] %vm176, %v172
  %179 = vst.msk [vmem:[%s4 + $0x10] sm:$0xff] %vm176, %v173
  %180 = vst.msk [vmem:[%s4 + $0x18] sm:$0xff] %vm176, %v174
  %181 = vst.msk [vmem:[%s4 + $0x20] sm:$0xff] %vm176, %v175
  // Predicated region
  $region18: #{conv_trans_block.15} parent=0 // pred_check
    _
  $region19: #{conv_trans_block.15} parent=0 // pred_check_branch
    %183 = sbr.rel (0) target = $region21
  $region20: #{conv_trans_block.15} parent=0 // pred_region
    _
  $region21: #{conv_trans_block.15} parent=0 // pred_fallthru
    _
  // Predicated region
  $region22: #{conv_trans_block.15} parent=0 // pred_check
    _
  $region23: #{conv_trans_block.15} parent=0 // pred_check_branch
    %185 = sbr.rel (0) target = $region25
  $region24: #{conv_trans_block.15} parent=0 // pred_region
    _
  $region25: #{conv_trans_block.15} parent=0 // pred_fallthru
    _

// kernel: conv_trans_block.14
$region0: #{conv_trans_block.14}
  #allocation0 [shape = 'u32[]', space=smem, size = 0x4, offset = 0x4, fixed_abs, tag = 'smem constant byte address 0x4 - core index']
  #allocation1 [shape = 'u32[144,128]{1,0:T(1,128)}', space=vmem, size = 0x12000, scoped, tag = 'internal scratch']
  %s0 = inlined_call_operand.vmem [shape: f32[34,32], index: 0, kind: input, shape index: {}]
  %s1 = inlined_call_operand.vmem [shape: bf16[32,128], index: 1, kind: input, shape index: {}]
  %s2 = inlined_call_operand.vmem [shape: f32[1,128], index: 2, kind: input, shape index: {}]
  %s3 = inlined_call_operand.vmem [shape: f32[1,32], index: 3, kind: input, shape index: {}]
  %s4 = inlined_call_operand.vmem [shape: f32[1,32], index: 4, kind: input, shape index: {}]
  %s5 = inlined_call_operand.vmem [shape: bf16[34,128], index: 5, kind: output, shape index: {}]
  %s6 = sld [smem:[#allocation0]]
  $region30: #{conv_trans_block.14} parent=0
    _
  %s8 = ssub.s32 1, %s6
  %s9 = scalar_select 0, %s8, %s6
  // Predicated region
  $region2: #{conv_trans_block.14} parent=0 // pred_check
    _
  $region3: #{conv_trans_block.14} parent=0 // pred_check_branch
    %11 = sbr.rel (0) target = $region5
  $region4: #{conv_trans_block.14} parent=0 // pred_region
    _
  $region5: #{conv_trans_block.14} parent=0 // pred_fallthru
    _
  // Predicated region
  $region6: #{conv_trans_block.14} parent=0 // pred_check
    _
  $region7: #{conv_trans_block.14} parent=0 // pred_check_branch
    %13 = sbr.rel (0) target = $region9
  $region8: #{conv_trans_block.14} parent=0 // pred_region
    _
  $region9: #{conv_trans_block.14} parent=0 // pred_fallthru
    _
  // Predicated region
  $region10: #{conv_trans_block.14} parent=0 // pred_check
    _
  $region11: #{conv_trans_block.14} parent=0 // pred_check_branch
    %15 = sbr.rel (0) target = $region13
  $region12: #{conv_trans_block.14} parent=0 // pred_region
    _
  $region13: #{conv_trans_block.14} parent=0 // pred_fallthru
    _
  // Predicated region
  $region14: #{conv_trans_block.14} parent=0 // pred_check
    _
  $region15: #{conv_trans_block.14} parent=0 // pred_check_branch
    %17 = sbr.rel (0) target = $region17
  $region16: #{conv_trans_block.14} parent=0 // pred_region
    _
  $region17: #{conv_trans_block.14} parent=0 // pred_fallthru
    _
  // Predicated region
  $region18: #{conv_trans_block.14} parent=0 // pred_check
    _
  $region19: #{conv_trans_block.14} parent=0 // pred_check_branch
    %19 = sbr.rel (0) target = $region21
  $region20: #{conv_trans_block.14} parent=0 // pred_region
    _
  $region21: #{conv_trans_block.14} parent=0 // pred_fallthru
    _
  %v21 = vld [vmem:[%s0] sm:$0xff]
  %v22 = vld [vmem:[%s0 + $0x8] sm:$0xff]
  %v23 = vld [vmem:[%s0 + $0x10] sm:$0xff]
  %v24 = vld [vmem:[%s0 + $0x18] sm:$0xff]
  %v25 = vld [vmem:[%s0 + $0x20] sm:$0xff]
  %vm26 = vcmask 261120
  %v27 = vsel %vm26, %v21, 0.0
  %28 = vadd.xlane.f32.xlu0 %v27
  %v29 = vpop.xlane.xlu0 %28
  %v30 = vsel %vm26, %v22, 0.0
  %31 = vadd.xlane.f32.xlu0 %v30
  %v32 = vpop.xlane.xlu0 %31
  %v33 = vsel %vm26, %v23, 0.0
  %34 = vadd.xlane.f32.xlu0 %v33
  %v35 = vpop.xlane.xlu0 %34
  %v36 = vsel %vm26, %v24, 0.0
  %37 = vadd.xlane.f32.xlu0 %v36
  %v38 = vpop.xlane.xlu0 %37
  %v39 = vsel %vm26, %v25, 0.0
  %40 = vadd.xlane.f32.xlu0 %v39
  %v41 = vpop.xlane.xlu0 %40
  %v42 = vrcp.pop 32.0
  %v43 = vmul.f32 %v29, %v42
  %v44 = vmul.f32 %v32, %v42
  %v45 = vmul.f32 %v35, %v42
  %v46 = vmul.f32 %v38, %v42
  %v47 = vmul.f32 %v41, %v42
  %v48 = vsub.f32 %v21, %v43
  %v49 = vsub.f32 %v22, %v44
  %v50 = vsub.f32 %v23, %v45
  %v51 = vsub.f32 %v24, %v46
  %v52 = vsub.f32 %v25, %v47
  %v53 = vmul.f32 %v48, %v48
  %v54 = vmul.f32 %v49, %v49
  %v55 = vmul.f32 %v50, %v50
  %v56 = vmul.f32 %v51, %v51
  %v57 = vmul.f32 %v52, %v52
  %v58 = vsel %vm26, %v53, 0.0
  %59 = vadd.xlane.f32.xlu0 %v58
  %v60 = vpop.xlane.xlu0 %59
  %v61 = vsel %vm26, %v54, 0.0
  %62 = vadd.xlane.f32.xlu0 %v61
  %v63 = vpop.xlane.xlu0 %62
  %v64 = vsel %vm26, %v55, 0.0
  %65 = vadd.xlane.f32.xlu0 %v64
  %v66 = vpop.xlane.xlu0 %65
  %v67 = vsel %vm26, %v56, 0.0
  %68 = vadd.xlane.f32.xlu0 %v67
  %v69 = vpop.xlane.xlu0 %68
  %v70 = vsel %vm26, %v57, 0.0
  %71 = vadd.xlane.f32.xlu0 %v70
  %v72 = vpop.xlane.xlu0 %71
  %v73 = vmul.f32 %v60, %v42
  %v74 = vmul.f32 %v63, %v42
  %v75 = vmul.f32 %v66, %v42
  %v76 = vmul.f32 %v69, %v42
  %v77 = vmul.f32 %v72, %v42
  %v78 = vadd.f32 %v73, 1e-05
  %v79 = vadd.f32 %v74, 1e-05
  %v80 = vadd.f32 %v75, 1e-05
  %v81 = vadd.f32 %v76, 1e-05
  %v82 = vadd.f32 %v77, 1e-05
  %v83 = vrsqrt.pop %v78
  %v84 = vrsqrt.pop %v79
  %v85 = vrsqrt.pop %v80
  %v86 = vrsqrt.pop %v81
  %v87 = vrsqrt.pop %v82
  %v88 = vmul.f32 %v48, %v83
  %v89 = vmul.f32 %v49, %v84
  %v90 = vmul.f32 %v50, %v85
  %v91 = vmul.f32 %v51, %v86
  %v92 = vmul.f32 %v52, %v87
  %v93 = vld [vmem:[%s3] sm:$0x1]
  %v95 = vlaneseq
  %v96 = vshrl.u32 %v95, 7
  %v97 = vsub.s32 0, %v96
  %v98 = vrot.slane %v93, %v97
  %v100 = vmul.f32 %v88, %v98
  %v101 = vmul.f32 %v89, %v98
  %v102 = vmul.f32 %v90, %v98
  %v103 = vmul.f32 %v91, %v98
  %v104 = vmul.f32 %v92, %v98
  %v105 = vld [vmem:[%s4] sm:$0x1]
  %v107 = vlaneseq
  %v108 = vshrl.u32 %v107, 7
  %v109 = vsub.s32 0, %v108
  %v110 = vrot.slane %v105, %v109
  %v112 = vadd.f32 %v100, %v110
  %v113 = vadd.f32 %v101, %v110
  %v114 = vadd.f32 %v102, %v110
  %v115 = vadd.f32 %v103, %v110
  %v116 = vadd.f32 %v104, %v110
  %v117 = vpack.c.bf16 %v113, %v112
  %v118 = vpack.c.bf16 %v115, %v114
  %v119 = vpack.c.bf16 %v116, %v116
  %v120 = vld [vmem:[%s1] sm:$0xf]
  %v121 = vld [vmem:[%s1 + $0x4] sm:$0xf]
  %v122 = vld [vmem:[%s1 + $0x8] sm:$0xf]
  %v123 = vld [vmem:[%s1 + $0xc] sm:$0xf]
  %v124 = vld [vmem:[%s2] sm:$0x1]
  %v126 = vlaneseq
  %v127 = vshrl.u32 %v126, 7
  %v128 = vsub.s32 0, %v127
  %v129 = vrot.slane %v124, %v128
  %v135 = vunpack.c.l.b16 %v120
  %v136 = vunpack.c.l.b16 %v121
  %v137 = vunpack.c.l.b16 %v122
  %v138 = vunpack.c.l.b16 %v123
  %v139 = vpack.c.b16 %v136, %v135
  %v140 = vpack.c.b16 %v138, %v137
  %v144 = vsel %vm26, %v117, 0
  %v147 = vsel %vm26, %v118, 0
  %v150 = vsel %vm26, %v119, 0
  %152 = vmatprep.subr.bf16.mxu0 0
  %153 = vmatpush1.bf16.msra.mxu0 %v139
  %154 = vmatprep.subr.bf16.mxu0 0
  %155 = vmatpush1.bf16.msra.mxu0 %v140
  %156 = vmatprep.subr.bf16.mxu0 0
  %157 = vmatpush1.bf16.msra.mxu0 0
  %158 = vmatprep.subr.bf16.mxu0 0
  %159 = vmatpush1.bf16.msra.mxu0 0
  %160 = vmatprep.subr.bf16.mxu0 0
  %161 = vmatpush1.bf16.msra.mxu0 0
  %162 = vmatprep.subr.bf16.mxu0 0
  %163 = vmatpush1.bf16.msra.mxu0 0
  %164 = vmatprep.subr.bf16.mxu0 0
  %165 = vmatpush1.bf16.msra.mxu0 0
  %166 = vmatprep.subr.bf16.mxu0 0
  %167 = vmatpush1.bf16.msra.mxu0 0
  %168 = vmatprep.subr.bf16.mxu0 0
  %169 = vmatpush1.bf16.msra.mxu0 0
  %170 = vmatprep.subr.bf16.mxu0 0
  %171 = vmatpush1.bf16.msra.mxu0 0
  %172 = vmatprep.subr.bf16.mxu0 0
  %173 = vmatpush1.bf16.msra.mxu0 0
  %174 = vmatprep.subr.bf16.mxu0 0
  %175 = vmatpush1.bf16.msra.mxu0 0
  %176 = vmatprep.subr.bf16.mxu0 0
  %177 = vmatpush1.bf16.msra.mxu0 0
  %178 = vmatprep.subr.bf16.mxu0 0
  %179 = vmatpush1.bf16.msra.mxu0 0
  %180 = vmatprep.subr.bf16.mxu0 0
  %181 = vmatpush1.bf16.msra.mxu0 0
  %182 = vmatprep.subr.bf16.mxu0 0
  %183 = vmatpush1.bf16.msra.mxu0 0
  %184 = vmatprep.mubr.bf16.mxu0 0
  %185 = vmatmul.mubr.bf16.gmra.mrb[0].mxu0 %v144
  %v186 = vpop.f32.mrb[0].mxu0
  %v187 = vadd.f32 %v129, %v186
  %v188 = vpop.f32.mrb[0].mxu0
  %v189 = vpop.f32.mrb[0].mxu0
  %v190 = vadd.f32 %v129, %v189
  %v191 = vpop.f32.mrb[0].mxu0
  %192 = vmatprep.mubr.bf16.mxu0 0
  %193 = vmatmul.mubr.bf16.gmra.mrb[0].mxu0 %v147
  %v194 = vpop.f32.mrb[0].mxu0
  %v195 = vadd.f32 %v129, %v194
  %v196 = vpop.f32.mrb[0].mxu0
  %v197 = vpop.f32.mrb[0].mxu0
  %v198 = vadd.f32 %v129, %v197
  %v199 = vpop.f32.mrb[0].mxu0
  %200 = vmatprep.mubr.bf16.mxu0 0
  %201 = vmatmul.mubr.bf16.gmra.mrb[0].mxu0 %v150
  %v202 = vpop.f32.mrb[0].mxu0
  %v203 = vadd.f32 %v129, %v202
  %v204 = vpop.f32.mrb[0].mxu0
  %v205 = vpop.f32.mrb[0].mxu0
  %v206 = vpop.f32.mrb[0].mxu0
  %207 = vdwg.mxu0
  %v208 = vmul.f32 %v187, 0.5
  %v209 = vmul.f32 %v190, 0.5
  %v210 = vmul.f32 %v195, 0.5
  %v211 = vmul.f32 %v198, 0.5
  %v212 = vmul.f32 %v203, 0.5
  %v213 = vmul.f32 %v187, 0.70710677
  %v214 = vmul.f32 %v190, 0.70710677
  %v215 = vmul.f32 %v195, 0.70710677
  %v216 = vmul.f32 %v198, 0.70710677
  %v217 = vmul.f32 %v203, 0.70710677
  %v218 = vand.u32 2147483647, %v213
  %v219 = vand.u32 2147483647, %v214
  %v220 = vand.u32 2147483647, %v215
  %v221 = vand.u32 2147483647, %v216
  %v222 = vand.u32 2147483647, %v217
  %v223 = vmul.f32 %v218, 0.3275911
  %v224 = vmul.f32 %v219, 0.3275911
  %v225 = vmul.f32 %v220, 0.3275911
  %v226 = vmul.f32 %v221, 0.3275911
  %v227 = vmul.f32 %v222, 0.3275911
  %v228 = vadd.f32 %v223, 1.0
  %v229 = vadd.f32 %v224, 1.0
  %v230 = vadd.f32 %v225, 1.0
  %v231 = vadd.f32 %v226, 1.0
  %v232 = vadd.f32 %v227, 1.0
  %v233 = vrcp.pop %v228
  %v234 = vmul.f32 1.0, %v233
  %v235 = vrcp.pop %v229
  %v236 = vmul.f32 1.0, %v235
  %v237 = vrcp.pop %v230
  %v238 = vmul.f32 1.0, %v237
  %v239 = vrcp.pop %v231
  %v240 = vmul.f32 1.0, %v239
  %v241 = vrcp.pop %v232
  %v242 = vmul.f32 1.0, %v241
  %v243 = vmul.f32 %v234, 1.0614054
  %v244 = vmul.f32 %v236, 1.0614054
  %v245 = vmul.f32 %v238, 1.0614054
  %v246 = vmul.f32 %v240, 1.0614054
  %v247 = vmul.f32 %v242, 1.0614054
  %v248 = vadd.f32 %v243, -1.4531521
  %v249 = vadd.f32 %v244, -1.4531521
  %v250 = vadd.f32 %v245, -1.4531521
  %v251 = vadd.f32 %v246, -1.4531521
  %v252 = vadd.f32 %v247, -1.4531521
  %v253 = vmul.f32 %v234, %v248
  %v254 = vmul.f32 %v236, %v249
  %v255 = vmul.f32 %v238, %v250
  %v256 = vmul.f32 %v240, %v251
  %v257 = vmul.f32 %v242, %v252
  %v258 = vadd.f32 %v253, 1.4214138
  %v259 = vadd.f32 %v254, 1.4214138
  %v260 = vadd.f32 %v255, 1.4214138
  %v261 = vadd.f32 %v256, 1.4214138
  %v262 = vadd.f32 %v257, 1.4214138
  %v263 = vmul.f32 %v234, %v258
  %v264 = vmul.f32 %v236, %v259
  %v265 = vmul.f32 %v238, %v260
  %v266 = vmul.f32 %v240, %v261
  %v267 = vmul.f32 %v242, %v262
  %v268 = vadd.f32 %v263, -0.28449672
  %v269 = vadd.f32 %v264, -0.28449672
  %v270 = vadd.f32 %v265, -0.28449672
  %v271 = vadd.f32 %v266, -0.28449672
  %v272 = vadd.f32 %v267, -0.28449672
  %v273 = vmul.f32 %v234, %v268
  %v274 = vmul.f32 %v236, %v269
  %v275 = vmul.f32 %v238, %v270
  %v276 = vmul.f32 %v240, %v271
  %v277 = vmul.f32 %v242, %v272
  %v278 = vadd.f32 %v273, 0.2548296
  %v279 = vadd.f32 %v274, 0.2548296
  %v280 = vadd.f32 %v275, 0.2548296
  %v281 = vadd.f32 %v276, 0.2548296
  %v282 = vadd.f32 %v277, 0.2548296
  %v283 = vmul.f32 %v234, %v278
  %v284 = vmul.f32 %v236, %v279
  %v285 = vmul.f32 %v238, %v280
  %v286 = vmul.f32 %v240, %v281
  %v287 = vmul.f32 %v242, %v282
  %v288 = vsub.f32 0.0, %v218
  %v289 = vsub.f32 0.0, %v219
  %v290 = vsub.f32 0.0, %v220
  %v291 = vsub.f32 0.0, %v221
  %v292 = vsub.f32 0.0, %v222
  %v293 = vmul.f32 %v288, %v218
  %v294 = vmul.f32 %v289, %v219
  %v295 = vmul.f32 %v290, %v220
  %v296 = vmul.f32 %v291, %v221
  %v297 = vmul.f32 %v292, %v222
  %v298 = vmul.f32 %v293, 1.442695
  %v299 = vpow.pop %v298
  %v300 = vmul.f32 %v294, 1.442695
  %v301 = vpow.pop %v300
  %v302 = vmul.f32 %v295, 1.442695
  %v303 = vpow.pop %v302
  %v304 = vmul.f32 %v296, 1.442695
  %v305 = vpow.pop %v304
  %v306 = vmul.f32 %v297, 1.442695
  %v307 = vpow.pop %v306
  %v308 = vmul.f32 %v283, %v299
  %v309 = vmul.f32 %v284, %v301
  %v310 = vmul.f32 %v285, %v303
  %v311 = vmul.f32 %v286, %v305
  %v312 = vmul.f32 %v287, %v307
  %v313 = vsub.f32 1.0, %v308
  %v314 = vsub.f32 1.0, %v309
  %v315 = vsub.f32 1.0, %v310
  %v316 = vsub.f32 1.0, %v311
  %v317 = vsub.f32 1.0, %v312
  %vm318 = vcmp.lt.f32.partialorder %v213, 0.0
  %vm319 = vcmp.lt.f32.partialorder %v214, 0.0
  %vm320 = vcmp.lt.f32.partialorder %v215, 0.0
  %vm321 = vcmp.lt.f32.partialorder %v216, 0.0
  %vm322 = vcmp.lt.f32.partialorder %v217, 0.0
  %v323 = vsub.f32 0.0, %v313
  %v324 = vsub.f32 0.0, %v314
  %v325 = vsub.f32 0.0, %v315
  %v326 = vsub.f32 0.0, %v316
  %v327 = vsub.f32 0.0, %v317
  %v328 = vsel %vm318, %v323, %v313
  %v329 = vsel %vm319, %v324, %v314
  %v330 = vsel %vm320, %v325, %v315
  %v331 = vsel %vm321, %v326, %v316
  %v332 = vsel %vm322, %v327, %v317
  %v333 = vadd.f32 %v328, 1.0
  %v334 = vadd.f32 %v329, 1.0
  %v335 = vadd.f32 %v330, 1.0
  %v336 = vadd.f32 %v331, 1.0
  %v337 = vadd.f32 %v332, 1.0
  %v338 = vmul.f32 %v208, %v333
  %v339 = vmul.f32 %v209, %v334
  %v340 = vmul.f32 %v210, %v335
  %v341 = vmul.f32 %v211, %v336
  %v342 = vmul.f32 %v212, %v337
  %v343 = vpack.c.bf16 %v339, %v338
  %v344 = vpack.c.bf16 %v341, %v340
  %v345 = vpack.c.bf16 %v342, %v342
  %v349 = vunpack.c.l.b16 %v343
  %v350 = vunpack.c.h.b16 %v343
  %v351 = vunpack.c.l.b16 %v344
  %v352 = vunpack.c.h.b16 %v344
  %v353 = vunpack.c.l.b16 %v345
  %v354 = vpack.c.b16 %v349, %v349
  %v355 = vpack.c.b16 %v350, %v350
  %v356 = vpack.c.b16 %v351, %v351
  %v357 = vpack.c.b16 %v352, %v352
  %v358 = vpack.c.b16 %v353, %v353
  %364 = vst [vmem:[%s5] sm:$0xf] %v354
  %365 = vst [vmem:[%s5 + $0x4] sm:$0xf] %v355
  %366 = vst [vmem:[%s5 + $0x8] sm:$0xf] %v356
  %367 = vst [vmem:[%s5 + $0xc] sm:$0xf] %v357
  %368 = vst [vmem:[%s5 + $0x10] sm:$0xf] %v358
  // Predicated region
  $region22: #{conv_trans_block.14} parent=0 // pred_check
    _
  $region23: #{conv_trans_block.14} parent=0 // pred_check_branch
    %370 = sbr.rel (0) target = $region25
  $region24: #{conv_trans_block.14} parent=0 // pred_region
    _
  $region25: #{conv_trans_block.14} parent=0 // pred_fallthru
    _
  // Predicated region
  $region26: #{conv_trans_block.14} parent=0 // pred_check
    _
  $region27: #{conv_trans_block.14} parent=0 // pred_check_branch
    %372 = sbr.rel (0) target = $region29
  $region28: #{conv_trans_block.14} parent=0 // pred_region
    _
  $region29: #{conv_trans_block.14} parent=0 // pred_fallthru
    _

// kernel: conv_trans_block.16
$region0: #{conv_trans_block.16}
  #allocation0 [shape = 'u32[]', space=smem, size = 0x4, offset = 0x4, fixed_abs, tag = 'smem constant byte address 0x4 - core index']
  #allocation1 [shape = 'u32[144,128]{1,0:T(1,128)}', space=vmem, size = 0x12000, scoped, tag = 'internal scratch']
  %s0 = inlined_call_operand.vmem [shape: bf16[32,32], index: 0, kind: input, shape index: {}]
  %s1 = inlined_call_operand.vmem [shape: bf16[32,4], index: 1, kind: input, shape index: {}]
  %s2 = inlined_call_operand.vmem [shape: f32[1,4], index: 2, kind: input, shape index: {}]
  %s3 = inlined_call_operand.vmem [shape: f32[32,4], index: 3, kind: output, shape index: {}]
  %s4 = sld [smem:[#allocation0]]
  $region22: #{conv_trans_block.16} parent=0
    _
  %s6 = ssub.s32 1, %s4
  %s7 = scalar_select 0, %s6, %s4
  // Predicated region
  $region2: #{conv_trans_block.16} parent=0 // pred_check
    _
  $region3: #{conv_trans_block.16} parent=0 // pred_check_branch
    %9 = sbr.rel (0) target = $region5
  $region4: #{conv_trans_block.16} parent=0 // pred_region
    _
  $region5: #{conv_trans_block.16} parent=0 // pred_fallthru
    _
  // Predicated region
  $region6: #{conv_trans_block.16} parent=0 // pred_check
    _
  $region7: #{conv_trans_block.16} parent=0 // pred_check_branch
    %11 = sbr.rel (0) target = $region9
  $region8: #{conv_trans_block.16} parent=0 // pred_region
    _
  $region9: #{conv_trans_block.16} parent=0 // pred_fallthru
    _
  // Predicated region
  $region10: #{conv_trans_block.16} parent=0 // pred_check
    _
  $region11: #{conv_trans_block.16} parent=0 // pred_check_branch
    %13 = sbr.rel (0) target = $region13
  $region12: #{conv_trans_block.16} parent=0 // pred_region
    _
  $region13: #{conv_trans_block.16} parent=0 // pred_fallthru
    _
  %v15 = vld [vmem:[%s0] sm:$0xf]
  %v16 = vld [vmem:[%s0 + $0x4] sm:$0xf]
  %v17 = vld [vmem:[%s0 + $0x8] sm:$0xf]
  %v18 = vld [vmem:[%s0 + $0xc] sm:$0xf]
  %v19 = vld [vmem:[%s1] sm:$0xf]
  %v20 = vld [vmem:[%s1 + $0x4] sm:$0xf]
  %v21 = vld [vmem:[%s1 + $0x8] sm:$0xf]
  %v22 = vld [vmem:[%s1 + $0xc] sm:$0xf]
  %v23 = vld [vmem:[%s2] sm:$0x1]
  %v25 = vlaneseq
  %v26 = vshrl.u32 %v25, 7
  %v27 = vsub.s32 0, %v26
  %v28 = vrot.slane %v23, %v27
  %v34 = vunpack.c.l.b16 %v15
  %v35 = vunpack.c.l.b16 %v16
  %v36 = vunpack.c.l.b16 %v17
  %v37 = vunpack.c.l.b16 %v18
  %v38 = vpack.c.b16 %v35, %v34
  %v39 = vpack.c.b16 %v37, %v36
  %v44 = vunpack.c.l.b16 %v19
  %v45 = vunpack.c.l.b16 %v20
  %v46 = vunpack.c.l.b16 %v21
  %v47 = vunpack.c.l.b16 %v22
  %v48 = vpack.c.b16 %v45, %v44
  %v49 = vpack.c.b16 %v47, %v46
  %vm52 = vcmask 261120
  %v54 = vsel %vm52, %v38, 0
  %v57 = vsel %vm52, %v39, 0
  %59 = vmatprep.subr.bf16.mxu0 0
  %60 = vmatpush1.bf16.msra.mxu0 %v48
  %61 = vmatprep.subr.bf16.mxu0 0
  %62 = vmatpush1.bf16.msra.mxu0 %v49
  %63 = vmatprep.subr.bf16.mxu0 0
  %64 = vmatpush1.bf16.msra.mxu0 0
  %65 = vmatprep.subr.bf16.mxu0 0
  %66 = vmatpush1.bf16.msra.mxu0 0
  %67 = vmatprep.subr.bf16.mxu0 0
  %68 = vmatpush1.bf16.msra.mxu0 0
  %69 = vmatprep.subr.bf16.mxu0 0
  %70 = vmatpush1.bf16.msra.mxu0 0
  %71 = vmatprep.subr.bf16.mxu0 0
  %72 = vmatpush1.bf16.msra.mxu0 0
  %73 = vmatprep.subr.bf16.mxu0 0
  %74 = vmatpush1.bf16.msra.mxu0 0
  %75 = vmatprep.subr.bf16.mxu0 0
  %76 = vmatpush1.bf16.msra.mxu0 0
  %77 = vmatprep.subr.bf16.mxu0 0
  %78 = vmatpush1.bf16.msra.mxu0 0
  %79 = vmatprep.subr.bf16.mxu0 0
  %80 = vmatpush1.bf16.msra.mxu0 0
  %81 = vmatprep.subr.bf16.mxu0 0
  %82 = vmatpush1.bf16.msra.mxu0 0
  %83 = vmatprep.subr.bf16.mxu0 0
  %84 = vmatpush1.bf16.msra.mxu0 0
  %85 = vmatprep.subr.bf16.mxu0 0
  %86 = vmatpush1.bf16.msra.mxu0 0
  %87 = vmatprep.subr.bf16.mxu0 0
  %88 = vmatpush1.bf16.msra.mxu0 0
  %89 = vmatprep.subr.bf16.mxu0 0
  %90 = vmatpush1.bf16.msra.mxu0 0
  %91 = vmatprep.mubr.bf16.mxu0 0
  %92 = vmatmul.mubr.bf16.gmra.mrb[0].mxu0 %v54
  %v93 = vpop.f32.mrb[0].mxu0
  %v94 = vadd.f32 %v28, %v93
  %v95 = vpop.f32.mrb[0].mxu0
  %v96 = vpop.f32.mrb[0].mxu0
  %v97 = vadd.f32 %v28, %v96
  %v98 = vpop.f32.mrb[0].mxu0
  %99 = vmatprep.mubr.bf16.mxu0 0
  %100 = vmatmul.mubr.bf16.gmra.mrb[0].mxu0 %v57
  %v101 = vpop.f32.mrb[0].mxu0
  %v102 = vadd.f32 %v28, %v101
  %v103 = vpop.f32.mrb[0].mxu0
  %v104 = vpop.f32.mrb[0].mxu0
  %v105 = vadd.f32 %v28, %v104
  %v106 = vpop.f32.mrb[0].mxu0
  %107 = vdwg.mxu0
  %v108 = vmax.f32 %v94, 0.0
  %v109 = vmax.f32 %v97, 0.0
  %v110 = vmax.f32 %v102, 0.0
  %v111 = vmax.f32 %v105, 0.0
  %vm112 = vcmask 31744
  %113 = vst.msk [vmem:[%s3] sm:$0xff] %vm112, %v108
  %114 = vst.msk [vmem:[%s3 + $0x8] sm:$0xff] %vm112, %v109
  %115 = vst.msk [vmem:[%s3 + $0x10] sm:$0xff] %vm112, %v110
  %116 = vst.msk [vmem:[%s3 + $0x18] sm:$0xff] %vm112, %v111
  // Predicated region
  $region14: #{conv_trans_block.16} parent=0 // pred_check
    _
  $region15: #{conv_trans_block.16} parent=0 // pred_check_branch
    %118 = sbr.rel (0) target = $region17
  $region16: #{conv_trans_block.16} parent=0 // pred_region
    _
  $region17: #{conv_trans_block.16} parent=0 // pred_fallthru
    _
  // Predicated region
  $region18: #{conv_trans_block.16} parent=0 // pred_check
    _
  $region19: #{conv_trans_block.16} parent=0 // pred_check_branch
    %120 = sbr.rel (0) target = $region21
  $region20: #{conv_trans_block.16} parent=0 // pred_region
    _
  $region21: #{conv_trans_block.16} parent=0 // pred_fallthru
    _

// kernel: conv_trans_block.17
$region0: #{conv_trans_block.17}
  #allocation0 [shape = 'u32[]', space=smem, size = 0x4, offset = 0x4, fixed_abs, tag = 'smem constant byte address 0x4 - core index']
  #allocation1 [shape = 'u32[144,128]{1,0:T(1,128)}', space=vmem, size = 0x12000, scoped, tag = 'internal scratch']
  #allocation2 [shape = 'f32[96,4]{1,0:T(8,128)}', space=vmem, size = 0xc000, scoped, tag = 'scratch operand']
  %s0 = inlined_call_operand.vmem [shape: f32[2,64,16], index: 0, kind: input, shape index: {}]
  %s1 = inlined_call_operand.vmem [shape: bf16[16,4], index: 1, kind: input, shape index: {}]
  %s2 = inlined_call_operand.vmem [shape: f32[1,4], index: 2, kind: input, shape index: {}]
  %s3 = inlined_call_operand.vmem [shape: bf16[36,4], index: 3, kind: input, shape index: {}]
  %s4 = inlined_call_operand.vmem [shape: f32[1,4], index: 4, kind: input, shape index: {}]
  %s5 = inlined_call_operand.vmem [shape: bf16[4,16], index: 5, kind: input, shape index: {}]
  %s6 = inlined_call_operand.vmem [shape: f32[1,16], index: 6, kind: input, shape index: {}]
  %s7 = inlined_call_operand.vmem [shape: f32[2,64,4], index: 7, kind: input, shape index: {}]
  %s8 = inlined_call_operand.hbm [shape: f32[2,64,16], index: 8, kind: output, shape index: {}]
  %s9 = sld [smem:[#allocation0]]
  $region65: #{conv_trans_block.17} parent=0
    _
  %s11 = ssub.s32 1, %s9
  %s12 = scalar_select 0, %s11, %s9
  $region1: #{conv_trans_block.17} parent=0
    #allocation3 [shape = 'u8[65536]{0}', space=vmem, size = 0x10000, scoped, tag = 'output window, operand 0']
    #allocation4 [shape = 's32[2]{0}', space=sflag, size = 0x8, scoped, tag = 'scoped memory for conv_trans_block.17']
    %13 = vsyncpa [#allocation4], 0
    %s14 = scalar_lea.sflag [#allocation4], 1
    %15 = vsyncpa %s14, 0
    loop: start=0, step=1, limit=4
    $region2: #{conv_trans_block.17} parent=1 // loop_pre_header
      _
    $region3: #{conv_trans_block.17} parent=1 // loop_header
      %s17 = sphi 0, %s21
      %p18 = scmp.ge.s32.totalorder %s17, 4
      %s27 = sphi 0, %s29
      %s30 = sphi 0, %s27
      %s31 = sphi 0, %s30
      %s47 = sphi 0, %s31
      %s51 = sphi 0, %s51
      %s53 = sphi 0, %s51
      %s54 = sphi 0, %s53
      %s68 = sphi 0, %s54
      %s72 = sphi 0, %s72
      %s74 = sphi 0, %s72
      %s75 = sphi 0, %s74
      %s89 = sphi 0, %s75
      %s93 = sphi 0, %s93
      %s95 = sphi 0, %s93
      %s96 = sphi 0, %s95
      %s110 = sphi 0, %s96
      %s114 = sphi 0, %s114
      %s116 = sphi 0, %s114
      %s117 = sphi 0, %s116
      %s131 = sphi 0, %s117
      %s135 = sphi 0, %s135
      %s137 = sphi 0, %s135
      %s138 = sphi 0, %s137
      %s152 = sphi 0, %s138
      %s156 = sphi 0, %s156
      %s158 = sphi 0, %s156
      %s159 = sphi 0, %s158
      %s173 = sphi 0, %s159
      %s179 = sphi 0, %s181
      %s182 = sphi 0, %s179
      %s183 = sphi 0, %s182
      %s199 = sphi 0, %s183
      %s205 = sphi 0, %s207
      %s208 = sphi 0, %s205
      %s209 = sphi 0, %s208
      %s225 = sphi 0, %s209
    $region4: #{conv_trans_block.17} parent=1 // loop_header_branch
      %20 = sbr.rel (%p18) target = $region8
    $region5: #{conv_trans_block.17} parent=1 // loop_body
      %s22 = ssub.s32 %s17, 1
      %s23 = ssub.s32 %s17, 2
      %s24 = sadd.s32 %s17, 1
      %s25 = ssub.s32 %s17, %s24
      %p26 = scmp.eq.s32.totalorder %s25, 0
      %s28 = sadd.s32 %s27, 1
      %s29 = scalar_select %p26, %s27, %s28
      %p32 = pneg %p26
      %p33 = scmp.eq.s32.totalorder %s17, 1
      %p34 = por %p32, %p33
      %p35 = scmp.ne.s32.totalorder %s27, %s30
      %p36 = scmp.eq.s32.totalorder %s17, 0
      %p37 = por %p35, %p36
      %p38 = scmp.ne.s32.totalorder %s27, %s30
      %p39 = scmp.eq.s32.totalorder %s22, 1
      %p40 = por %p38, %p39
      %p41 = scmp.ne.s32.totalorder %s30, %s31
      %p42 = scmp.eq.s32.totalorder %s22, 0
      %p43 = por %p41, %p42
      %p44 = scmp.ne.s32.totalorder %s30, %s31
      %p45 = scmp.eq.s32.totalorder %s23, 1
      %p46 = por %p44, %p45
      %p48 = scmp.ne.s32.totalorder %s31, %s47
      %p49 = scmp.eq.s32.totalorder %s23, 0
      %p50 = por %p48, %p49
      %s52 = sadd.s32 %s51, 1
      %p55 = scmp.eq.s32.totalorder %s17, 1
      %p56 = scmp.ne.s32.totalorder %s51, %s53
      %p57 = scmp.eq.s32.totalorder %s17, 0
      %p58 = por %p56, %p57
      %p59 = scmp.ne.s32.totalorder %s51, %s53
      %p60 = scmp.eq.s32.totalorder %s22, 1
      %p61 = por %p59, %p60
      %p62 = scmp.ne.s32.totalorder %s53, %s54
      %p63 = scmp.eq.s32.totalorder %s22, 0
      %p64 = por %p62, %p63
      %p65 = scmp.ne.s32.totalorder %s53, %s54
      %p66 = scmp.eq.s32.totalorder %s23, 1
      %p67 = por %p65, %p66
      %p69 = scmp.ne.s32.totalorder %s54, %s68
      %p70 = scmp.eq.s32.totalorder %s23, 0
      %p71 = por %p69, %p70
      %s73 = sadd.s32 %s72, 1
      %p76 = scmp.eq.s32.totalorder %s17, 1
      %p77 = scmp.ne.s32.totalorder %s72, %s74
      %p78 = scmp.eq.s32.totalorder %s17, 0
      %p79 = por %p77, %p78
      %p80 = scmp.ne.s32.totalorder %s72, %s74
      %p81 = scmp.eq.s32.totalorder %s22, 1
      %p82 = por %p80, %p81
      %p83 = scmp.ne.s32.totalorder %s74, %s75
      %p84 = scmp.eq.s32.totalorder %s22, 0
      %p85 = por %p83, %p84
      %p86 = scmp.ne.s32.totalorder %s74, %s75
      %p87 = scmp.eq.s32.totalorder %s23, 1
      %p88 = por %p86, %p87
      %p90 = scmp.ne.s32.totalorder %s75, %s89
      %p91 = scmp.eq.s32.totalorder %s23, 0
      %p92 = por %p90, %p91
      %s94 = sadd.s32 %s93, 1
      %p97 = scmp.eq.s32.totalorder %s17, 1
      %p98 = scmp.ne.s32.totalorder %s93, %s95
      %p99 = scmp.eq.s32.totalorder %s17, 0
      %p100 = por %p98, %p99
      %p101 = scmp.ne.s32.totalorder %s93, %s95
      %p102 = scmp.eq.s32.totalorder %s22, 1
      %p103 = por %p101, %p102
      %p104 = scmp.ne.s32.totalorder %s95, %s96
      %p105 = scmp.eq.s32.totalorder %s22, 0
      %p106 = por %p104, %p105
      %p107 = scmp.ne.s32.totalorder %s95, %s96
      %p108 = scmp.eq.s32.totalorder %s23, 1
      %p109 = por %p107, %p108
      %p111 = scmp.ne.s32.totalorder %s96, %s110
      %p112 = scmp.eq.s32.totalorder %s23, 0
      %p113 = por %p111, %p112
      %s115 = sadd.s32 %s114, 1
      %p118 = scmp.eq.s32.totalorder %s17, 1
      %p119 = scmp.ne.s32.totalorder %s114, %s116
      %p120 = scmp.eq.s32.totalorder %s17, 0
      %p121 = por %p119, %p120
      %p122 = scmp.ne.s32.totalorder %s114, %s116
      %p123 = scmp.eq.s32.totalorder %s22, 1
      %p124 = por %p122, %p123
      %p125 = scmp.ne.s32.totalorder %s116, %s117
      %p126 = scmp.eq.s32.totalorder %s22, 0
      %p127 = por %p125, %p126
      %p128 = scmp.ne.s32.totalorder %s116, %s117
      %p129 = scmp.eq.s32.totalorder %s23, 1
      %p130 = por %p128, %p129
      %p132 = scmp.ne.s32.totalorder %s117, %s131
      %p133 = scmp.eq.s32.totalorder %s23, 0
      %p134 = por %p132, %p133
      %s136 = sadd.s32 %s135, 1
      %p139 = scmp.eq.s32.totalorder %s17, 1
      %p140 = scmp.ne.s32.totalorder %s135, %s137
      %p141 = scmp.eq.s32.totalorder %s17, 0
      %p142 = por %p140, %p141
      %p143 = scmp.ne.s32.totalorder %s135, %s137
      %p144 = scmp.eq.s32.totalorder %s22, 1
      %p145 = por %p143, %p144
      %p146 = scmp.ne.s32.totalorder %s137, %s138
      %p147 = scmp.eq.s32.totalorder %s22, 0
      %p148 = por %p146, %p147
      %p149 = scmp.ne.s32.totalorder %s137, %s138
      %p150 = scmp.eq.s32.totalorder %s23, 1
      %p151 = por %p149, %p150
      %p153 = scmp.ne.s32.totalorder %s138, %s152
      %p154 = scmp.eq.s32.totalorder %s23, 0
      %p155 = por %p153, %p154
      %s157 = sadd.s32 %s156, 1
      %p160 = scmp.eq.s32.totalorder %s17, 1
      %p161 = scmp.ne.s32.totalorder %s156, %s158
      %p162 = scmp.eq.s32.totalorder %s17, 0
      %p163 = por %p161, %p162
      %p164 = scmp.ne.s32.totalorder %s156, %s158
      %p165 = scmp.eq.s32.totalorder %s22, 1
      %p166 = por %p164, %p165
      %p167 = scmp.ne.s32.totalorder %s158, %s159
      %p168 = scmp.eq.s32.totalorder %s22, 0
      %p169 = por %p167, %p168
      %p170 = scmp.ne.s32.totalorder %s158, %s159
      %p171 = scmp.eq.s32.totalorder %s23, 1
      %p172 = por %p170, %p171
      %p174 = scmp.ne.s32.totalorder %s159, %s173
      %p175 = scmp.eq.s32.totalorder %s23, 0
      %p176 = por %p174, %p175
      %s177 = ssub.s32 %s17, %s24
      %p178 = scmp.eq.s32.totalorder %s177, 0
      %s180 = sadd.s32 %s179, 1
      %s181 = scalar_select %p178, %s179, %s180
      %p184 = pneg %p178
      %p185 = scmp.eq.s32.totalorder %s17, 1
      %p186 = por %p184, %p185
      %p187 = scmp.ne.s32.totalorder %s179, %s182
      %p188 = scmp.eq.s32.totalorder %s17, 0
      %p189 = por %p187, %p188
      %p190 = scmp.ne.s32.totalorder %s179, %s182
      %p191 = scmp.eq.s32.totalorder %s22, 1
      %p192 = por %p190, %p191
      %p193 = scmp.ne.s32.totalorder %s182, %s183
      %p194 = scmp.eq.s32.totalorder %s22, 0
      %p195 = por %p193, %p194
      %p196 = scmp.ne.s32.totalorder %s182, %s183
      %p197 = scmp.eq.s32.totalorder %s23, 1
      %p198 = por %p196, %p197
      %p200 = scmp.ne.s32.totalorder %s183, %s199
      %p201 = scmp.eq.s32.totalorder %s23, 0
      %p202 = por %p200, %p201
      %s203 = ssub.s32 %s17, %s24
      %p204 = scmp.eq.s32.totalorder %s203, 0
      %s206 = sadd.s32 %s205, 1
      %s207 = scalar_select %p204, %s205, %s206
      %p210 = pneg %p204
      %p211 = scmp.eq.s32.totalorder %s17, 1
      %p212 = por %p210, %p211
      %p213 = scmp.ne.s32.totalorder %s205, %s208
      %p214 = scmp.eq.s32.totalorder %s17, 0
      %p215 = por %p213, %p214
      %p216 = scmp.ne.s32.totalorder %s205, %s208
      %p217 = scmp.eq.s32.totalorder %s22, 1
      %p218 = por %p216, %p217
      %p219 = scmp.ne.s32.totalorder %s208, %s209
      %p220 = scmp.eq.s32.totalorder %s22, 0
      %p221 = por %p219, %p220
      %p222 = scmp.ne.s32.totalorder %s208, %s209
      %p223 = scmp.eq.s32.totalorder %s23, 1
      %p224 = por %p222, %p223
      %p226 = scmp.ne.s32.totalorder %s209, %s225
      %p227 = scmp.eq.s32.totalorder %s23, 0
      %p228 = por %p226, %p227
      %p229 = scmp.le.s32.totalorder 1, %s17
      %p230 = scmp.lt.s32.totalorder %s17, 3
      %p231 = pnand %p229, %p230
      %p232 = pneg %p231
      // Predicated region
      $region9: #{conv_trans_block.17} parent=5 // pred_check
        _
      $region10: #{conv_trans_block.17} parent=5 // pred_check_branch
        %234 = sbr.rel (%p231) target = $region12
      $region11: #{conv_trans_block.17} parent=5 // pred_region
        %s235 = ssub.s32 %s17, 1
        // Predicated region
        $region13: #{conv_trans_block.17} parent=11 // pred_check
          %p236 = pneg %p64
        $region14: #{conv_trans_block.17} parent=11 // pred_check_branch
          %238 = sbr.rel (%p236) target = $region16
        $region15: #{conv_trans_block.17} parent=11 // pred_region
          _
        $region16: #{conv_trans_block.17} parent=11 // pred_fallthru
          _
        // Predicated region
        $region17: #{conv_trans_block.17} parent=11 // pred_check
          %p239 = pneg %p85
        $region18: #{conv_trans_block.17} parent=11 // pred_check_branch
          %241 = sbr.rel (%p239) target = $region20
        $region19: #{conv_trans_block.17} parent=11 // pred_region
          _
        $region20: #{conv_trans_block.17} parent=11 // pred_fallthru
          _
        // Predicated region
        $region21: #{conv_trans_block.17} parent=11 // pred_check
          %p242 = pneg %p106
        $region22: #{conv_trans_block.17} parent=11 // pred_check_branch
          %244 = sbr.rel (%p242) target = $region24
        $region23: #{conv_trans_block.17} parent=11 // pred_region
          _
        $region24: #{conv_trans_block.17} parent=11 // pred_fallthru
          _
        // Predicated region
        $region25: #{conv_trans_block.17} parent=11 // pred_check
          %p245 = pneg %p127
        $region26: #{conv_trans_block.17} parent=11 // pred_check_branch
          %247 = sbr.rel (%p245) target = $region28
        $region27: #{conv_trans_block.17} parent=11 // pred_region
          _
        $region28: #{conv_trans_block.17} parent=11 // pred_fallthru
          _
        // Predicated region
        $region29: #{conv_trans_block.17} parent=11 // pred_check
          %p248 = pneg %p148
        $region30: #{conv_trans_block.17} parent=11 // pred_check_branch
          %250 = sbr.rel (%p248) target = $region32
        $region31: #{conv_trans_block.17} parent=11 // pred_region
          _
        $region32: #{conv_trans_block.17} parent=11 // pred_fallthru
          _
        // Predicated region
        $region33: #{conv_trans_block.17} parent=11 // pred_check
          %p251 = pneg %p169
        $region34: #{conv_trans_block.17} parent=11 // pred_check_branch
          %253 = sbr.rel (%p251) target = $region36
        $region35: #{conv_trans_block.17} parent=11 // pred_region
          _
        $region36: #{conv_trans_block.17} parent=11 // pred_fallthru
          _
      $region12: #{conv_trans_block.17} parent=5 // pred_fallthru
        _
      %p254 = scmp.lt.s32.totalorder %s17, 2
      // Predicated region
      $region37: #{conv_trans_block.17} parent=5 // pred_check
        %p255 = pneg %p254
      $region38: #{conv_trans_block.17} parent=5 // pred_check_branch
        %257 = sbr.rel (%p255) target = $region40
      $region39: #{conv_trans_block.17} parent=5 // pred_region
        // Predicated region
        $region41: #{conv_trans_block.17} parent=39 // pred_check
          %p258 = pneg %p37
        $region42: #{conv_trans_block.17} parent=39 // pred_check_branch
          %260 = sbr.rel (%p258) target = $region44
        $region43: #{conv_trans_block.17} parent=39 // pred_region
          %p261 = scmp.lt.s32.totalorder %s17, 1
          %s262 = scalar_select %p261, %s17, 1
          %s263 = smul.addr %s262, 8
          %s264 = smul.addr %s263, 8
          %s265 = scalar_lea.vmem %s0, %s264
        $region44: #{conv_trans_block.17} parent=39 // pred_fallthru
          _
        // Predicated region
        $region45: #{conv_trans_block.17} parent=39 // pred_check
          %p266 = pneg %p189
        $region46: #{conv_trans_block.17} parent=39 // pred_check_branch
          %268 = sbr.rel (%p266) target = $region48
        $region47: #{conv_trans_block.17} parent=39 // pred_region
          %p269 = scmp.lt.s32.totalorder %s17, 1
          %s270 = scalar_select %p269, %s17, 1
          %s271 = smul.addr %s270, 8
          %s272 = smul.addr %s271, 8
          %s273 = scalar_lea.vmem %s7, %s272
        $region48: #{conv_trans_block.17} parent=39 // pred_fallthru
          _
      $region40: #{conv_trans_block.17} parent=5 // pred_fallthru
        _
      %p274 = scmp.le.s32.totalorder 1, %s17
      %p275 = scmp.lt.s32.totalorder %s17, 3
      %p276 = pnand %p274, %p275
      %p277 = pneg %p276
      // Predicated region
      $region49: #{conv_trans_block.17} parent=5 // pred_check
        _
      $region50: #{conv_trans_block.17} parent=5 // pred_check_branch
        %279 = sbr.rel (%p276) target = $region52
      $region51: #{conv_trans_block.17} parent=5 // pred_region
        %s280 = ssub.s32 %s17, 1
        %p281 = scmp.lt.s32.totalorder %s22, 1
        %s282 = scalar_select %p281, %s22, 1
        %s283 = smul.addr %s282, 8
        %s284 = smul.addr %s283, 8
        %s285 = scalar_lea.vmem %s0, %s284
        %p286 = pneg %p43
        %p287 = pneg %p40
        %p288 = pneg %p64
        %p289 = pneg %p61
        %p290 = pneg %p85
        %p291 = pneg %p82
        %p292 = pneg %p106
        %p293 = pneg %p103
        %p294 = pneg %p127
        %p295 = pneg %p124
        %p296 = pneg %p148
        %p297 = pneg %p145
        %p298 = pneg %p169
        %p299 = pneg %p166
        %p300 = scmp.lt.s32.totalorder %s22, 1
        %s301 = scalar_select %p300, %s22, 1
        %s302 = smul.addr %s301, 8
        %s303 = smul.addr %s302, 8
        %s304 = scalar_lea.vmem %s7, %s303
        %p305 = pneg %p195
        %p306 = pneg %p192
        %p307 = pneg %p221
        %p308 = pneg %p218
        %s309 = sand.u32 %s208, 1
        %s310 = scalar_lea.sflag [#allocation4], %s309
        %s311 = sand.u32 %s208, 1
        %s312 = smul.addr %s311, 64
        %s313 = scalar_lea.vmem [#allocation3], %s312
        %p314 = scmp.lt.s32.totalorder %s22, 1
        %s315 = scalar_select %p314, %s22, 1
        %s316 = smul.addr %s315, 8
        %s317 = smul.addr %s316, 8
        %s318 = scalar_lea.vmem %s0, %s317
        %p319 = scmp.lt.s32.totalorder %s22, 1
        %s320 = scalar_select %p319, %s22, 1
        %s321 = smul.addr %s320, 8
        %s322 = smul.addr %s321, 8
        %s323 = scalar_lea.vmem %s7, %s322
        %v325 = vld [vmem:[%s318] sm:$0xff]
        %v326 = vld [vmem:[%s318 + $0x8] sm:$0xff]
        %v327 = vld [vmem:[%s318 + $0x10] sm:$0xff]
        %v328 = vld [vmem:[%s318 + $0x18] sm:$0xff]
        %v329 = vld [vmem:[%s318 + $0x20] sm:$0xff]
        %v330 = vld [vmem:[%s318 + $0x28] sm:$0xff]
        %v331 = vld [vmem:[%s318 + $0x30] sm:$0xff]
        %v332 = vld [vmem:[%s318 + $0x38] sm:$0xff]
        %v333 = vpack.c.bf16 %v326, %v325
        %v334 = vpack.c.bf16 %v328, %v327
        %v335 = vpack.c.bf16 %v330, %v329
        %v336 = vpack.c.bf16 %v332, %v331
        %v337 = vld [vmem:[%s1] sm:$0xf]
        %v338 = vld [vmem:[%s1 + $0x4] sm:$0xf]
        %v339 = vld [vmem:[%s2] sm:$0x1]
        %v341 = vlaneseq
        %v342 = vshrl.u32 %v341, 7
        %v343 = vsub.s32 0, %v342
        %v344 = vrot.slane %v339, %v343
        %v348 = vunpack.c.l.b16 %v337
        %v349 = vunpack.c.l.b16 %v338
        %v350 = vpack.c.b16 %v349, %v348
        %vm352 = vcmask 130048
        %v354 = vsel %vm352, %v333, 0
        %v357 = vsel %vm352, %v334, 0
        %v360 = vsel %vm352, %v335, 0
        %v363 = vsel %vm352, %v336, 0
        %365 = vmatprep.subr.bf16.mxu0 0
        %366 = vmatpush1.bf16.msra.mxu0 %v350
        %367 = vmatprep.subr.bf16.mxu0 0
        %368 = vmatpush1.bf16.msra.mxu0 0
        %369 = vmatprep.subr.bf16.mxu0 0
        %370 = vmatpush1.bf16.msra.mxu0 0
        %371 = vmatprep.subr.bf16.mxu0 0
        %372 = vmatpush1.bf16.msra.mxu0 0
        %373 = vmatprep.subr.bf16.mxu0 0
        %374 = vmatpush1.bf16.msra.mxu0 0
        %375 = vmatprep.subr.bf16.mxu0 0
        %376 = vmatpush1.bf16.msra.mxu0 0
        %377 = vmatprep.subr.bf16.mxu0 0
        %378 = vmatpush1.bf16.msra.mxu0 0
        %379 = vmatprep.subr.bf16.mxu0 0
        %380 = vmatpush1.bf16.msra.mxu0 0
        %381 = vmatprep.subr.bf16.mxu0 0
        %382 = vmatpush1.bf16.msra.mxu0 0
        %383 = vmatprep.subr.bf16.mxu0 0
        %384 = vmatpush1.bf16.msra.mxu0 0
        %385 = vmatprep.subr.bf16.mxu0 0
        %386 = vmatpush1.bf16.msra.mxu0 0
        %387 = vmatprep.subr.bf16.mxu0 0
        %388 = vmatpush1.bf16.msra.mxu0 0
        %389 = vmatprep.subr.bf16.mxu0 0
        %390 = vmatpush1.bf16.msra.mxu0 0
        %391 = vmatprep.subr.bf16.mxu0 0
        %392 = vmatpush1.bf16.msra.mxu0 0
        %393 = vmatprep.subr.bf16.mxu0 0
        %394 = vmatpush1.bf16.msra.mxu0 0
        %395 = vmatprep.subr.bf16.mxu0 0
        %396 = vmatpush1.bf16.msra.mxu0 0
        %397 = vmatprep.mubr.bf16.mxu0 0
        %398 = vmatmul.mubr.bf16.gmra.mrb[0].mxu0 %v354
        %v399 = vpop.f32.mrb[0].mxu0
        %v400 = vadd.f32 %v344, %v399
        %v401 = vpop.f32.mrb[0].mxu0
        %v402 = vpop.f32.mrb[0].mxu0
        %v403 = vadd.f32 %v344, %v402
        %v404 = vpop.f32.mrb[0].mxu0
        %405 = vmatprep.mubr.bf16.mxu0 0
        %406 = vmatmul.mubr.bf16.gmra.mrb[0].mxu0 %v357
        %v407 = vpop.f32.mrb[0].mxu0
        %v408 = vadd.f32 %v344, %v407
        %v409 = vpop.f32.mrb[0].mxu0
        %v410 = vpop.f32.mrb[0].mxu0
        %v411 = vadd.f32 %v344, %v410
        %v412 = vpop.f32.mrb[0].mxu0
        %413 = vmatprep.mubr.bf16.mxu0 0
        %414 = vmatmul.mubr.bf16.gmra.mrb[0].mxu0 %v360
        %v415 = vpop.f32.mrb[0].mxu0
        %v416 = vadd.f32 %v344, %v415
        %v417 = vpop.f32.mrb[0].mxu0
        %v418 = vpop.f32.mrb[0].mxu0
        %v419 = vadd.f32 %v344, %v418
        %v420 = vpop.f32.mrb[0].mxu0
        %421 = vmatprep.mubr.bf16.mxu0 0
        %422 = vmatmul.mubr.bf16.gmra.mrb[0].mxu0 %v363
        %v423 = vpop.f32.mrb[0].mxu0
        %v424 = vadd.f32 %v344, %v423
        %v425 = vpop.f32.mrb[0].mxu0
        %v426 = vpop.f32.mrb[0].mxu0
        %v427 = vadd.f32 %v344, %v426
        %v428 = vpop.f32.mrb[0].mxu0
        %429 = vdwg.mxu0
        %v430 = vmax.f32 %v400, 0.0
        %v431 = vmax.f32 %v403, 0.0
        %v432 = vmax.f32 %v408, 0.0
        %v433 = vmax.f32 %v411, 0.0
        %v434 = vmax.f32 %v416, 0.0
        %v435 = vmax.f32 %v419, 0.0
        %v436 = vmax.f32 %v424, 0.0
        %v437 = vmax.f32 %v427, 0.0
        %v438 = vld [vmem:[%s323] sm:$0xff]
        %v439 = vld [vmem:[%s323 + $0x8] sm:$0xff]
        %v440 = vld [vmem:[%s323 + $0x10] sm:$0xff]
        %v441 = vld [vmem:[%s323 + $0x18] sm:$0xff]
        %v442 = vld [vmem:[%s323 + $0x20] sm:$0xff]
        %v443 = vld [vmem:[%s323 + $0x28] sm:$0xff]
        %v444 = vld [vmem:[%s323 + $0x30] sm:$0xff]
        %v445 = vld [vmem:[%s323 + $0x38] sm:$0xff]
        %v446 = vadd.f32 %v430, %v438
        %v447 = vadd.f32 %v431, %v439
        %v448 = vadd.f32 %v432, %v440
        %v449 = vadd.f32 %v433, %v441
        %v450 = vadd.f32 %v434, %v442
        %v451 = vadd.f32 %v435, %v443
        %v452 = vadd.f32 %v436, %v444
        %v453 = vadd.f32 %v437, %v445
        %vm454 = vcmask 31744
        %455 = vst.msk [vmem:[#allocation2] sm:$0xff] %vm454, 0.0
        %456 = vst.msk [vmem:[#allocation2 + $0x8] sm:$0xff] %vm454, 0.0
        %457 = vst.msk [vmem:[#allocation2 + $0x50] sm:$0xff] %vm454, 0.0
        %458 = vst.msk [vmem:[#allocation2 + $0x58] sm:$0xff] %vm454, 0.0
        %459 = vst.msk [vmem:[#allocation2 + $0x10] sm:$0xff] %vm454, %v446
        %460 = vst.msk [vmem:[#allocation2 + $0x18] sm:$0xff] %vm454, %v447
        %461 = vst.msk [vmem:[#allocation2 + $0x20] sm:$0xff] %vm454, %v448
        %462 = vst.msk [vmem:[#allocation2 + $0x28] sm:$0xff] %vm454, %v449
        %463 = vst.msk [vmem:[#allocation2 + $0x30] sm:$0xff] %vm454, %v450
        %464 = vst.msk [vmem:[#allocation2 + $0x38] sm:$0xff] %vm454, %v451
        %465 = vst.msk [vmem:[#allocation2 + $0x40] sm:$0xff] %vm454, %v452
        %466 = vst.msk [vmem:[#allocation2 + $0x48] sm:$0xff] %vm454, %v453
        %v467 = vlaneseq
        %v468 = vshrl.u32 %v467, 7
        %v469 = vadd.s32 %v468, 8
        %v470 = vadd.s32 %v468, 16
        %v471 = vadd.s32 %v468, 24
        %v472 = vadd.s32 %v468, 32
        %v473 = vadd.s32 %v468, 40
        %v474 = vadd.s32 %v468, 48
        %v475 = vadd.s32 %v468, 56
        %vm476 = vcmp.lt.s32.totalorder %v468, 0
        %v477 = vsub.s32 0, %v468
        %v478 = vsel %vm476, %v477, %v468
        %v479 = vshrl.u32 %v478, 3
        %v480 = vand.u32 %v478, 7
        %v481 = vsub.s32 0, %v480
        %v482 = vsel %vm476, %v481, %v480
        %vm483 = vcmp.lt.s32.totalorder %v469, 0
        %v484 = vsub.s32 0, %v469
        %v485 = vsel %vm483, %v484, %v469
        %v486 = vshrl.u32 %v485, 3
        %v487 = vand.u32 %v485, 7
        %v488 = vsub.s32 0, %v487
        %v489 = vsel %vm483, %v488, %v487
        %vm490 = vcmp.lt.s32.totalorder %v470, 0
        %v491 = vsub.s32 0, %v470
        %v492 = vsel %vm490, %v491, %v470
        %v493 = vshrl.u32 %v492, 3
        %v494 = vand.u32 %v492, 7
        %v495 = vsub.s32 0, %v494
        %v496 = vsel %vm490, %v495, %v494
        %vm497 = vcmp.lt.s32.totalorder %v471, 0
        %v498 = vsub.s32 0, %v471
        %v499 = vsel %vm497, %v498, %v471
        %v500 = vshrl.u32 %v499, 3
        %v501 = vand.u32 %v499, 7
        %v502 = vsub.s32 0, %v501
        %v503 = vsel %vm497, %v502, %v501
        %vm504 = vcmp.lt.s32.totalorder %v472, 0
        %v505 = vsub.s32 0, %v472
        %v506 = vsel %vm504, %v505, %v472
        %v507 = vshrl.u32 %v506, 3
        %v508 = vand.u32 %v506, 7
        %v509 = vsub.s32 0, %v508
        %v510 = vsel %vm504, %v509, %v508
        %vm511 = vcmp.lt.s32.totalorder %v473, 0
        %v512 = vsub.s32 0, %v473
        %v513 = vsel %vm511, %v512, %v473
        %v514 = vshrl.u32 %v513, 3
        %v515 = vand.u32 %v513, 7
        %v516 = vsub.s32 0, %v515
        %v517 = vsel %vm511, %v516, %v515
        %vm518 = vcmp.lt.s32.totalorder %v474, 0
        %v519 = vsub.s32 0, %v474
        %v520 = vsel %vm518, %v519, %v474
        %v521 = vshrl.u32 %v520, 3
        %v522 = vand.u32 %v520, 7
        %v523 = vsub.s32 0, %v522
        %v524 = vsel %vm518, %v523, %v522
        %vm525 = vcmp.lt.s32.totalorder %v475, 0
        %v526 = vsub.s32 0, %v475
        %v527 = vsel %vm525, %v526, %v475
        %v528 = vshrl.u32 %v527, 3
        %v529 = vand.u32 %v527, 7
        %v530 = vsub.s32 0, %v529
        %v531 = vsel %vm525, %v530, %v529
        %vm532 = vcmp.ne.s32.totalorder %v482, 0
        %vm533 = vcmp.ne.s32.totalorder %v489, 0
        %vm534 = vcmp.ne.s32.totalorder %v496, 0
        %vm535 = vcmp.ne.s32.totalorder %v503, 0
        %vm536 = vcmp.ne.s32.totalorder %v510, 0
        %vm537 = vcmp.ne.s32.totalorder %v517, 0
        %vm538 = vcmp.ne.s32.totalorder %v524, 0
        %vm539 = vcmp.ne.s32.totalorder %v531, 0
        %vm540 = vcmp.lt.s32.totalorder %v482, 0
        %vm541 = vcmp.lt.s32.totalorder %v489, 0
        %vm542 = vcmp.lt.s32.totalorder %v496, 0
        %vm543 = vcmp.lt.s32.totalorder %v503, 0
        %vm544 = vcmp.lt.s32.totalorder %v510, 0
        %vm545 = vcmp.lt.s32.totalorder %v517, 0
        %vm546 = vcmp.lt.s32.totalorder %v524, 0
        %vm547 = vcmp.lt.s32.totalorder %v531, 0
        %vm548 = vmand %vm540, %vm532
        %vm549 = vmand %vm541, %vm533
        %vm550 = vmand %vm542, %vm534
        %vm551 = vmand %vm543, %vm535
        %vm552 = vmand %vm544, %vm536
        %vm553 = vmand %vm545, %vm537
        %vm554 = vmand %vm546, %vm538
        %vm555 = vmand %vm547, %vm539
        %v556 = vadd.s32 %v482, 8
        %v557 = vadd.s32 %v489, 8
        %v558 = vadd.s32 %v496, 8
        %v559 = vadd.s32 %v503, 8
        %v560 = vadd.s32 %v510, 8
        %v561 = vadd.s32 %v517, 8
        %v562 = vadd.s32 %v524, 8
        %v563 = vadd.s32 %v531, 8
        %v564 = vsel %vm548, %v556, %v482
        %v565 = vsel %vm549, %v557, %v489
        %v566 = vsel %vm550, %v558, %v496
        %v567 = vsel %vm551, %v559, %v503
        %v568 = vsel %vm552, %v560, %v510
        %v569 = vsel %vm553, %v561, %v517
        %v570 = vsel %vm554, %v562, %v524
        %v571 = vsel %vm555, %v563, %v531
        %vm572 = vcmp.ge.s32.totalorder %v564, 1
        %vm573 = vcmp.ge.s32.totalorder %v565, 1
        %vm574 = vcmp.ge.s32.totalorder %v566, 1
        %vm575 = vcmp.ge.s32.totalorder %v567, 1
        %vm576 = vcmp.ge.s32.totalorder %v568, 1
        %vm577 = vcmp.ge.s32.totalorder %v569, 1
        %vm578 = vcmp.ge.s32.totalorder %v570, 1
        %vm579 = vcmp.ge.s32.totalorder %v571, 1
        %v580 = vsel %vm572, 1, 0
        %v581 = vsel %vm573, 1, 0
        %v582 = vsel %vm574, 1, 0
        %v583 = vsel %vm575, 1, 0
        %v584 = vsel %vm576, 1, 0
        %v585 = vsel %vm577, 1, 0
        %v586 = vsel %vm578, 1, 0
        %v587 = vsel %vm579, 1, 0
        %v588 = vcvt.s32.f32 %v580
        %v589 = vcvt.s32.f32 %v581
        %v590 = vcvt.s32.f32 %v582
        %v591 = vcvt.s32.f32 %v583
        %v592 = vcvt.s32.f32 %v584
        %v593 = vcvt.s32.f32 %v585
        %v594 = vcvt.s32.f32 %v586
        %v595 = vcvt.s32.f32 %v587
        %vm596 = vcmp.lt.s32.totalorder %v564, 7
        %vm597 = vcmp.lt.s32.totalorder %v565, 7
        %vm598 = vcmp.lt.s32.totalorder %v566, 7
        %vm599 = vcmp.lt.s32.totalorder %v567, 7
        %vm600 = vcmp.lt.s32.totalorder %v568, 7
        %vm601 = vcmp.lt.s32.totalorder %v569, 7
        %vm602 = vcmp.lt.s32.totalorder %v570, 7
        %vm603 = vcmp.lt.s32.totalorder %v571, 7
        %v604 = vsel %vm596, 1, 0
        %v605 = vsel %vm597, 1, 0
        %v606 = vsel %vm598, 1, 0
        %v607 = vsel %vm599, 1, 0
        %v608 = vsel %vm600, 1, 0
        %v609 = vsel %vm601, 1, 0
        %v610 = vsel %vm602, 1, 0
        %v611 = vsel %vm603, 1, 0
        %v612 = vcvt.s32.f32 %v604
        %v613 = vcvt.s32.f32 %v605
        %v614 = vcvt.s32.f32 %v606
        %v615 = vcvt.s32.f32 %v607
        %v616 = vcvt.s32.f32 %v608
        %v617 = vcvt.s32.f32 %v609
        %v618 = vcvt.s32.f32 %v610
        %v619 = vcvt.s32.f32 %v611
        %v620 = vld [vmem:[#allocation2 + $0x7] sm:$0xff]
        %v621 = vld [vmem:[#allocation2 + $0xf] sm:$0xff]
        %v622 = vld [vmem:[#allocation2 + $0x17] sm:$0xff]
        %v623 = vld [vmem:[#allocation2 + $0x1f] sm:$0xff]
        %v624 = vld [vmem:[#allocation2 + $0x27] sm:$0xff]
        %v625 = vld [vmem:[#allocation2 + $0x2f] sm:$0xff]
        %v626 = vld [vmem:[#allocation2 + $0x37] sm:$0xff]
        %v627 = vld [vmem:[#allocation2 + $0x3f] sm:$0xff]
        %v628 = vmul.f32 %v620, %v588
        %v629 = vmul.f32 %v621, %v589
        %v630 = vmul.f32 %v622, %v590
        %v631 = vmul.f32 %v623, %v591
        %v632 = vmul.f32 %v624, %v592
        %v633 = vmul.f32 %v625, %v593
        %v634 = vmul.f32 %v626, %v594
        %v635 = vmul.f32 %v627, %v595
        %v636 = vld [vmem:[#allocation2 + $0x8] sm:$0xff]
        %v637 = vld [vmem:[#allocation2 + $0x10] sm:$0xff]
        %v638 = vld [vmem:[#allocation2 + $0x18] sm:$0xff]
        %v639 = vld [vmem:[#allocation2 + $0x20] sm:$0xff]
        %v640 = vld [vmem:[#allocation2 + $0x28] sm:$0xff]
        %v641 = vld [vmem:[#allocation2 + $0x30] sm:$0xff]
        %v642 = vld [vmem:[#allocation2 + $0x38] sm:$0xff]
        %v643 = vld [vmem:[#allocation2 + $0x40] sm:$0xff]
        %v644 = vld [vmem:[#allocation2 + $0x9] sm:$0xff]
        %v645 = vld [vmem:[#allocation2 + $0x11] sm:$0xff]
        %v646 = vld [vmem:[#allocation2 + $0x19] sm:$0xff]
        %v647 = vld [vmem:[#allocation2 + $0x21] sm:$0xff]
        %v648 = vld [vmem:[#allocation2 + $0x29] sm:$0xff]
        %v649 = vld [vmem:[#allocation2 + $0x31] sm:$0xff]
        %v650 = vld [vmem:[#allocation2 + $0x39] sm:$0xff]
        %v651 = vld [vmem:[#allocation2 + $0x41] sm:$0xff]
        %v652 = vmul.f32 %v644, %v612
        %v653 = vmul.f32 %v645, %v613
        %v654 = vmul.f32 %v646, %v614
        %v655 = vmul.f32 %v647, %v615
        %v656 = vmul.f32 %v648, %v616
        %v657 = vmul.f32 %v649, %v617
        %v658 = vmul.f32 %v650, %v618
        %v659 = vmul.f32 %v651, %v619
        %v660 = vld [vmem:[#allocation2 + $0x47] sm:$0xff]
        %v661 = vmul.f32 %v621, %v588
        %v662 = vmul.f32 %v622, %v589
        %v663 = vmul.f32 %v623, %v590
        %v664 = vmul.f32 %v624, %v591
        %v665 = vmul.f32 %v625, %v592
        %v666 = vmul.f32 %v626, %v593
        %v667 = vmul.f32 %v627, %v594
        %v668 = vmul.f32 %v660, %v595
        %v669 = vld [vmem:[#allocation2 + $0x48] sm:$0xff]
        %v670 = vld [vmem:[#allocation2 + $0x49] sm:$0xff]
        %v671 = vmul.f32 %v645, %v612
        %v672 = vmul.f32 %v646, %v613
        %v673 = vmul.f32 %v647, %v614
        %v674 = vmul.f32 %v648, %v615
        %v675 = vmul.f32 %v649, %v616
        %v676 = vmul.f32 %v650, %v617
        %v677 = vmul.f32 %v651, %v618
        %v678 = vmul.f32 %v670, %v619
        %v679 = vld [vmem:[#allocation2 + $0x4f] sm:$0xff]
        %v680 = vmul.f32 %v622, %v588
        %v681 = vmul.f32 %v623, %v589
        %v682 = vmul.f32 %v624, %v590
        %v683 = vmul.f32 %v625, %v591
        %v684 = vmul.f32 %v626, %v592
        %v685 = vmul.f32 %v627, %v593
        %v686 = vmul.f32 %v660, %v594
        %v687 = vmul.f32 %v679, %v595
        %v688 = vld [vmem:[#allocation2 + $0x50] sm:$0xff]
        %v689 = vld [vmem:[#allocation2 + $0x51] sm:$0xff]
        %v690 = vmul.f32 %v646, %v612
        %v691 = vmul.f32 %v647, %v613
        %v692 = vmul.f32 %v648, %v614
        %v693 = vmul.f32 %v649, %v615
        %v694 = vmul.f32 %v650, %v616
        %v695 = vmul.f32 %v651, %v617
        %v696 = vmul.f32 %v670, %v618
        %v697 = vmul.f32 %v689, %v619
        %706 = vrot.lane.b32.xlu0 %v636, 4
        %v707 = vpop.permute.xlu0 %706
        %708 = vrot.lane.b32.xlu0 %v637, 4
        %v709 = vpop.permute.xlu0 %708
        %710 = vrot.lane.b32.xlu0 %v638, 4
        %v711 = vpop.permute.xlu0 %710
        %712 = vrot.lane.b32.xlu0 %v639, 4
        %v713 = vpop.permute.xlu0 %712
        %714 = vrot.lane.b32.xlu0 %v640, 4
        %v715 = vpop.permute.xlu0 %714
        %716 = vrot.lane.b32.xlu0 %v641, 4
        %v717 = vpop.permute.xlu0 %716
        %718 = vrot.lane.b32.xlu0 %v642, 4
        %v719 = vpop.permute.xlu0 %718
        %720 = vrot.lane.b32.xlu0 %v643, 4
        %v721 = vpop.permute.xlu0 %720
        %738 = vrot.lane.b32.xlu0 %v652, 8
        %v739 = vpop.permute.xlu0 %738
        %740 = vrot.lane.b32.xlu0 %v653, 8
        %v741 = vpop.permute.xlu0 %740
        %742 = vrot.lane.b32.xlu0 %v654, 8
        %v743 = vpop.permute.xlu0 %742
        %744 = vrot.lane.b32.xlu0 %v655, 8
        %v745 = vpop.permute.xlu0 %744
        %746 = vrot.lane.b32.xlu0 %v656, 8
        %v747 = vpop.permute.xlu0 %746
        %748 = vrot.lane.b32.xlu0 %v657, 8
        %v749 = vpop.permute.xlu0 %748
        %750 = vrot.lane.b32.xlu0 %v658, 8
        %v751 = vpop.permute.xlu0 %750
        %752 = vrot.lane.b32.xlu0 %v659, 8
        %v753 = vpop.permute.xlu0 %752
        %770 = vrot.lane.b32.xlu0 %v661, 12
        %v771 = vpop.permute.xlu0 %770
        %772 = vrot.lane.b32.xlu0 %v662, 12
        %v773 = vpop.permute.xlu0 %772
        %774 = vrot.lane.b32.xlu0 %v663, 12
        %v775 = vpop.permute.xlu0 %774
        %776 = vrot.lane.b32.xlu0 %v664, 12
        %v777 = vpop.permute.xlu0 %776
        %778 = vrot.lane.b32.xlu0 %v665, 12
        %v779 = vpop.permute.xlu0 %778
        %780 = vrot.lane.b32.xlu0 %v666, 12
        %v781 = vpop.permute.xlu0 %780
        %782 = vrot.lane.b32.xlu0 %v667, 12
        %v783 = vpop.permute.xlu0 %782
        %784 = vrot.lane.b32.xlu0 %v668, 12
        %v785 = vpop.permute.xlu0 %784
        %795 = vrot.lane.b32.xlu0 %v637, 16
        %v796 = vpop.permute.xlu0 %795
        %797 = vrot.lane.b32.xlu0 %v638, 16
        %v798 = vpop.permute.xlu0 %797
        %799 = vrot.lane.b32.xlu0 %v639, 16
        %v800 = vpop.permute.xlu0 %799
        %801 = vrot.lane.b32.xlu0 %v640, 16
        %v802 = vpop.permute.xlu0 %801
        %803 = vrot.lane.b32.xlu0 %v641, 16
        %v804 = vpop.permute.xlu0 %803
        %805 = vrot.lane.b32.xlu0 %v642, 16
        %v806 = vpop.permute.xlu0 %805
        %807 = vrot.lane.b32.xlu0 %v643, 16
        %v808 = vpop.permute.xlu0 %807
        %809 = vrot.lane.b32.xlu0 %v669, 16
        %v810 = vpop.permute.xlu0 %809
        %827 = vrot.lane.b32.xlu0 %v671, 20
        %v828 = vpop.permute.xlu0 %827
        %829 = vrot.lane.b32.xlu0 %v672, 20
        %v830 = vpop.permute.xlu0 %829
        %831 = vrot.lane.b32.xlu0 %v673, 20
        %v832 = vpop.permute.xlu0 %831
        %833 = vrot.lane.b32.xlu0 %v674, 20
        %v834 = vpop.permute.xlu0 %833
        %835 = vrot.lane.b32.xlu0 %v675, 20
        %v836 = vpop.permute.xlu0 %835
        %837 = vrot.lane.b32.xlu0 %v676, 20
        %v838 = vpop.permute.xlu0 %837
        %839 = vrot.lane.b32.xlu0 %v677, 20
        %v840 = vpop.permute.xlu0 %839
        %841 = vrot.lane.b32.xlu0 %v678, 20
        %v842 = vpop.permute.xlu0 %841
        %859 = vrot.lane.b32.xlu0 %v680, 24
        %v860 = vpop.permute.xlu0 %859
        %861 = vrot.lane.b32.xlu0 %v681, 24
        %v862 = vpop.permute.xlu0 %861
        %863 = vrot.lane.b32.xlu0 %v682, 24
        %v864 = vpop.permute.xlu0 %863
        %865 = vrot.lane.b32.xlu0 %v683, 24
        %v866 = vpop.permute.xlu0 %865
        %867 = vrot.lane.b32.xlu0 %v684, 24
        %v868 = vpop.permute.xlu0 %867
        %869 = vrot.lane.b32.xlu0 %v685, 24
        %v870 = vpop.permute.xlu0 %869
        %871 = vrot.lane.b32.xlu0 %v686, 24
        %v872 = vpop.permute.xlu0 %871
        %873 = vrot.lane.b32.xlu0 %v687, 24
        %v874 = vpop.permute.xlu0 %873
        %884 = vrot.lane.b32.xlu0 %v638, 28
        %v885 = vpop.permute.xlu0 %884
        %886 = vrot.lane.b32.xlu0 %v639, 28
        %v887 = vpop.permute.xlu0 %886
        %888 = vrot.lane.b32.xlu0 %v640, 28
        %v889 = vpop.permute.xlu0 %888
        %890 = vrot.lane.b32.xlu0 %v641, 28
        %v891 = vpop.permute.xlu0 %890
        %892 = vrot.lane.b32.xlu0 %v642, 28
        %v893 = vpop.permute.xlu0 %892
        %894 = vrot.lane.b32.xlu0 %v643, 28
        %v895 = vpop.permute.xlu0 %894
        %896 = vrot.lane.b32.xlu0 %v669, 28
        %v897 = vpop.permute.xlu0 %896
        %898 = vrot.lane.b32.xlu0 %v688, 28
        %v899 = vpop.permute.xlu0 %898
        %916 = vrot.lane.b32.xlu0 %v690, 32
        %v917 = vpop.permute.xlu0 %916
        %918 = vrot.lane.b32.xlu0 %v691, 32
        %v919 = vpop.permute.xlu0 %918
        %920 = vrot.lane.b32.xlu0 %v692, 32
        %v921 = vpop.permute.xlu0 %920
        %922 = vrot.lane.b32.xlu0 %v693, 32
        %v923 = vpop.permute.xlu0 %922
        %924 = vrot.lane.b32.xlu0 %v694, 32
        %v925 = vpop.permute.xlu0 %924
        %926 = vrot.lane.b32.xlu0 %v695, 32
        %v927 = vpop.permute.xlu0 %926
        %928 = vrot.lane.b32.xlu0 %v696, 32
        %v929 = vpop.permute.xlu0 %928
        %930 = vrot.lane.b32.xlu0 %v697, 32
        %v931 = vpop.permute.xlu0 %930
        %v940 = vsel %vm454, %v628, %v707
        %v941 = vsel %vm454, %v629, %v709
        %v942 = vsel %vm454, %v630, %v711
        %v943 = vsel %vm454, %v631, %v713
        %v944 = vsel %vm454, %v632, %v715
        %v945 = vsel %vm454, %v633, %v717
        %v946 = vsel %vm454, %v634, %v719
        %v947 = vsel %vm454, %v635, %v721
        %vm948 = vcmask 64512
        %v949 = vsel %vm948, %v940, %v739
        %v950 = vsel %vm948, %v941, %v741
        %v951 = vsel %vm948, %v942, %v743
        %v952 = vsel %vm948, %v943, %v745
        %v953 = vsel %vm948, %v944, %v747
        %v954 = vsel %vm948, %v945, %v749
        %v955 = vsel %vm948, %v946, %v751
        %v956 = vsel %vm948, %v947, %v753
        %vm957 = vcmask 97280
        %v958 = vsel %vm957, %v949, %v771
        %v959 = vsel %vm957, %v950, %v773
        %v960 = vsel %vm957, %v951, %v775
        %v961 = vsel %vm957, %v952, %v777
        %v962 = vsel %vm957, %v953, %v779
        %v963 = vsel %vm957, %v954, %v781
        %v964 = vsel %vm957, %v955, %v783
        %v965 = vsel %vm957, %v956, %v785
        %v966 = vsel %vm352, %v958, %v796
        %v967 = vsel %vm352, %v959, %v798
        %v968 = vsel %vm352, %v960, %v800
        %v969 = vsel %vm352, %v961, %v802
        %v970 = vsel %vm352, %v962, %v804
        %v971 = vsel %vm352, %v963, %v806
        %v972 = vsel %vm352, %v964, %v808
        %v973 = vsel %vm352, %v965, %v810
        %vm974 = vcmask 162816
        %v975 = vsel %vm974, %v966, %v828
        %v976 = vsel %vm974, %v967, %v830
        %v977 = vsel %vm974, %v968, %v832
        %v978 = vsel %vm974, %v969, %v834
        %v979 = vsel %vm974, %v970, %v836
        %v980 = vsel %vm974, %v971, %v838
        %v981 = vsel %vm974, %v972, %v840
        %v982 = vsel %vm974, %v973, %v842
        %vm983 = vcmask 195584
        %v984 = vsel %vm983, %v975, %v860
        %v985 = vsel %vm983, %v976, %v862
        %v986 = vsel %vm983, %v977, %v864
        %v987 = vsel %vm983, %v978, %v866
        %v988 = vsel %vm983, %v979, %v868
        %v989 = vsel %vm983, %v980, %v870
        %v990 = vsel %vm983, %v981, %v872
        %v991 = vsel %vm983, %v982, %v874
        %vm992 = vcmask 228352
        %v993 = vsel %vm992, %v984, %v885
        %v994 = vsel %vm992, %v985, %v887
        %v995 = vsel %vm992, %v986, %v889
        %v996 = vsel %vm992, %v987, %v891
        %v997 = vsel %vm992, %v988, %v893
        %v998 = vsel %vm992, %v989, %v895
        %v999 = vsel %vm992, %v990, %v897
        %v1000 = vsel %vm992, %v991, %v899
        %vm1001 = vcmask 261120
        %v1002 = vsel %vm1001, %v993, %v917
        %v1003 = vsel %vm1001, %v994, %v919
        %v1004 = vsel %vm1001, %v995, %v921
        %v1005 = vsel %vm1001, %v996, %v923
        %v1006 = vsel %vm1001, %v997, %v925
        %v1007 = vsel %vm1001, %v998, %v927
        %v1008 = vsel %vm1001, %v999, %v929
        %v1009 = vsel %vm1001, %v1000, %v931
        %v1010 = vpack.c.bf16 %v1003, %v1002
        %v1011 = vpack.c.bf16 %v1005, %v1004
        %v1012 = vpack.c.bf16 %v1007, %v1006
        %v1013 = vpack.c.bf16 %v1009, %v1008
        %v1014 = vld [vmem:[%s3] sm:$0xf]
        %v1015 = vld [vmem:[%s3 + $0x4] sm:$0xf]
        %v1016 = vld [vmem:[%s3 + $0x8] sm:$0xf]
        %v1017 = vld [vmem:[%s3 + $0xc] sm:$0xf]
        %v1018 = vld [vmem:[%s3 + $0x10] sm:$0x3]
        %v1019 = vld [vmem:[%s4] sm:$0x1]
        %v1021 = vlaneseq
        %v1022 = vshrl.u32 %v1021, 7
        %v1023 = vsub.s32 0, %v1022
        %v1024 = vrot.slane %v1019, %v1023
        %v1031 = vunpack.c.l.b16 %v1014
        %v1032 = vunpack.c.l.b16 %v1015
        %v1033 = vunpack.c.l.b16 %v1016
        %v1034 = vunpack.c.l.b16 %v1017
        %v1035 = vunpack.c.l.b16 %v1018
        %v1036 = vpack.c.b16 %v1032, %v1031
        %v1037 = vpack.c.b16 %v1034, %v1033
        %v1038 = vpack.c.b16 %v1035, %v1035
        %vm1041 = vcmask 293888
        %v1043 = vsel %vm1041, %v1010, 0
        %v1046 = vsel %vm1041, %v1011, 0
        %v1049 = vsel %vm1041, %v1012, 0
        %v1052 = vsel %vm1041, %v1013, 0
        %vm1054 = vcmask 1041408
        %v1056 = vsel %vm1054, %v1038, 0
        %1058 = vmatprep.subr.bf16.mxu0 0
        %1059 = vmatpush1.bf16.msra.mxu0 %v1036
        %1060 = vmatprep.subr.bf16.mxu0 0
        %1061 = vmatpush1.bf16.msra.mxu0 %v1037
        %1062 = vmatprep.subr.bf16.mxu0 0
        %1063 = vmatpush1.bf16.msra.mxu0 %v1056
        %1064 = vmatprep.subr.bf16.mxu0 0
        %1065 = vmatpush1.bf16.msra.mxu0 0
        %1066 = vmatprep.subr.bf16.mxu0 0
        %1067 = vmatpush1.bf16.msra.mxu0 0
        %1068 = vmatprep.subr.bf16.mxu0 0
        %1069 = vmatpush1.bf16.msra.mxu0 0
        %1070 = vmatprep.subr.bf16.mxu0 0
        %1071 = vmatpush1.bf16.msra.mxu0 0
        %1072 = vmatprep.subr.bf16.mxu0 0
        %1073 = vmatpush1.bf16.msra.mxu0 0
        %1074 = vmatprep.subr.bf16.mxu0 0
        %1075 = vmatpush1.bf16.msra.mxu0 0
        %1076 = vmatprep.subr.bf16.mxu0 0
        %1077 = vmatpush1.bf16.msra.mxu0 0
        %1078 = vmatprep.subr.bf16.mxu0 0
        %1079 = vmatpush1.bf16.msra.mxu0 0
        %1080 = vmatprep.subr.bf16.mxu0 0
        %1081 = vmatpush1.bf16.msra.mxu0 0
        %1082 = vmatprep.subr.bf16.mxu0 0
        %1083 = vmatpush1.bf16.msra.mxu0 0
        %1084 = vmatprep.subr.bf16.mxu0 0
        %1085 = vmatpush1.bf16.msra.mxu0 0
        %1086 = vmatprep.subr.bf16.mxu0 0
        %1087 = vmatpush1.bf16.msra.mxu0 0
        %1088 = vmatprep.subr.bf16.mxu0 0
        %1089 = vmatpush1.bf16.msra.mxu0 0
        %1090 = vmatprep.mubr.bf16.mxu0 0
        %1091 = vmatmul.mubr.bf16.gmra.mrb[0].mxu0 %v1043
        %v1092 = vpop.f32.mrb[0].mxu0
        %v1093 = vadd.f32 %v1024, %v1092
        %v1094 = vpop.f32.mrb[0].mxu0
        %v1095 = vpop.f32.mrb[0].mxu0
        %v1096 = vadd.f32 %v1024, %v1095
        %v1097 = vpop.f32.mrb[0].mxu0
        %1098 = vmatprep.mubr.bf16.mxu0 0
        %1099 = vmatmul.mubr.bf16.gmra.mrb[0].mxu0 %v1046
        %v1100 = vpop.f32.mrb[0].mxu0
        %v1101 = vadd.f32 %v1024, %v1100
        %v1102 = vpop.f32.mrb[0].mxu0
        %v1103 = vpop.f32.mrb[0].mxu0
        %v1104 = vadd.f32 %v1024, %v1103
        %v1105 = vpop.f32.mrb[0].mxu0
        %1106 = vmatprep.mubr.bf16.mxu0 0
        %1107 = vmatmul.mubr.bf16.gmra.mrb[0].mxu0 %v1049
        %v1108 = vpop.f32.mrb[0].mxu0
        %v1109 = vadd.f32 %v1024, %v1108
        %v1110 = vpop.f32.mrb[0].mxu0
        %v1111 = vpop.f32.mrb[0].mxu0
        %v1112 = vadd.f32 %v1024, %v1111
        %v1113 = vpop.f32.mrb[0].mxu0
        %1114 = vmatprep.mubr.bf16.mxu0 0
        %1115 = vmatmul.mubr.bf16.gmra.mrb[0].mxu0 %v1052
        %v1116 = vpop.f32.mrb[0].mxu0
        %v1117 = vadd.f32 %v1024, %v1116
        %v1118 = vpop.f32.mrb[0].mxu0
        %v1119 = vpop.f32.mrb[0].mxu0
        %v1120 = vadd.f32 %v1024, %v1119
        %v1121 = vpop.f32.mrb[0].mxu0
        %1122 = vdwg.mxu0
        %v1123 = vmax.f32 %v1093, 0.0
        %v1124 = vmax.f32 %v1096, 0.0
        %v1125 = vmax.f32 %v1101, 0.0
        %v1126 = vmax.f32 %v1104, 0.0
        %v1127 = vmax.f32 %v1109, 0.0
        %v1128 = vmax.f32 %v1112, 0.0
        %v1129 = vmax.f32 %v1117, 0.0
        %v1130 = vmax.f32 %v1120, 0.0
        %v1131 = vpack.c.bf16 %v1124, %v1123
        %v1132 = vpack.c.bf16 %v1126, %v1125
        %v1133 = vpack.c.bf16 %v1128, %v1127
        %v1134 = vpack.c.bf16 %v1130, %v1129
        %v1135 = vld [vmem:[%s5] sm:$0x3]
        %v1136 = vld [vmem:[%s6] sm:$0x1]
        %v1138 = vlaneseq
        %v1139 = vshrl.u32 %v1138, 7
        %v1140 = vsub.s32 0, %v1139
        %v1141 = vrot.slane %v1136, %v1140
        %v1144 = vsel %vm454, %v1131, 0
        %v1147 = vsel %vm454, %v1132, 0
        %v1150 = vsel %vm454, %v1133, 0
        %v1153 = vsel %vm454, %v1134, 0
        %v1156 = vsel %vm1054, %v1135, 0
        %1158 = vmatprep.subr.bf16.mxu0 0
        %1159 = vmatpush1.bf16.msra.mxu0 %v1156
        %1160 = vmatprep.subr.bf16.mxu0 0
        %1161 = vmatpush1.bf16.msra.mxu0 0
        %1162 = vmatprep.subr.bf16.mxu0 0
        %1163 = vmatpush1.bf16.msra.mxu0 0
        %1164 = vmatprep.subr.bf16.mxu0 0
        %1165 = vmatpush1.bf16.msra.mxu0 0
        %1166 = vmatprep.subr.bf16.mxu0 0
        %1167 = vmatpush1.bf16.msra.mxu0 0
        %1168 = vmatprep.subr.bf16.mxu0 0
        %1169 = vmatpush1.bf16.msra.mxu0 0
        %1170 = vmatprep.subr.bf16.mxu0 0
        %1171 = vmatpush1.bf16.msra.mxu0 0
        %1172 = vmatprep.subr.bf16.mxu0 0
        %1173 = vmatpush1.bf16.msra.mxu0 0
        %1174 = vmatprep.subr.bf16.mxu0 0
        %1175 = vmatpush1.bf16.msra.mxu0 0
        %1176 = vmatprep.subr.bf16.mxu0 0
        %1177 = vmatpush1.bf16.msra.mxu0 0
        %1178 = vmatprep.subr.bf16.mxu0 0
        %1179 = vmatpush1.bf16.msra.mxu0 0
        %1180 = vmatprep.subr.bf16.mxu0 0
        %1181 = vmatpush1.bf16.msra.mxu0 0
        %1182 = vmatprep.subr.bf16.mxu0 0
        %1183 = vmatpush1.bf16.msra.mxu0 0
        %1184 = vmatprep.subr.bf16.mxu0 0
        %1185 = vmatpush1.bf16.msra.mxu0 0
        %1186 = vmatprep.subr.bf16.mxu0 0
        %1187 = vmatpush1.bf16.msra.mxu0 0
        %1188 = vmatprep.subr.bf16.mxu0 0
        %1189 = vmatpush1.bf16.msra.mxu0 0
        %1190 = vmatprep.mubr.bf16.mxu0 0
        %1191 = vmatmul.mubr.bf16.gmra.mrb[0].mxu0 %v1144
        %v1192 = vpop.f32.mrb[0].mxu0
        %v1193 = vadd.f32 %v1141, %v1192
        %v1194 = vpop.f32.mrb[0].mxu0
        %v1195 = vpop.f32.mrb[0].mxu0
        %v1196 = vadd.f32 %v1141, %v1195
        %v1197 = vpop.f32.mrb[0].mxu0
        %1198 = vmatprep.mubr.bf16.mxu0 0
        %1199 = vmatmul.mubr.bf16.gmra.mrb[0].mxu0 %v1147
        %v1200 = vpop.f32.mrb[0].mxu0
        %v1201 = vadd.f32 %v1141, %v1200
        %v1202 = vpop.f32.mrb[0].mxu0
        %v1203 = vpop.f32.mrb[0].mxu0
        %v1204 = vadd.f32 %v1141, %v1203
        %v1205 = vpop.f32.mrb[0].mxu0
        %1206 = vmatprep.mubr.bf16.mxu0 0
        %1207 = vmatmul.mubr.bf16.gmra.mrb[0].mxu0 %v1150
        %v1208 = vpop.f32.mrb[0].mxu0
        %v1209 = vadd.f32 %v1141, %v1208
        %v1210 = vpop.f32.mrb[0].mxu0
        %v1211 = vpop.f32.mrb[0].mxu0
        %v1212 = vadd.f32 %v1141, %v1211
        %v1213 = vpop.f32.mrb[0].mxu0
        %1214 = vmatprep.mubr.bf16.mxu0 0
        %1215 = vmatmul.mubr.bf16.gmra.mrb[0].mxu0 %v1153
        %v1216 = vpop.f32.mrb[0].mxu0
        %v1217 = vadd.f32 %v1141, %v1216
        %v1218 = vpop.f32.mrb[0].mxu0
        %v1219 = vpop.f32.mrb[0].mxu0
        %v1220 = vadd.f32 %v1141, %v1219
        %v1221 = vpop.f32.mrb[0].mxu0
        %1222 = vdwg.mxu0
        %v1223 = vadd.f32 %v1193, %v325
        %v1224 = vadd.f32 %v1196, %v326
        %v1225 = vadd.f32 %v1201, %v327
        %v1226 = vadd.f32 %v1204, %v328
        %v1227 = vadd.f32 %v1209, %v329
        %v1228 = vadd.f32 %v1212, %v330
        %v1229 = vadd.f32 %v1217, %v331
        %v1230 = vadd.f32 %v1220, %v332
        %v1231 = vmax.f32 %v1223, 0.0
        %v1232 = vmax.f32 %v1224, 0.0
        %v1233 = vmax.f32 %v1225, 0.0
        %v1234 = vmax.f32 %v1226, 0.0
        %v1235 = vmax.f32 %v1227, 0.0
        %v1236 = vmax.f32 %v1228, 0.0
        %v1237 = vmax.f32 %v1229, 0.0
        %v1238 = vmax.f32 %v1230, 0.0
        %1239 = vst.msk [vmem:[%s313] sm:$0xff] %vm352, %v1231
        %1240 = vst.msk [vmem:[%s313 + $0x8] sm:$0xff] %vm352, %v1232
        %1241 = vst.msk [vmem:[%s313 + $0x10] sm:$0xff] %vm352, %v1233
        %1242 = vst.msk [vmem:[%s313 + $0x18] sm:$0xff] %vm352, %v1234
        %1243 = vst.msk [vmem:[%s313 + $0x20] sm:$0xff] %vm352, %v1235
        %1244 = vst.msk [vmem:[%s313 + $0x28] sm:$0xff] %vm352, %v1236
        %1245 = vst.msk [vmem:[%s313 + $0x30] sm:$0xff] %vm352, %v1237
        %1246 = vst.msk [vmem:[%s313 + $0x38] sm:$0xff] %vm352, %v1238
        %s1247 = sand.u32 %s208, 1
        %s1248 = scalar_lea.sflag [#allocation4], %s1247
        %s1249 = sand.u32 %s208, 1
        %s1250 = smul.addr %s1249, 64
        %s1251 = scalar_lea.vmem [#allocation3], %s1250
        // Predicated region
        $region53: #{conv_trans_block.17} parent=51 // pred_check
          %p1252 = pneg %p218
        $region54: #{conv_trans_block.17} parent=51 // pred_check_branch
          %1254 = sbr.rel (%p1252) target = $region56
        $region55: #{conv_trans_block.17} parent=51 // pred_region
          %s1256 = ssub.s32 1024, 1024
          %1257 = vsyncadd %s1248, %s1256
          %s1258 = smul.addr %s22, 8
          %s1259 = smul.addr %s1258, 128
          %s1260 = scalar_lea.hbm %s8, %s1259
          %s1261 = sshll.u32 %s1251, 4
          %s1262 = int_to_ptr.vmem [resolvable:$true] %s1261
          %1267 = dma.vmem_to_hbm [thread:$0]  %s1262, 1024, %s1260, %s1248, 128, 128, 8
        $region56: #{conv_trans_block.17} parent=51 // pred_fallthru
          _
      $region52: #{conv_trans_block.17} parent=5 // pred_fallthru
        _
      %p1268 = scmp.le.s32.totalorder 2, %s17
      // Predicated region
      $region57: #{conv_trans_block.17} parent=5 // pred_check
        %p1269 = pneg %p1268
      $region58: #{conv_trans_block.17} parent=5 // pred_check_branch
        %1271 = sbr.rel (%p1269) target = $region60
      $region59: #{conv_trans_block.17} parent=5 // pred_region
        %s1272 = ssub.s32 %s17, 2
        // Predicated region
        $region61: #{conv_trans_block.17} parent=59 // pred_check
          %p1273 = pneg %p224
        $region62: #{conv_trans_block.17} parent=59 // pred_check_branch
          %1275 = sbr.rel (%p1273) target = $region64
        $region63: #{conv_trans_block.17} parent=59 // pred_region
          %s1276 = sand.u32 %s209, 1
          %s1277 = scalar_lea.sflag [#allocation4], %s1276
          %s1278 = sand.u32 %s209, 1
          %s1279 = smul.addr %s1278, 64
          %s1280 = scalar_lea.vmem [#allocation3], %s1279
          %1281 = dma.done %s1277, 1024
        $region64: #{conv_trans_block.17} parent=59 // pred_fallthru
          _
      $region60: #{conv_trans_block.17} parent=5 // pred_fallthru
        _
    $region6: #{conv_trans_block.17} parent=1 // loop_footer
      %s21 = sadd.s32 1, %s17
    $region7: #{conv_trans_block.17} parent=1 // loop_footer_branch
      %16 = sbr.rel target = $region3
    $region8: #{conv_trans_block.17} parent=1 // loop_exit
      _
    %1282 = vsyncpa [#allocation4], 1
    %s1283 = scalar_lea.sflag [#allocation4], 1
    %1284 = vsyncpa %s1283, 1

</llo_original>
